<compile_context>
chip_gen: v7x
topology: tpu7x:2x2x1
jax: 0.10.0
libtpu: 0.0.40
codegen_flags: <defaults>
</compile_context>

<pallas_src>
import functools

import jax
import jax.numpy as jnp
from jax.experimental import pallas as pl
from jax.experimental.pallas import tpu as pltpu


def _rup(n, m):
    return ((n + m - 1) // m) * m


def resblock_forward(params, x, *, stride=1, eps=1e-5):
    """ResBlock forward. x: (B, Cin, H, W) f32 -> (B, O, Ho, Wo) f32."""
    B, Cin, H, W = x.shape
    O = params["w1"].shape[0]
    Ho = (H - 1) // stride + 1
    Wo = (W - 1) // stride + 1
    R = B * Ho * Wo                      # rows = flattened output positions (NHWC order)
    Rp = _rup(R, 8)                      # sublane padding only (8), not 128
    Cp = _rup(O, 128)                    # lane-dense output channels
    K1 = 9 * Cin
    K1p = _rup(K1, 16)                   # bf16-friendly contraction dim
    Cs = _rup(Cin, 16)
    PAD = _rup(Wo + 1, 8)                # guard rows around y1 for shifted conv2 reads
    has_sc = (stride != 1) or (Cin != O)

    f32 = jnp.float32
    x = x.astype(f32)
    xt = jnp.transpose(x, (0, 2, 3, 1))                          # NHWC

    # ---- im2col for conv1 (static XLA slices, done once) ----
    xpad = jnp.pad(xt, ((0, 0), (1, 1), (1, 1), (0, 0)))
    cols = []
    for ky in range(3):
        for kx in range(3):
            cols.append(xpad[:, ky:ky + (Ho - 1) * stride + 1:stride,
                               kx:kx + (Wo - 1) * stride + 1:stride, :])
    patches = jnp.concatenate(cols, axis=-1).reshape(R, K1)
    patches = jnp.pad(patches, ((0, Rp - R), (0, K1p - K1)))

    # ---- weights / BN params, padded once ----
    def pad_row(v):                                              # (O,) -> (1, Cp)
        return jnp.pad(v.astype(f32).reshape(1, -1), ((0, 0), (0, Cp - O)))

    w1m = jnp.transpose(params["w1"].astype(f32), (2, 3, 1, 0)).reshape(K1, O)
    w1m = jnp.pad(w1m, ((0, K1p - K1), (0, Cp - O)))
    w2m = jnp.transpose(params["w2"].astype(f32), (2, 3, 1, 0)).reshape(9, O, O)   # (tap, cin, cout)
    w2m = jnp.pad(w2m, ((0, 0), (0, Cp - O), (0, Cp - O))).reshape(9 * Cp, Cp)
    g1, b1 = pad_row(params["g1"]), pad_row(params["b1"])
    g2, b2 = pad_row(params["g2"]), pad_row(params["b2"])

    # ---- per-row spatial indices for conv2 boundary masks ----
    rr = jnp.arange(Rp)
    within = rr % (Ho * Wo)
    far = jnp.int32(-(10 ** 6))
    i_idx = jnp.where(rr < R, (within // Wo).astype(jnp.int32), far).reshape(Rp, 1)
    j_idx = jnp.where(rr < R, (within % Wo).astype(jnp.int32), far).reshape(Rp, 1)

    # ---- shortcut branch inputs ----
    if has_sc:
        xs = xt[:, ::stride, ::stride, :].reshape(R, Cin)
        sc_in = jnp.pad(xs, ((0, Rp - R), (0, Cs - Cin)))
        wsm = jnp.pad(params["ws"].astype(f32).reshape(O, Cin).T,
                      ((0, Cs - Cin), (0, Cp - O)))
        gs, bs = pad_row(params["gs"]), pad_row(params["bs"])
    else:
        sc_in = jnp.pad(xt.reshape(R, Cin), ((0, Rp - R), (0, Cp - Cin)))
        wsm = jnp.zeros((16, Cp), f32)      # unused
        gs = bs = jnp.zeros((1, Cp), f32)   # unused

    inv_R = 1.0 / R

    def kernel(p1_ref, w1_ref, g1_ref, b1_ref, w2_ref, g2_ref, b2_ref,
               iidx_ref, jidx_ref, sc_ref, ws_ref, gs_ref, bs_ref,
               out_ref, ybuf):
        rowmask = (jax.lax.broadcasted_iota(jnp.int32, (Rp, 1), 0) < R).astype(f32)

        def bnorm(z, g, b):                              # training-mode BN (biased variance)
            zm = z * rowmask
            mean = jnp.sum(zm, axis=0, keepdims=True) * inv_R
            var = jnp.sum(((z - mean) * rowmask) ** 2, axis=0, keepdims=True) * inv_R
            return (z - mean) * jax.lax.rsqrt(var + eps) * g + b

        def mxu(a, w):                                   # bf16 operands, f32 accumulation
            return jnp.dot(a.astype(jnp.bfloat16), w.astype(jnp.bfloat16),
                           preferred_element_type=f32)

        # conv1 + BN1 + ReLU
        z1 = mxu(p1_ref[...], w1_ref[...])
        y1 = jnp.maximum(bnorm(z1, g1_ref[...], b1_ref[...]), 0.0) * rowmask

        # stage y1 in a row-extended scratch so each conv2 tap is a contiguous shifted read
        ybuf[...] = jnp.zeros_like(ybuf)
        ybuf[pl.ds(PAD, Rp), :] = y1

        iv = iidx_ref[...]
        jv = jidx_ref[...]
        z2 = jnp.zeros((Rp, Cp), f32)
        t = 0
        for di in (-1, 0, 1):
            for dj in (-1, 0, 1):
                off = di * Wo + dj
                shifted = ybuf[pl.ds(PAD + off, Rp), :]
                valid = ((iv + di >= 0) & (iv + di < Ho) &
                         (jv + dj >= 0) & (jv + dj < Wo)).astype(f32)
                z2 = z2 + mxu(shifted * valid, w2_ref[pl.ds(t * Cp, Cp), :])
                t += 1
        y2 = bnorm(z2, g2_ref[...], b2_ref[...])

        # shortcut branch
        if has_sc:
            sc = bnorm(mxu(sc_ref[...], ws_ref[...]), gs_ref[...], bs_ref[...])
        else:
            sc = sc_ref[...]

        out_ref[...] = jnp.maximum(y2 + sc, 0.0)

    operands = (patches, w1m, g1, b1, w2m, g2, b2, i_idx, j_idx, sc_in, wsm, gs, bs)
    out = pl.pallas_call(
        kernel,
        grid=(1,),
        in_specs=[pl.BlockSpec(a.shape, lambda i: (0, 0)) for a in operands],
        out_specs=pl.BlockSpec((Rp, Cp), lambda i: (0, 0)),
        out_shape=jax.ShapeDtypeStruct((Rp, Cp), f32),
        scratch_shapes=[pltpu.VMEM((PAD + Rp + PAD, Cp), f32)],
        compiler_params=pltpu.CompilerParams(
            dimension_semantics=("arbitrary",),
            vmem_limit_bytes=32 * 1024 * 1024),
    )(*operands)

    out = out[:R, :O].reshape(B, Ho, Wo, O)
    return jnp.transpose(out, (0, 3, 1, 2))              # back to NCHW


# ----------------------------------------------------------- pure-JAX reference
def resblock_ref(params, x, *, stride=1, eps=1e-5):
    def conv(v, w, s, pad):
        return jax.lax.conv_general_dilated(
            v, w, window_strides=(s, s), padding=((pad, pad), (pad, pad)),
            dimension_numbers=("NCHW", "OIHW", "NCHW"))

    def bn(z, g, b):
        mean = jnp.mean(z, axis=(0, 2, 3), keepdims=True)
        var = jnp.mean((z - mean) ** 2, axis=(0, 2, 3), keepdims=True)
        return ((z - mean) * jax.lax.rsqrt(var + eps) * g.reshape(1, -1, 1, 1)
                + b.reshape(1, -1, 1, 1))

    y = jax.nn.relu(bn(conv(x, params["w1"], stride, 1), params["g1"], params["b1"]))
    y = bn(conv(y, params["w2"], 1, 1), params["g2"], params["b2"])
    if stride != 1 or x.shape[1] != params["w1"].shape[0]:
        sc = bn(conv(x, params["ws"], stride, 0), params["gs"], params["bs"])
    else:
        sc = x
    return jax.nn.relu(y + sc)


# ----------------------------------------------------------- synthetic parameters
def init_params(key, cin, cout):
    ks = jax.random.split(key, 9)

    def u(k, shape, fan_in):
        bound = 1.0 / (fan_in ** 0.5)
        return jax.random.uniform(k, shape, jnp.float32, -bound, bound)

    return {
        "w1": u(ks[0], (cout, cin, 3, 3), 9 * cin),
        "w2": u(ks[1], (cout, cout, 3, 3), 9 * cout),
        "ws": u(ks[2], (cout, cin, 1, 1), cin),
        "g1": 1.0 + 0.1 * jax.random.normal(ks[3], (cout,), jnp.float32),
        "b1": 0.1 * jax.random.normal(ks[4], (cout,), jnp.float32),
        "g2": 1.0 + 0.1 * jax.random.normal(ks[5], (cout,), jnp.float32),
        "b2": 0.1 * jax.random.normal(ks[6], (cout,), jnp.float32),
        "gs": 1.0 + 0.1 * jax.random.normal(ks[7], (cout,), jnp.float32),
        "bs": 0.1 * jax.random.normal(ks[8], (cout,), jnp.float32),
    }


if __name__ == "__main__":
    B, Cin, Cout, H, W, stride = 2, 4, 8, 16, 16, 2   # downsampling ResBlock (shortcut conv active)

    key = jax.random.PRNGKey(0)
    kx, kp = jax.random.split(key)
    x = jax.random.normal(kx, (B, Cin, H, W), jnp.float32)
    params = init_params(kp, Cin, Cout)

    fwd = jax.jit(functools.partial(resblock_forward, stride=stride))
    out = jax.block_until_ready(fwd(params, x))

    Ho = (H - 1) // stride + 1
    assert out.shape == (B, Cout, Ho, Ho), out.shape

    # sanity check vs pure-JAX reference (loose tolerance: kernel uses bf16 MXU operands)
    ref = resblock_ref(params, x, stride=stride)
    err = float(jnp.max(jnp.abs(out - ref)))
    assert err < 0.25, f"max abs err vs reference = {err}"

    print("KERNEL_OK")
</pallas_src>

<mosaic_0001>
module attributes {stable_mosaic.version = 11 : i64} {
  func.func @kernel(%arg0: i32, %arg1: memref<128x48xf32, #tpu.memory_space<vmem>>, %arg2: memref<48x128xf32, #tpu.memory_space<vmem>>, %arg3: memref<1x128xf32, #tpu.memory_space<vmem>>, %arg4: memref<1x128xf32, #tpu.memory_space<vmem>>, %arg5: memref<1152x128xf32, #tpu.memory_space<vmem>>, %arg6: memref<1x128xf32, #tpu.memory_space<vmem>>, %arg7: memref<1x128xf32, #tpu.memory_space<vmem>>, %arg8: memref<128x1xi32, #tpu.memory_space<vmem>>, %arg9: memref<128x1xi32, #tpu.memory_space<vmem>>, %arg10: memref<128x16xf32, #tpu.memory_space<vmem>>, %arg11: memref<16x128xf32, #tpu.memory_space<vmem>>, %arg12: memref<1x128xf32, #tpu.memory_space<vmem>>, %arg13: memref<1x128xf32, #tpu.memory_space<vmem>>, %arg14: memref<128x128xf32, #tpu.memory_space<vmem>>, %arg15: memref<160x128xf32, #tpu.memory_space<vmem>>) attributes {dimension_semantics = [#tpu.dimension_semantics<arbitrary>], iteration_bounds = array<i64: 1>, scalar_prefetch = 0 : i64, scratch_operands = 1 : i64, tpu.core_type = #tpu.core_type<tc>, window_params = [{pipeline_mode = #tpu.pipeline_mode<synchronous>, transform_indices = @transform_0, window_bounds = array<i64: 128, 48>}, {pipeline_mode = #tpu.pipeline_mode<synchronous>, transform_indices = @transform_1, window_bounds = array<i64: 48, 128>}, {pipeline_mode = #tpu.pipeline_mode<synchronous>, transform_indices = @transform_2, window_bounds = array<i64: 1, 128>}, {pipeline_mode = #tpu.pipeline_mode<synchronous>, transform_indices = @transform_3, window_bounds = array<i64: 1, 128>}, {pipeline_mode = #tpu.pipeline_mode<synchronous>, transform_indices = @transform_4, window_bounds = array<i64: 1152, 128>}, {pipeline_mode = #tpu.pipeline_mode<synchronous>, transform_indices = @transform_5, window_bounds = array<i64: 1, 128>}, {pipeline_mode = #tpu.pipeline_mode<synchronous>, transform_indices = @transform_6, window_bounds = array<i64: 1, 128>}, {pipeline_mode = #tpu.pipeline_mode<synchronous>, transform_indices = @transform_7, window_bounds = array<i64: 128, 1>}, {pipeline_mode = #tpu.pipeline_mode<synchronous>, transform_indices = @transform_8, window_bounds = array<i64: 128, 1>}, {pipeline_mode = #tpu.pipeline_mode<synchronous>, transform_indices = @transform_9, window_bounds = array<i64: 128, 16>}, {pipeline_mode = #tpu.pipeline_mode<synchronous>, transform_indices = @transform_10, window_bounds = array<i64: 16, 128>}, {pipeline_mode = #tpu.pipeline_mode<synchronous>, transform_indices = @transform_11, window_bounds = array<i64: 1, 128>}, {pipeline_mode = #tpu.pipeline_mode<synchronous>, transform_indices = @transform_12, window_bounds = array<i64: 1, 128>}, {pipeline_mode = #tpu.pipeline_mode<synchronous>, transform_indices = @transform_13, window_bounds = array<i64: 128, 128>}]} {
    %0 = tpu.iota {dimensions = array<i32: 0>} : vector<128x1xi32>
    %c128_i32 = arith.constant 128 : i32
    %1 = vector.broadcast %c128_i32 : i32 to vector<128x1xi32>
    %2 = arith.cmpi slt, %0, %1 : vector<128x1xi32>
    %3 = arith.extui %2 : vector<128x1xi1> to vector<128x1xi32>
    %4 = arith.sitofp %3 : vector<128x1xi32> to vector<128x1xf32>
    %c0 = arith.constant 0 : index
    %c0_0 = arith.constant 0 : index
    %5 = vector.load %arg1[%c0, %c0_0] : memref<128x48xf32, #tpu.memory_space<vmem>>, vector<128x48xf32>
    %c0_1 = arith.constant 0 : index
    %c0_2 = arith.constant 0 : index
    %6 = vector.load %arg2[%c0_1, %c0_2] : memref<48x128xf32, #tpu.memory_space<vmem>>, vector<48x128xf32>
    %7 = arith.truncf %5 : vector<128x48xf32> to vector<128x48xbf16>
    %8 = arith.truncf %6 : vector<48x128xf32> to vector<48x128xbf16>
    %cst = arith.constant dense<0.000000e+00> : vector<128x128xf32>
    %9 = tpu.matmul %7, %8, %cst {dimension_numbers = #tpu.dot_dimension_numbers<[1], [0], [0], [1], [0, 0, 1, 1], [], []>} : vector<128x48xbf16>, vector<48x128xbf16>, vector<128x128xf32> -> vector<128x128xf32>
    %c0_3 = arith.constant 0 : index
    %c0_4 = arith.constant 0 : index
    %10 = vector.load %arg3[%c0_3, %c0_4] : memref<1x128xf32, #tpu.memory_space<vmem>>, vector<1x128xf32>
    %c0_5 = arith.constant 0 : index
    %c0_6 = arith.constant 0 : index
    %11 = vector.load %arg4[%c0_5, %c0_6] : memref<1x128xf32, #tpu.memory_space<vmem>>, vector<1x128xf32>
    %12 = vector.broadcast %4 : vector<128x1xf32> to vector<128x128xf32>
    %13 = arith.mulf %9, %12 : vector<128x128xf32>
    %cst_7 = arith.constant dense<0.000000e+00> : vector<128xf32>
    %14 = vector.multi_reduction <add>, %13, %cst_7 [0] : vector<128x128xf32> to vector<128xf32>
    %15 = vector.shape_cast %14 : vector<128xf32> to vector<1x128xf32>
    %cst_8 = arith.constant 7.812500e-03 : f32
    %16 = vector.broadcast %cst_8 : f32 to vector<1x128xf32>
    %17 = arith.mulf %15, %16 : vector<1x128xf32>
    %18 = vector.broadcast %17 : vector<1x128xf32> to vector<128x128xf32>
    %19 = arith.subf %9, %18 : vector<128x128xf32>
    %20 = vector.broadcast %4 : vector<128x1xf32> to vector<128x128xf32>
    %21 = arith.mulf %19, %20 : vector<128x128xf32>
    %22 = arith.mulf %21, %21 : vector<128x128xf32>
    %cst_9 = arith.constant dense<0.000000e+00> : vector<128xf32>
    %23 = vector.multi_reduction <add>, %22, %cst_9 [0] : vector<128x128xf32> to vector<128xf32>
    %24 = vector.shape_cast %23 : vector<128xf32> to vector<1x128xf32>
    %cst_10 = arith.constant 7.812500e-03 : f32
    %25 = vector.broadcast %cst_10 : f32 to vector<1x128xf32>
    %26 = arith.mulf %24, %25 : vector<1x128xf32>
    %27 = vector.broadcast %17 : vector<1x128xf32> to vector<128x128xf32>
    %28 = arith.subf %9, %27 : vector<128x128xf32>
    %cst_11 = arith.constant 9.99999974E-6 : f32
    %29 = vector.broadcast %cst_11 : f32 to vector<1x128xf32>
    %30 = arith.addf %26, %29 : vector<1x128xf32>
    %31 = math.rsqrt %30 : vector<1x128xf32>
    %32 = vector.broadcast %31 : vector<1x128xf32> to vector<128x128xf32>
    %33 = arith.mulf %28, %32 : vector<128x128xf32>
    %34 = vector.broadcast %10 : vector<1x128xf32> to vector<128x128xf32>
    %35 = arith.mulf %33, %34 : vector<128x128xf32>
    %36 = vector.broadcast %11 : vector<1x128xf32> to vector<128x128xf32>
    %37 = arith.addf %35, %36 : vector<128x128xf32>
    %cst_12 = arith.constant 0.000000e+00 : f32
    %38 = vector.broadcast %cst_12 : f32 to vector<128x128xf32>
    %39 = arith.maximumf %37, %38 : vector<128x128xf32>
    %40 = vector.broadcast %4 : vector<128x1xf32> to vector<128x128xf32>
    %41 = arith.mulf %39, %40 : vector<128x128xf32>
    %cst_13 = arith.constant 0.000000e+00 : f32
    %42 = vector.broadcast %cst_13 : f32 to vector<160x128xf32>
    %c0_14 = arith.constant 0 : index
    %c0_15 = arith.constant 0 : index
    %43 = vector.load %arg15[%c0_14, %c0_15] : memref<160x128xf32, #tpu.memory_space<vmem>>, vector<160x128xf32>
    tpu.vector_store %arg15[%c0_14, %c0_15], %42 {strides = array<i32>} : memref<160x128xf32, #tpu.memory_space<vmem>>, vector<160x128xf32>,
    %c16 = arith.constant 16 : index
    %c0_16 = arith.constant 0 : index
    %44 = vector.load %arg15[%c16, %c0_16] : memref<160x128xf32, #tpu.memory_space<vmem>>, vector<128x128xf32>
    tpu.vector_store %arg15[%c16, %c0_16], %41 {strides = array<i32>} : memref<160x128xf32, #tpu.memory_space<vmem>>, vector<128x128xf32>,
    %c0_17 = arith.constant 0 : index
    %c0_18 = arith.constant 0 : index
    %45 = vector.load %arg8[%c0_17, %c0_18] : memref<128x1xi32, #tpu.memory_space<vmem>>, vector<128x1xi32>
    %c0_19 = arith.constant 0 : index
    %c0_20 = arith.constant 0 : index
    %46 = vector.load %arg9[%c0_19, %c0_20] : memref<128x1xi32, #tpu.memory_space<vmem>>, vector<128x1xi32>
    %cst_21 = arith.constant 0.000000e+00 : f32
    %47 = vector.broadcast %cst_21 : f32 to vector<128x128xf32>
    %c7 = arith.constant 7 : index
    %c0_22 = arith.constant 0 : index
    %48 = vector.load %arg15[%c7, %c0_22] : memref<160x128xf32, #tpu.memory_space<vmem>>, vector<128x128xf32>
    %c-1_i32 = arith.constant -1 : i32
    %49 = vector.broadcast %c-1_i32 : i32 to vector<128x1xi32>
    %50 = arith.addi %45, %49 : vector<128x1xi32>
    %c0_i32 = arith.constant 0 : i32
    %51 = vector.broadcast %c0_i32 : i32 to vector<128x1xi32>
    %52 = arith.cmpi sge, %50, %51 : vector<128x1xi32>
    %c-1_i32_23 = arith.constant -1 : i32
    %53 = vector.broadcast %c-1_i32_23 : i32 to vector<128x1xi32>
    %54 = arith.addi %45, %53 : vector<128x1xi32>
    %c8_i32 = arith.constant 8 : i32
    %55 = vector.broadcast %c8_i32 : i32 to vector<128x1xi32>
    %56 = arith.cmpi slt, %54, %55 : vector<128x1xi32>
    %57 = arith.andi %52, %56 : vector<128x1xi1>
    %c-1_i32_24 = arith.constant -1 : i32
    %58 = vector.broadcast %c-1_i32_24 : i32 to vector<128x1xi32>
    %59 = arith.addi %46, %58 : vector<128x1xi32>
    %c0_i32_25 = arith.constant 0 : i32
    %60 = vector.broadcast %c0_i32_25 : i32 to vector<128x1xi32>
    %61 = arith.cmpi sge, %59, %60 : vector<128x1xi32>
    %62 = arith.andi %57, %61 : vector<128x1xi1>
    %c-1_i32_26 = arith.constant -1 : i32
    %63 = vector.broadcast %c-1_i32_26 : i32 to vector<128x1xi32>
    %64 = arith.addi %46, %63 : vector<128x1xi32>
    %c8_i32_27 = arith.constant 8 : i32
    %65 = vector.broadcast %c8_i32_27 : i32 to vector<128x1xi32>
    %66 = arith.cmpi slt, %64, %65 : vector<128x1xi32>
    %67 = arith.andi %62, %66 : vector<128x1xi1>
    %68 = arith.extui %67 : vector<128x1xi1> to vector<128x1xi32>
    %69 = arith.sitofp %68 : vector<128x1xi32> to vector<128x1xf32>
    %70 = vector.broadcast %69 : vector<128x1xf32> to vector<128x128xf32>
    %71 = arith.mulf %48, %70 : vector<128x128xf32>
    %c0_28 = arith.constant 0 : index
    %c0_29 = arith.constant 0 : index
    %72 = vector.load %arg5[%c0_28, %c0_29] : memref<1152x128xf32, #tpu.memory_space<vmem>>, vector<128x128xf32>
    %73 = arith.truncf %71 : vector<128x128xf32> to vector<128x128xbf16>
    %74 = arith.truncf %72 : vector<128x128xf32> to vector<128x128xbf16>
    %cst_30 = arith.constant dense<0.000000e+00> : vector<128x128xf32>
    %75 = tpu.matmul %73, %74, %cst_30 {dimension_numbers = #tpu.dot_dimension_numbers<[1], [0], [0], [1], [0, 0, 1, 1], [], []>} : vector<128x128xbf16>, vector<128x128xbf16>, vector<128x128xf32> -> vector<128x128xf32>
    %76 = arith.addf %47, %75 : vector<128x128xf32>
    %c8 = arith.constant 8 : index
    %c0_31 = arith.constant 0 : index
    %77 = vector.load %arg15[%c8, %c0_31] : memref<160x128xf32, #tpu.memory_space<vmem>>, vector<128x128xf32>
    %c-1_i32_32 = arith.constant -1 : i32
    %78 = vector.broadcast %c-1_i32_32 : i32 to vector<128x1xi32>
    %79 = arith.addi %45, %78 : vector<128x1xi32>
    %c0_i32_33 = arith.constant 0 : i32
    %80 = vector.broadcast %c0_i32_33 : i32 to vector<128x1xi32>
    %81 = arith.cmpi sge, %79, %80 : vector<128x1xi32>
    %c-1_i32_34 = arith.constant -1 : i32
    %82 = vector.broadcast %c-1_i32_34 : i32 to vector<128x1xi32>
    %83 = arith.addi %45, %82 : vector<128x1xi32>
    %c8_i32_35 = arith.constant 8 : i32
    %84 = vector.broadcast %c8_i32_35 : i32 to vector<128x1xi32>
    %85 = arith.cmpi slt, %83, %84 : vector<128x1xi32>
    %86 = arith.andi %81, %85 : vector<128x1xi1>
    %c0_i32_36 = arith.constant 0 : i32
    %87 = vector.broadcast %c0_i32_36 : i32 to vector<128x1xi32>
    %88 = arith.addi %46, %87 : vector<128x1xi32>
    %c0_i32_37 = arith.constant 0 : i32
    %89 = vector.broadcast %c0_i32_37 : i32 to vector<128x1xi32>
    %90 = arith.cmpi sge, %88, %89 : vector<128x1xi32>
    %91 = arith.andi %86, %90 : vector<128x1xi1>
    %c0_i32_38 = arith.constant 0 : i32
    %92 = vector.broadcast %c0_i32_38 : i32 to vector<128x1xi32>
    %93 = arith.addi %46, %92 : vector<128x1xi32>
    %c8_i32_39 = arith.constant 8 : i32
    %94 = vector.broadcast %c8_i32_39 : i32 to vector<128x1xi32>
    %95 = arith.cmpi slt, %93, %94 : vector<128x1xi32>
    %96 = arith.andi %91, %95 : vector<128x1xi1>
    %97 = arith.extui %96 : vector<128x1xi1> to vector<128x1xi32>
    %98 = arith.sitofp %97 : vector<128x1xi32> to vector<128x1xf32>
    %99 = vector.broadcast %98 : vector<128x1xf32> to vector<128x128xf32>
    %100 = arith.mulf %77, %99 : vector<128x128xf32>
    %c128 = arith.constant 128 : index
    %c0_40 = arith.constant 0 : index
    %101 = vector.load %arg5[%c128, %c0_40] : memref<1152x128xf32, #tpu.memory_space<vmem>>, vector<128x128xf32>
    %102 = arith.truncf %100 : vector<128x128xf32> to vector<128x128xbf16>
    %103 = arith.truncf %101 : vector<128x128xf32> to vector<128x128xbf16>
    %cst_41 = arith.constant dense<0.000000e+00> : vector<128x128xf32>
    %104 = tpu.matmul %102, %103, %cst_41 {dimension_numbers = #tpu.dot_dimension_numbers<[1], [0], [0], [1], [0, 0, 1, 1], [], []>} : vector<128x128xbf16>, vector<128x128xbf16>, vector<128x128xf32> -> vector<128x128xf32>
    %105 = arith.addf %76, %104 : vector<128x128xf32>
    %c9 = arith.constant 9 : index
    %c0_42 = arith.constant 0 : index
    %106 = vector.load %arg15[%c9, %c0_42] : memref<160x128xf32, #tpu.memory_space<vmem>>, vector<128x128xf32>
    %c-1_i32_43 = arith.constant -1 : i32
    %107 = vector.broadcast %c-1_i32_43 : i32 to vector<128x1xi32>
    %108 = arith.addi %45, %107 : vector<128x1xi32>
    %c0_i32_44 = arith.constant 0 : i32
    %109 = vector.broadcast %c0_i32_44 : i32 to vector<128x1xi32>
    %110 = arith.cmpi sge, %108, %109 : vector<128x1xi32>
    %c-1_i32_45 = arith.constant -1 : i32
    %111 = vector.broadcast %c-1_i32_45 : i32 to vector<128x1xi32>
    %112 = arith.addi %45, %111 : vector<128x1xi32>
    %c8_i32_46 = arith.constant 8 : i32
    %113 = vector.broadcast %c8_i32_46 : i32 to vector<128x1xi32>
    %114 = arith.cmpi slt, %112, %113 : vector<128x1xi32>
    %115 = arith.andi %110, %114 : vector<128x1xi1>
    %c1_i32 = arith.constant 1 : i32
    %116 = vector.broadcast %c1_i32 : i32 to vector<128x1xi32>
    %117 = arith.addi %46, %116 : vector<128x1xi32>
    %c0_i32_47 = arith.constant 0 : i32
    %118 = vector.broadcast %c0_i32_47 : i32 to vector<128x1xi32>
    %119 = arith.cmpi sge, %117, %118 : vector<128x1xi32>
    %120 = arith.andi %115, %119 : vector<128x1xi1>
    %c1_i32_48 = arith.constant 1 : i32
    %121 = vector.broadcast %c1_i32_48 : i32 to vector<128x1xi32>
    %122 = arith.addi %46, %121 : vector<128x1xi32>
    %c8_i32_49 = arith.constant 8 : i32
    %123 = vector.broadcast %c8_i32_49 : i32 to vector<128x1xi32>
    %124 = arith.cmpi slt, %122, %123 : vector<128x1xi32>
    %125 = arith.andi %120, %124 : vector<128x1xi1>
    %126 = arith.extui %125 : vector<128x1xi1> to vector<128x1xi32>
    %127 = arith.sitofp %126 : vector<128x1xi32> to vector<128x1xf32>
    %128 = vector.broadcast %127 : vector<128x1xf32> to vector<128x128xf32>
    %129 = arith.mulf %106, %128 : vector<128x128xf32>
    %c256 = arith.constant 256 : index
    %c0_50 = arith.constant 0 : index
    %130 = vector.load %arg5[%c256, %c0_50] : memref<1152x128xf32, #tpu.memory_space<vmem>>, vector<128x128xf32>
    %131 = arith.truncf %129 : vector<128x128xf32> to vector<128x128xbf16>
    %132 = arith.truncf %130 : vector<128x128xf32> to vector<128x128xbf16>
    %cst_51 = arith.constant dense<0.000000e+00> : vector<128x128xf32>
    %133 = tpu.matmul %131, %132, %cst_51 {dimension_numbers = #tpu.dot_dimension_numbers<[1], [0], [0], [1], [0, 0, 1, 1], [], []>} : vector<128x128xbf16>, vector<128x128xbf16>, vector<128x128xf32> -> vector<128x128xf32>
    %134 = arith.addf %105, %133 : vector<128x128xf32>
    %c15 = arith.constant 15 : index
    %c0_52 = arith.constant 0 : index
    %135 = vector.load %arg15[%c15, %c0_52] : memref<160x128xf32, #tpu.memory_space<vmem>>, vector<128x128xf32>
    %c0_i32_53 = arith.constant 0 : i32
    %136 = vector.broadcast %c0_i32_53 : i32 to vector<128x1xi32>
    %137 = arith.addi %45, %136 : vector<128x1xi32>
    %c0_i32_54 = arith.constant 0 : i32
    %138 = vector.broadcast %c0_i32_54 : i32 to vector<128x1xi32>
    %139 = arith.cmpi sge, %137, %138 : vector<128x1xi32>
    %c0_i32_55 = arith.constant 0 : i32
    %140 = vector.broadcast %c0_i32_55 : i32 to vector<128x1xi32>
    %141 = arith.addi %45, %140 : vector<128x1xi32>
    %c8_i32_56 = arith.constant 8 : i32
    %142 = vector.broadcast %c8_i32_56 : i32 to vector<128x1xi32>
    %143 = arith.cmpi slt, %141, %142 : vector<128x1xi32>
    %144 = arith.andi %139, %143 : vector<128x1xi1>
    %c-1_i32_57 = arith.constant -1 : i32
    %145 = vector.broadcast %c-1_i32_57 : i32 to vector<128x1xi32>
    %146 = arith.addi %46, %145 : vector<128x1xi32>
    %c0_i32_58 = arith.constant 0 : i32
    %147 = vector.broadcast %c0_i32_58 : i32 to vector<128x1xi32>
    %148 = arith.cmpi sge, %146, %147 : vector<128x1xi32>
    %149 = arith.andi %144, %148 : vector<128x1xi1>
    %c-1_i32_59 = arith.constant -1 : i32
    %150 = vector.broadcast %c-1_i32_59 : i32 to vector<128x1xi32>
    %151 = arith.addi %46, %150 : vector<128x1xi32>
    %c8_i32_60 = arith.constant 8 : i32
    %152 = vector.broadcast %c8_i32_60 : i32 to vector<128x1xi32>
    %153 = arith.cmpi slt, %151, %152 : vector<128x1xi32>
    %154 = arith.andi %149, %153 : vector<128x1xi1>
    %155 = arith.extui %154 : vector<128x1xi1> to vector<128x1xi32>
    %156 = arith.sitofp %155 : vector<128x1xi32> to vector<128x1xf32>
    %157 = vector.broadcast %156 : vector<128x1xf32> to vector<128x128xf32>
    %158 = arith.mulf %135, %157 : vector<128x128xf32>
    %c384 = arith.constant 384 : index
    %c0_61 = arith.constant 0 : index
    %159 = vector.load %arg5[%c384, %c0_61] : memref<1152x128xf32, #tpu.memory_space<vmem>>, vector<128x128xf32>
    %160 = arith.truncf %158 : vector<128x128xf32> to vector<128x128xbf16>
    %161 = arith.truncf %159 : vector<128x128xf32> to vector<128x128xbf16>
    %cst_62 = arith.constant dense<0.000000e+00> : vector<128x128xf32>
    %162 = tpu.matmul %160, %161, %cst_62 {dimension_numbers = #tpu.dot_dimension_numbers<[1], [0], [0], [1], [0, 0, 1, 1], [], []>} : vector<128x128xbf16>, vector<128x128xbf16>, vector<128x128xf32> -> vector<128x128xf32>
    %163 = arith.addf %134, %162 : vector<128x128xf32>
    %c16_63 = arith.constant 16 : index
    %c0_64 = arith.constant 0 : index
    %164 = vector.load %arg15[%c16_63, %c0_64] : memref<160x128xf32, #tpu.memory_space<vmem>>, vector<128x128xf32>
    %c0_i32_65 = arith.constant 0 : i32
    %165 = vector.broadcast %c0_i32_65 : i32 to vector<128x1xi32>
    %166 = arith.addi %45, %165 : vector<128x1xi32>
    %c0_i32_66 = arith.constant 0 : i32
    %167 = vector.broadcast %c0_i32_66 : i32 to vector<128x1xi32>
    %168 = arith.cmpi sge, %166, %167 : vector<128x1xi32>
    %c0_i32_67 = arith.constant 0 : i32
    %169 = vector.broadcast %c0_i32_67 : i32 to vector<128x1xi32>
    %170 = arith.addi %45, %169 : vector<128x1xi32>
    %c8_i32_68 = arith.constant 8 : i32
    %171 = vector.broadcast %c8_i32_68 : i32 to vector<128x1xi32>
    %172 = arith.cmpi slt, %170, %171 : vector<128x1xi32>
    %173 = arith.andi %168, %172 : vector<128x1xi1>
    %c0_i32_69 = arith.constant 0 : i32
    %174 = vector.broadcast %c0_i32_69 : i32 to vector<128x1xi32>
    %175 = arith.addi %46, %174 : vector<128x1xi32>
    %c0_i32_70 = arith.constant 0 : i32
    %176 = vector.broadcast %c0_i32_70 : i32 to vector<128x1xi32>
    %177 = arith.cmpi sge, %175, %176 : vector<128x1xi32>
    %178 = arith.andi %173, %177 : vector<128x1xi1>
    %c0_i32_71 = arith.constant 0 : i32
    %179 = vector.broadcast %c0_i32_71 : i32 to vector<128x1xi32>
    %180 = arith.addi %46, %179 : vector<128x1xi32>
    %c8_i32_72 = arith.constant 8 : i32
    %181 = vector.broadcast %c8_i32_72 : i32 to vector<128x1xi32>
    %182 = arith.cmpi slt, %180, %181 : vector<128x1xi32>
    %183 = arith.andi %178, %182 : vector<128x1xi1>
    %184 = arith.extui %183 : vector<128x1xi1> to vector<128x1xi32>
    %185 = arith.sitofp %184 : vector<128x1xi32> to vector<128x1xf32>
    %186 = vector.broadcast %185 : vector<128x1xf32> to vector<128x128xf32>
    %187 = arith.mulf %164, %186 : vector<128x128xf32>
    %c512 = arith.constant 512 : index
    %c0_73 = arith.constant 0 : index
    %188 = vector.load %arg5[%c512, %c0_73] : memref<1152x128xf32, #tpu.memory_space<vmem>>, vector<128x128xf32>
    %189 = arith.truncf %187 : vector<128x128xf32> to vector<128x128xbf16>
    %190 = arith.truncf %188 : vector<128x128xf32> to vector<128x128xbf16>
    %cst_74 = arith.constant dense<0.000000e+00> : vector<128x128xf32>
    %191 = tpu.matmul %189, %190, %cst_74 {dimension_numbers = #tpu.dot_dimension_numbers<[1], [0], [0], [1], [0, 0, 1, 1], [], []>} : vector<128x128xbf16>, vector<128x128xbf16>, vector<128x128xf32> -> vector<128x128xf32>
    %192 = arith.addf %163, %191 : vector<128x128xf32>
    %c17 = arith.constant 17 : index
    %c0_75 = arith.constant 0 : index
    %193 = vector.load %arg15[%c17, %c0_75] : memref<160x128xf32, #tpu.memory_space<vmem>>, vector<128x128xf32>
    %c0_i32_76 = arith.constant 0 : i32
    %194 = vector.broadcast %c0_i32_76 : i32 to vector<128x1xi32>
    %195 = arith.addi %45, %194 : vector<128x1xi32>
    %c0_i32_77 = arith.constant 0 : i32
    %196 = vector.broadcast %c0_i32_77 : i32 to vector<128x1xi32>
    %197 = arith.cmpi sge, %195, %196 : vector<128x1xi32>
    %c0_i32_78 = arith.constant 0 : i32
    %198 = vector.broadcast %c0_i32_78 : i32 to vector<128x1xi32>
    %199 = arith.addi %45, %198 : vector<128x1xi32>
    %c8_i32_79 = arith.constant 8 : i32
    %200 = vector.broadcast %c8_i32_79 : i32 to vector<128x1xi32>
    %201 = arith.cmpi slt, %199, %200 : vector<128x1xi32>
    %202 = arith.andi %197, %201 : vector<128x1xi1>
    %c1_i32_80 = arith.constant 1 : i32
    %203 = vector.broadcast %c1_i32_80 : i32 to vector<128x1xi32>
    %204 = arith.addi %46, %203 : vector<128x1xi32>
    %c0_i32_81 = arith.constant 0 : i32
    %205 = vector.broadcast %c0_i32_81 : i32 to vector<128x1xi32>
    %206 = arith.cmpi sge, %204, %205 : vector<128x1xi32>
    %207 = arith.andi %202, %206 : vector<128x1xi1>
    %c1_i32_82 = arith.constant 1 : i32
    %208 = vector.broadcast %c1_i32_82 : i32 to vector<128x1xi32>
    %209 = arith.addi %46, %208 : vector<128x1xi32>
    %c8_i32_83 = arith.constant 8 : i32
    %210 = vector.broadcast %c8_i32_83 : i32 to vector<128x1xi32>
    %211 = arith.cmpi slt, %209, %210 : vector<128x1xi32>
    %212 = arith.andi %207, %211 : vector<128x1xi1>
    %213 = arith.extui %212 : vector<128x1xi1> to vector<128x1xi32>
    %214 = arith.sitofp %213 : vector<128x1xi32> to vector<128x1xf32>
    %215 = vector.broadcast %214 : vector<128x1xf32> to vector<128x128xf32>
    %216 = arith.mulf %193, %215 : vector<128x128xf32>
    %c640 = arith.constant 640 : index
    %c0_84 = arith.constant 0 : index
    %217 = vector.load %arg5[%c640, %c0_84] : memref<1152x128xf32, #tpu.memory_space<vmem>>, vector<128x128xf32>
    %218 = arith.truncf %216 : vector<128x128xf32> to vector<128x128xbf16>
    %219 = arith.truncf %217 : vector<128x128xf32> to vector<128x128xbf16>
    %cst_85 = arith.constant dense<0.000000e+00> : vector<128x128xf32>
    %220 = tpu.matmul %218, %219, %cst_85 {dimension_numbers = #tpu.dot_dimension_numbers<[1], [0], [0], [1], [0, 0, 1, 1], [], []>} : vector<128x128xbf16>, vector<128x128xbf16>, vector<128x128xf32> -> vector<128x128xf32>
    %221 = arith.addf %192, %220 : vector<128x128xf32>
    %c23 = arith.constant 23 : index
    %c0_86 = arith.constant 0 : index
    %222 = vector.load %arg15[%c23, %c0_86] : memref<160x128xf32, #tpu.memory_space<vmem>>, vector<128x128xf32>
    %c1_i32_87 = arith.constant 1 : i32
    %223 = vector.broadcast %c1_i32_87 : i32 to vector<128x1xi32>
    %224 = arith.addi %45, %223 : vector<128x1xi32>
    %c0_i32_88 = arith.constant 0 : i32
    %225 = vector.broadcast %c0_i32_88 : i32 to vector<128x1xi32>
    %226 = arith.cmpi sge, %224, %225 : vector<128x1xi32>
    %c1_i32_89 = arith.constant 1 : i32
    %227 = vector.broadcast %c1_i32_89 : i32 to vector<128x1xi32>
    %228 = arith.addi %45, %227 : vector<128x1xi32>
    %c8_i32_90 = arith.constant 8 : i32
    %229 = vector.broadcast %c8_i32_90 : i32 to vector<128x1xi32>
    %230 = arith.cmpi slt, %228, %229 : vector<128x1xi32>
    %231 = arith.andi %226, %230 : vector<128x1xi1>
    %c-1_i32_91 = arith.constant -1 : i32
    %232 = vector.broadcast %c-1_i32_91 : i32 to vector<128x1xi32>
    %233 = arith.addi %46, %232 : vector<128x1xi32>
    %c0_i32_92 = arith.constant 0 : i32
    %234 = vector.broadcast %c0_i32_92 : i32 to vector<128x1xi32>
    %235 = arith.cmpi sge, %233, %234 : vector<128x1xi32>
    %236 = arith.andi %231, %235 : vector<128x1xi1>
    %c-1_i32_93 = arith.constant -1 : i32
    %237 = vector.broadcast %c-1_i32_93 : i32 to vector<128x1xi32>
    %238 = arith.addi %46, %237 : vector<128x1xi32>
    %c8_i32_94 = arith.constant 8 : i32
    %239 = vector.broadcast %c8_i32_94 : i32 to vector<128x1xi32>
    %240 = arith.cmpi slt, %238, %239 : vector<128x1xi32>
    %241 = arith.andi %236, %240 : vector<128x1xi1>
    %242 = arith.extui %241 : vector<128x1xi1> to vector<128x1xi32>
    %243 = arith.sitofp %242 : vector<128x1xi32> to vector<128x1xf32>
    %244 = vector.broadcast %243 : vector<128x1xf32> to vector<128x128xf32>
    %245 = arith.mulf %222, %244 : vector<128x128xf32>
    %c768 = arith.constant 768 : index
    %c0_95 = arith.constant 0 : index
    %246 = vector.load %arg5[%c768, %c0_95] : memref<1152x128xf32, #tpu.memory_space<vmem>>, vector<128x128xf32>
    %247 = arith.truncf %245 : vector<128x128xf32> to vector<128x128xbf16>
    %248 = arith.truncf %246 : vector<128x128xf32> to vector<128x128xbf16>
    %cst_96 = arith.constant dense<0.000000e+00> : vector<128x128xf32>
    %249 = tpu.matmul %247, %248, %cst_96 {dimension_numbers = #tpu.dot_dimension_numbers<[1], [0], [0], [1], [0, 0, 1, 1], [], []>} : vector<128x128xbf16>, vector<128x128xbf16>, vector<128x128xf32> -> vector<128x128xf32>
    %250 = arith.addf %221, %249 : vector<128x128xf32>
    %c24 = arith.constant 24 : index
    %c0_97 = arith.constant 0 : index
    %251 = vector.load %arg15[%c24, %c0_97] : memref<160x128xf32, #tpu.memory_space<vmem>>, vector<128x128xf32>
    %c1_i32_98 = arith.constant 1 : i32
    %252 = vector.broadcast %c1_i32_98 : i32 to vector<128x1xi32>
    %253 = arith.addi %45, %252 : vector<128x1xi32>
    %c0_i32_99 = arith.constant 0 : i32
    %254 = vector.broadcast %c0_i32_99 : i32 to vector<128x1xi32>
    %255 = arith.cmpi sge, %253, %254 : vector<128x1xi32>
    %c1_i32_100 = arith.constant 1 : i32
    %256 = vector.broadcast %c1_i32_100 : i32 to vector<128x1xi32>
    %257 = arith.addi %45, %256 : vector<128x1xi32>
    %c8_i32_101 = arith.constant 8 : i32
    %258 = vector.broadcast %c8_i32_101 : i32 to vector<128x1xi32>
    %259 = arith.cmpi slt, %257, %258 : vector<128x1xi32>
    %260 = arith.andi %255, %259 : vector<128x1xi1>
    %c0_i32_102 = arith.constant 0 : i32
    %261 = vector.broadcast %c0_i32_102 : i32 to vector<128x1xi32>
    %262 = arith.addi %46, %261 : vector<128x1xi32>
    %c0_i32_103 = arith.constant 0 : i32
    %263 = vector.broadcast %c0_i32_103 : i32 to vector<128x1xi32>
    %264 = arith.cmpi sge, %262, %263 : vector<128x1xi32>
    %265 = arith.andi %260, %264 : vector<128x1xi1>
    %c0_i32_104 = arith.constant 0 : i32
    %266 = vector.broadcast %c0_i32_104 : i32 to vector<128x1xi32>
    %267 = arith.addi %46, %266 : vector<128x1xi32>
    %c8_i32_105 = arith.constant 8 : i32
    %268 = vector.broadcast %c8_i32_105 : i32 to vector<128x1xi32>
    %269 = arith.cmpi slt, %267, %268 : vector<128x1xi32>
    %270 = arith.andi %265, %269 : vector<128x1xi1>
    %271 = arith.extui %270 : vector<128x1xi1> to vector<128x1xi32>
    %272 = arith.sitofp %271 : vector<128x1xi32> to vector<128x1xf32>
    %273 = vector.broadcast %272 : vector<128x1xf32> to vector<128x128xf32>
    %274 = arith.mulf %251, %273 : vector<128x128xf32>
    %c896 = arith.constant 896 : index
    %c0_106 = arith.constant 0 : index
    %275 = vector.load %arg5[%c896, %c0_106] : memref<1152x128xf32, #tpu.memory_space<vmem>>, vector<128x128xf32>
    %276 = arith.truncf %274 : vector<128x128xf32> to vector<128x128xbf16>
    %277 = arith.truncf %275 : vector<128x128xf32> to vector<128x128xbf16>
    %cst_107 = arith.constant dense<0.000000e+00> : vector<128x128xf32>
    %278 = tpu.matmul %276, %277, %cst_107 {dimension_numbers = #tpu.dot_dimension_numbers<[1], [0], [0], [1], [0, 0, 1, 1], [], []>} : vector<128x128xbf16>, vector<128x128xbf16>, vector<128x128xf32> -> vector<128x128xf32>
    %279 = arith.addf %250, %278 : vector<128x128xf32>
    %c25 = arith.constant 25 : index
    %c0_108 = arith.constant 0 : index
    %280 = vector.load %arg15[%c25, %c0_108] : memref<160x128xf32, #tpu.memory_space<vmem>>, vector<128x128xf32>
    %c1_i32_109 = arith.constant 1 : i32
    %281 = vector.broadcast %c1_i32_109 : i32 to vector<128x1xi32>
    %282 = arith.addi %45, %281 : vector<128x1xi32>
    %c0_i32_110 = arith.constant 0 : i32
    %283 = vector.broadcast %c0_i32_110 : i32 to vector<128x1xi32>
    %284 = arith.cmpi sge, %282, %283 : vector<128x1xi32>
    %c1_i32_111 = arith.constant 1 : i32
    %285 = vector.broadcast %c1_i32_111 : i32 to vector<128x1xi32>
    %286 = arith.addi %45, %285 : vector<128x1xi32>
    %c8_i32_112 = arith.constant 8 : i32
    %287 = vector.broadcast %c8_i32_112 : i32 to vector<128x1xi32>
    %288 = arith.cmpi slt, %286, %287 : vector<128x1xi32>
    %289 = arith.andi %284, %288 : vector<128x1xi1>
    %c1_i32_113 = arith.constant 1 : i32
    %290 = vector.broadcast %c1_i32_113 : i32 to vector<128x1xi32>
    %291 = arith.addi %46, %290 : vector<128x1xi32>
    %c0_i32_114 = arith.constant 0 : i32
    %292 = vector.broadcast %c0_i32_114 : i32 to vector<128x1xi32>
    %293 = arith.cmpi sge, %291, %292 : vector<128x1xi32>
    %294 = arith.andi %289, %293 : vector<128x1xi1>
    %c1_i32_115 = arith.constant 1 : i32
    %295 = vector.broadcast %c1_i32_115 : i32 to vector<128x1xi32>
    %296 = arith.addi %46, %295 : vector<128x1xi32>
    %c8_i32_116 = arith.constant 8 : i32
    %297 = vector.broadcast %c8_i32_116 : i32 to vector<128x1xi32>
    %298 = arith.cmpi slt, %296, %297 : vector<128x1xi32>
    %299 = arith.andi %294, %298 : vector<128x1xi1>
    %300 = arith.extui %299 : vector<128x1xi1> to vector<128x1xi32>
    %301 = arith.sitofp %300 : vector<128x1xi32> to vector<128x1xf32>
    %302 = vector.broadcast %301 : vector<128x1xf32> to vector<128x128xf32>
    %303 = arith.mulf %280, %302 : vector<128x128xf32>
    %c1024 = arith.constant 1024 : index
    %c0_117 = arith.constant 0 : index
    %304 = vector.load %arg5[%c1024, %c0_117] : memref<1152x128xf32, #tpu.memory_space<vmem>>, vector<128x128xf32>
    %305 = arith.truncf %303 : vector<128x128xf32> to vector<128x128xbf16>
    %306 = arith.truncf %304 : vector<128x128xf32> to vector<128x128xbf16>
    %cst_118 = arith.constant dense<0.000000e+00> : vector<128x128xf32>
    %307 = tpu.matmul %305, %306, %cst_118 {dimension_numbers = #tpu.dot_dimension_numbers<[1], [0], [0], [1], [0, 0, 1, 1], [], []>} : vector<128x128xbf16>, vector<128x128xbf16>, vector<128x128xf32> -> vector<128x128xf32>
    %308 = arith.addf %279, %307 : vector<128x128xf32>
    %c0_119 = arith.constant 0 : index
    %c0_120 = arith.constant 0 : index
    %309 = vector.load %arg6[%c0_119, %c0_120] : memref<1x128xf32, #tpu.memory_space<vmem>>, vector<1x128xf32>
    %c0_121 = arith.constant 0 : index
    %c0_122 = arith.constant 0 : index
    %310 = vector.load %arg7[%c0_121, %c0_122] : memref<1x128xf32, #tpu.memory_space<vmem>>, vector<1x128xf32>
    %311 = vector.broadcast %4 : vector<128x1xf32> to vector<128x128xf32>
    %312 = arith.mulf %308, %311 : vector<128x128xf32>
    %cst_123 = arith.constant dense<0.000000e+00> : vector<128xf32>
    %313 = vector.multi_reduction <add>, %312, %cst_123 [0] : vector<128x128xf32> to vector<128xf32>
    %314 = vector.shape_cast %313 : vector<128xf32> to vector<1x128xf32>
    %cst_124 = arith.constant 7.812500e-03 : f32
    %315 = vector.broadcast %cst_124 : f32 to vector<1x128xf32>
    %316 = arith.mulf %314, %315 : vector<1x128xf32>
    %317 = vector.broadcast %316 : vector<1x128xf32> to vector<128x128xf32>
    %318 = arith.subf %308, %317 : vector<128x128xf32>
    %319 = vector.broadcast %4 : vector<128x1xf32> to vector<128x128xf32>
    %320 = arith.mulf %318, %319 : vector<128x128xf32>
    %321 = arith.mulf %320, %320 : vector<128x128xf32>
    %cst_125 = arith.constant dense<0.000000e+00> : vector<128xf32>
    %322 = vector.multi_reduction <add>, %321, %cst_125 [0] : vector<128x128xf32> to vector<128xf32>
    %323 = vector.shape_cast %322 : vector<128xf32> to vector<1x128xf32>
    %cst_126 = arith.constant 7.812500e-03 : f32
    %324 = vector.broadcast %cst_126 : f32 to vector<1x128xf32>
    %325 = arith.mulf %323, %324 : vector<1x128xf32>
    %326 = vector.broadcast %316 : vector<1x128xf32> to vector<128x128xf32>
    %327 = arith.subf %308, %326 : vector<128x128xf32>
    %cst_127 = arith.constant 9.99999974E-6 : f32
    %328 = vector.broadcast %cst_127 : f32 to vector<1x128xf32>
    %329 = arith.addf %325, %328 : vector<1x128xf32>
    %330 = math.rsqrt %329 : vector<1x128xf32>
    %331 = vector.broadcast %330 : vector<1x128xf32> to vector<128x128xf32>
    %332 = arith.mulf %327, %331 : vector<128x128xf32>
    %333 = vector.broadcast %309 : vector<1x128xf32> to vector<128x128xf32>
    %334 = arith.mulf %332, %333 : vector<128x128xf32>
    %335 = vector.broadcast %310 : vector<1x128xf32> to vector<128x128xf32>
    %336 = arith.addf %334, %335 : vector<128x128xf32>
    %c0_128 = arith.constant 0 : index
    %c0_129 = arith.constant 0 : index
    %337 = vector.load %arg10[%c0_128, %c0_129] : memref<128x16xf32, #tpu.memory_space<vmem>>, vector<128x16xf32>
    %c0_130 = arith.constant 0 : index
    %c0_131 = arith.constant 0 : index
    %338 = vector.load %arg11[%c0_130, %c0_131] : memref<16x128xf32, #tpu.memory_space<vmem>>, vector<16x128xf32>
    %339 = arith.truncf %337 : vector<128x16xf32> to vector<128x16xbf16>
    %340 = arith.truncf %338 : vector<16x128xf32> to vector<16x128xbf16>
    %cst_132 = arith.constant dense<0.000000e+00> : vector<128x128xf32>
    %341 = tpu.matmul %339, %340, %cst_132 {dimension_numbers = #tpu.dot_dimension_numbers<[1], [0], [0], [1], [0, 0, 1, 1], [], []>} : vector<128x16xbf16>, vector<16x128xbf16>, vector<128x128xf32> -> vector<128x128xf32>
    %c0_133 = arith.constant 0 : index
    %c0_134 = arith.constant 0 : index
    %342 = vector.load %arg12[%c0_133, %c0_134] : memref<1x128xf32, #tpu.memory_space<vmem>>, vector<1x128xf32>
    %c0_135 = arith.constant 0 : index
    %c0_136 = arith.constant 0 : index
    %343 = vector.load %arg13[%c0_135, %c0_136] : memref<1x128xf32, #tpu.memory_space<vmem>>, vector<1x128xf32>
    %344 = vector.broadcast %4 : vector<128x1xf32> to vector<128x128xf32>
    %345 = arith.mulf %341, %344 : vector<128x128xf32>
    %cst_137 = arith.constant dense<0.000000e+00> : vector<128xf32>
    %346 = vector.multi_reduction <add>, %345, %cst_137 [0] : vector<128x128xf32> to vector<128xf32>
    %347 = vector.shape_cast %346 : vector<128xf32> to vector<1x128xf32>
    %cst_138 = arith.constant 7.812500e-03 : f32
    %348 = vector.broadcast %cst_138 : f32 to vector<1x128xf32>
    %349 = arith.mulf %347, %348 : vector<1x128xf32>
    %350 = vector.broadcast %349 : vector<1x128xf32> to vector<128x128xf32>
    %351 = arith.subf %341, %350 : vector<128x128xf32>
    %352 = vector.broadcast %4 : vector<128x1xf32> to vector<128x128xf32>
    %353 = arith.mulf %351, %352 : vector<128x128xf32>
    %354 = arith.mulf %353, %353 : vector<128x128xf32>
    %cst_139 = arith.constant dense<0.000000e+00> : vector<128xf32>
    %355 = vector.multi_reduction <add>, %354, %cst_139 [0] : vector<128x128xf32> to vector<128xf32>
    %356 = vector.shape_cast %355 : vector<128xf32> to vector<1x128xf32>
    %cst_140 = arith.constant 7.812500e-03 : f32
    %357 = vector.broadcast %cst_140 : f32 to vector<1x128xf32>
    %358 = arith.mulf %356, %357 : vector<1x128xf32>
    %359 = vector.broadcast %349 : vector<1x128xf32> to vector<128x128xf32>
    %360 = arith.subf %341, %359 : vector<128x128xf32>
    %cst_141 = arith.constant 9.99999974E-6 : f32
    %361 = vector.broadcast %cst_141 : f32 to vector<1x128xf32>
    %362 = arith.addf %358, %361 : vector<1x128xf32>
    %363 = math.rsqrt %362 : vector<1x128xf32>
    %364 = vector.broadcast %363 : vector<1x128xf32> to vector<128x128xf32>
    %365 = arith.mulf %360, %364 : vector<128x128xf32>
    %366 = vector.broadcast %342 : vector<1x128xf32> to vector<128x128xf32>
    %367 = arith.mulf %365, %366 : vector<128x128xf32>
    %368 = vector.broadcast %343 : vector<1x128xf32> to vector<128x128xf32>
    %369 = arith.addf %367, %368 : vector<128x128xf32>
    %370 = arith.addf %336, %369 : vector<128x128xf32>
    %cst_142 = arith.constant 0.000000e+00 : f32
    %371 = vector.broadcast %cst_142 : f32 to vector<128x128xf32>
    %372 = arith.maximumf %370, %371 : vector<128x128xf32>
    %c0_143 = arith.constant 0 : index
    %c0_144 = arith.constant 0 : index
    %373 = vector.load %arg14[%c0_143, %c0_144] : memref<128x128xf32, #tpu.memory_space<vmem>>, vector<128x128xf32>
    tpu.vector_store %arg14[%c0_143, %c0_144], %372 {strides = array<i32>} : memref<128x128xf32, #tpu.memory_space<vmem>>, vector<128x128xf32>,
    return
  }
  func.func @transform_0(%arg0: i32) -> (i32, i32) {
    %c0_i32 = arith.constant 0 : i32
    %c0_i32_0 = arith.constant 0 : i32
    %c0_i32_1 = arith.constant 0 : i32
    return %c0_i32, %c0_i32_0 : i32, i32
  }
  func.func @transform_1(%arg0: i32) -> (i32, i32) {
    %c0_i32 = arith.constant 0 : i32
    %c0_i32_0 = arith.constant 0 : i32
    %c0_i32_1 = arith.constant 0 : i32
    return %c0_i32, %c0_i32_0 : i32, i32
  }
  func.func @transform_2(%arg0: i32) -> (i32, i32) {
    %c0_i32 = arith.constant 0 : i32
    %c0_i32_0 = arith.constant 0 : i32
    %c0_i32_1 = arith.constant 0 : i32
    return %c0_i32, %c0_i32_0 : i32, i32
  }
  func.func @transform_3(%arg0: i32) -> (i32, i32) {
    %c0_i32 = arith.constant 0 : i32
    %c0_i32_0 = arith.constant 0 : i32
    %c0_i32_1 = arith.constant 0 : i32
    return %c0_i32, %c0_i32_0 : i32, i32
  }
  func.func @transform_4(%arg0: i32) -> (i32, i32) {
    %c0_i32 = arith.constant 0 : i32
    %c0_i32_0 = arith.constant 0 : i32
    %c0_i32_1 = arith.constant 0 : i32
    return %c0_i32, %c0_i32_0 : i32, i32
  }
  func.func @transform_5(%arg0: i32) -> (i32, i32) {
    %c0_i32 = arith.constant 0 : i32
    %c0_i32_0 = arith.constant 0 : i32
    %c0_i32_1 = arith.constant 0 : i32
    return %c0_i32, %c0_i32_0 : i32, i32
  }
  func.func @transform_6(%arg0: i32) -> (i32, i32) {
    %c0_i32 = arith.constant 0 : i32
    %c0_i32_0 = arith.constant 0 : i32
    %c0_i32_1 = arith.constant 0 : i32
    return %c0_i32, %c0_i32_0 : i32, i32
  }
  func.func @transform_7(%arg0: i32) -> (i32, i32) {
    %c0_i32 = arith.constant 0 : i32
    %c0_i32_0 = arith.constant 0 : i32
    %c0_i32_1 = arith.constant 0 : i32
    return %c0_i32, %c0_i32_0 : i32, i32
  }
  func.func @transform_8(%arg0: i32) -> (i32, i32) {
    %c0_i32 = arith.constant 0 : i32
    %c0_i32_0 = arith.constant 0 : i32
    %c0_i32_1 = arith.constant 0 : i32
    return %c0_i32, %c0_i32_0 : i32, i32
  }
  func.func @transform_9(%arg0: i32) -> (i32, i32) {
    %c0_i32 = arith.constant 0 : i32
    %c0_i32_0 = arith.constant 0 : i32
    %c0_i32_1 = arith.constant 0 : i32
    return %c0_i32, %c0_i32_0 : i32, i32
  }
  func.func @transform_10(%arg0: i32) -> (i32, i32) {
    %c0_i32 = arith.constant 0 : i32
    %c0_i32_0 = arith.constant 0 : i32
    %c0_i32_1 = arith.constant 0 : i32
    return %c0_i32, %c0_i32_0 : i32, i32
  }
  func.func @transform_11(%arg0: i32) -> (i32, i32) {
    %c0_i32 = arith.constant 0 : i32
    %c0_i32_0 = arith.constant 0 : i32
    %c0_i32_1 = arith.constant 0 : i32
    return %c0_i32, %c0_i32_0 : i32, i32
  }
  func.func @transform_12(%arg0: i32) -> (i32, i32) {
    %c0_i32 = arith.constant 0 : i32
    %c0_i32_0 = arith.constant 0 : i32
    %c0_i32_1 = arith.constant 0 : i32
    return %c0_i32, %c0_i32_0 : i32, i32
  }
  func.func @transform_13(%arg0: i32) -> (i32, i32) {
    %c0_i32 = arith.constant 0 : i32
    %c0_i32_0 = arith.constant 0 : i32
    %c0_i32_1 = arith.constant 0 : i32
    return %c0_i32, %c0_i32_0 : i32, i32
  }
}

</mosaic_0001>

<llo_original>
// kernel: resblock_forward.1
$region0: #{resblock_forward.1}
  #allocation0 [shape = 'u32[]', space=smem, size = 0x4, offset = 0x4, fixed_abs, tag = 'smem constant byte address 0x4 - core index']
  #allocation1 [shape = 'u32[144,128]{1,0:T(1,128)}', space=vmem, size = 0x12000, scoped, tag = 'internal scratch']
  #allocation2 [shape = 'f32[160,128]{1,0:T(8,128)}', space=vmem, size = 0x14000, scoped, tag = 'scratch operand']
  %s0 = inlined_call_operand.vmem [shape: f32[128,48], index: 0, kind: input, shape index: {}]
  %s1 = inlined_call_operand.vmem [shape: f32[48,128], index: 1, kind: input, shape index: {}]
  %s2 = inlined_call_operand.vmem [shape: f32[1,128], index: 2, kind: input, shape index: {}]
  %s3 = inlined_call_operand.vmem [shape: f32[1,128], index: 3, kind: input, shape index: {}]
  %s4 = inlined_call_operand.vmem [shape: f32[1152,128], index: 4, kind: input, shape index: {}]
  %s5 = inlined_call_operand.vmem [shape: f32[1,128], index: 5, kind: input, shape index: {}]
  %s6 = inlined_call_operand.vmem [shape: f32[1,128], index: 6, kind: input, shape index: {}]
  %s7 = inlined_call_operand.vmem [shape: s32[128,1], index: 7, kind: input, shape index: {}]
  %s8 = inlined_call_operand.vmem [shape: s32[128,1], index: 8, kind: input, shape index: {}]
  %s9 = inlined_call_operand.vmem [shape: f32[128,16], index: 9, kind: input, shape index: {}]
  %s10 = inlined_call_operand.vmem [shape: f32[16,128], index: 10, kind: input, shape index: {}]
  %s11 = inlined_call_operand.vmem [shape: f32[1,128], index: 11, kind: input, shape index: {}]
  %s12 = inlined_call_operand.vmem [shape: f32[1,128], index: 12, kind: input, shape index: {}]
  %s13 = inlined_call_operand.vmem [shape: f32[128,128], index: 13, kind: output, shape index: {}]
  %s14 = sld [smem:[#allocation0]]
  $region62: #{resblock_forward.1} parent=0
    _
  %s16 = ssub.s32 1, %s14
  %s17 = scalar_select 0, %s16, %s14
  // Predicated region
  $region2: #{resblock_forward.1} parent=0 // pred_check
    _
  $region3: #{resblock_forward.1} parent=0 // pred_check_branch
    %19 = sbr.rel (0) target = $region5
  $region4: #{resblock_forward.1} parent=0 // pred_region
    _
  $region5: #{resblock_forward.1} parent=0 // pred_fallthru
    _
  // Predicated region
  $region6: #{resblock_forward.1} parent=0 // pred_check
    _
  $region7: #{resblock_forward.1} parent=0 // pred_check_branch
    %21 = sbr.rel (0) target = $region9
  $region8: #{resblock_forward.1} parent=0 // pred_region
    _
  $region9: #{resblock_forward.1} parent=0 // pred_fallthru
    _
  // Predicated region
  $region10: #{resblock_forward.1} parent=0 // pred_check
    _
  $region11: #{resblock_forward.1} parent=0 // pred_check_branch
    %23 = sbr.rel (0) target = $region13
  $region12: #{resblock_forward.1} parent=0 // pred_region
    _
  $region13: #{resblock_forward.1} parent=0 // pred_fallthru
    _
  // Predicated region
  $region14: #{resblock_forward.1} parent=0 // pred_check
    _
  $region15: #{resblock_forward.1} parent=0 // pred_check_branch
    %25 = sbr.rel (0) target = $region17
  $region16: #{resblock_forward.1} parent=0 // pred_region
    _
  $region17: #{resblock_forward.1} parent=0 // pred_fallthru
    _
  // Predicated region
  $region18: #{resblock_forward.1} parent=0 // pred_check
    _
  $region19: #{resblock_forward.1} parent=0 // pred_check_branch
    %27 = sbr.rel (0) target = $region21
  $region20: #{resblock_forward.1} parent=0 // pred_region
    _
  $region21: #{resblock_forward.1} parent=0 // pred_fallthru
    _
  // Predicated region
  $region22: #{resblock_forward.1} parent=0 // pred_check
    _
  $region23: #{resblock_forward.1} parent=0 // pred_check_branch
    %29 = sbr.rel (0) target = $region25
  $region24: #{resblock_forward.1} parent=0 // pred_region
    _
  $region25: #{resblock_forward.1} parent=0 // pred_fallthru
    _
  // Predicated region
  $region26: #{resblock_forward.1} parent=0 // pred_check
    _
  $region27: #{resblock_forward.1} parent=0 // pred_check_branch
    %31 = sbr.rel (0) target = $region29
  $region28: #{resblock_forward.1} parent=0 // pred_region
    _
  $region29: #{resblock_forward.1} parent=0 // pred_fallthru
    _
  // Predicated region
  $region30: #{resblock_forward.1} parent=0 // pred_check
    _
  $region31: #{resblock_forward.1} parent=0 // pred_check_branch
    %33 = sbr.rel (0) target = $region33
  $region32: #{resblock_forward.1} parent=0 // pred_region
    _
  $region33: #{resblock_forward.1} parent=0 // pred_fallthru
    _
  // Predicated region
  $region34: #{resblock_forward.1} parent=0 // pred_check
    _
  $region35: #{resblock_forward.1} parent=0 // pred_check_branch
    %35 = sbr.rel (0) target = $region37
  $region36: #{resblock_forward.1} parent=0 // pred_region
    _
  $region37: #{resblock_forward.1} parent=0 // pred_fallthru
    _
  // Predicated region
  $region38: #{resblock_forward.1} parent=0 // pred_check
    _
  $region39: #{resblock_forward.1} parent=0 // pred_check_branch
    %37 = sbr.rel (0) target = $region41
  $region40: #{resblock_forward.1} parent=0 // pred_region
    _
  $region41: #{resblock_forward.1} parent=0 // pred_fallthru
    _
  // Predicated region
  $region42: #{resblock_forward.1} parent=0 // pred_check
    _
  $region43: #{resblock_forward.1} parent=0 // pred_check_branch
    %39 = sbr.rel (0) target = $region45
  $region44: #{resblock_forward.1} parent=0 // pred_region
    _
  $region45: #{resblock_forward.1} parent=0 // pred_fallthru
    _
  // Predicated region
  $region46: #{resblock_forward.1} parent=0 // pred_check
    _
  $region47: #{resblock_forward.1} parent=0 // pred_check_branch
    %41 = sbr.rel (0) target = $region49
  $region48: #{resblock_forward.1} parent=0 // pred_region
    _
  $region49: #{resblock_forward.1} parent=0 // pred_fallthru
    _
  // Predicated region
  $region50: #{resblock_forward.1} parent=0 // pred_check
    _
  $region51: #{resblock_forward.1} parent=0 // pred_check_branch
    %43 = sbr.rel (0) target = $region53
  $region52: #{resblock_forward.1} parent=0 // pred_region
    _
  $region53: #{resblock_forward.1} parent=0 // pred_fallthru
    _
  %v45 = vlaneseq
  %v46 = vshrl.u32 %v45, 7
  %v47 = vadd.s32 %v46, 8
  %v48 = vadd.s32 %v46, 16
  %v49 = vadd.s32 %v46, 24
  %v50 = vadd.s32 %v46, 32
  %v51 = vadd.s32 %v46, 40
  %v52 = vadd.s32 %v46, 48
  %v53 = vadd.s32 %v46, 56
  %v54 = vadd.s32 %v46, 64
  %v55 = vadd.s32 %v46, 72
  %v56 = vadd.s32 %v46, 80
  %v57 = vadd.s32 %v46, 88
  %v58 = vadd.s32 %v46, 96
  %v59 = vadd.s32 %v46, 104
  %v60 = vadd.s32 %v46, 112
  %v61 = vadd.s32 %v46, 120
  %vm62 = vcmp.lt.s32.totalorder %v46, 128
  %vm63 = vcmp.lt.s32.totalorder %v47, 128
  %vm64 = vcmp.lt.s32.totalorder %v48, 128
  %vm65 = vcmp.lt.s32.totalorder %v49, 128
  %vm66 = vcmp.lt.s32.totalorder %v50, 128
  %vm67 = vcmp.lt.s32.totalorder %v51, 128
  %vm68 = vcmp.lt.s32.totalorder %v52, 128
  %vm69 = vcmp.lt.s32.totalorder %v53, 128
  %vm70 = vcmp.lt.s32.totalorder %v54, 128
  %vm71 = vcmp.lt.s32.totalorder %v55, 128
  %vm72 = vcmp.lt.s32.totalorder %v56, 128
  %vm73 = vcmp.lt.s32.totalorder %v57, 128
  %vm74 = vcmp.lt.s32.totalorder %v58, 128
  %vm75 = vcmp.lt.s32.totalorder %v59, 128
  %vm76 = vcmp.lt.s32.totalorder %v60, 128
  %vm77 = vcmp.lt.s32.totalorder %v61, 128
  %v78 = vsel %vm62, 1, 0
  %v79 = vsel %vm63, 1, 0
  %v80 = vsel %vm64, 1, 0
  %v81 = vsel %vm65, 1, 0
  %v82 = vsel %vm66, 1, 0
  %v83 = vsel %vm67, 1, 0
  %v84 = vsel %vm68, 1, 0
  %v85 = vsel %vm69, 1, 0
  %v86 = vsel %vm70, 1, 0
  %v87 = vsel %vm71, 1, 0
  %v88 = vsel %vm72, 1, 0
  %v89 = vsel %vm73, 1, 0
  %v90 = vsel %vm74, 1, 0
  %v91 = vsel %vm75, 1, 0
  %v92 = vsel %vm76, 1, 0
  %v93 = vsel %vm77, 1, 0
  %v94 = vcvt.s32.f32 %v78
  %v95 = vcvt.s32.f32 %v79
  %v96 = vcvt.s32.f32 %v80
  %v97 = vcvt.s32.f32 %v81
  %v98 = vcvt.s32.f32 %v82
  %v99 = vcvt.s32.f32 %v83
  %v100 = vcvt.s32.f32 %v84
  %v101 = vcvt.s32.f32 %v85
  %v102 = vcvt.s32.f32 %v86
  %v103 = vcvt.s32.f32 %v87
  %v104 = vcvt.s32.f32 %v88
  %v105 = vcvt.s32.f32 %v89
  %v106 = vcvt.s32.f32 %v90
  %v107 = vcvt.s32.f32 %v91
  %v108 = vcvt.s32.f32 %v92
  %v109 = vcvt.s32.f32 %v93
  %v110 = vld [vmem:[%s0] sm:$0xff]
  %v111 = vld [vmem:[%s0 + $0x8] sm:$0xff]
  %v112 = vld [vmem:[%s0 + $0x10] sm:$0xff]
  %v113 = vld [vmem:[%s0 + $0x18] sm:$0xff]
  %v114 = vld [vmem:[%s0 + $0x20] sm:$0xff]
  %v115 = vld [vmem:[%s0 + $0x28] sm:$0xff]
  %v116 = vld [vmem:[%s0 + $0x30] sm:$0xff]
  %v117 = vld [vmem:[%s0 + $0x38] sm:$0xff]
  %v118 = vld [vmem:[%s0 + $0x40] sm:$0xff]
  %v119 = vld [vmem:[%s0 + $0x48] sm:$0xff]
  %v120 = vld [vmem:[%s0 + $0x50] sm:$0xff]
  %v121 = vld [vmem:[%s0 + $0x58] sm:$0xff]
  %v122 = vld [vmem:[%s0 + $0x60] sm:$0xff]
  %v123 = vld [vmem:[%s0 + $0x68] sm:$0xff]
  %v124 = vld [vmem:[%s0 + $0x70] sm:$0xff]
  %v125 = vld [vmem:[%s0 + $0x78] sm:$0xff]
  %v126 = vld [vmem:[%s1] sm:$0xff]
  %v127 = vld [vmem:[%s1 + $0x8] sm:$0xff]
  %v128 = vld [vmem:[%s1 + $0x10] sm:$0xff]
  %v129 = vld [vmem:[%s1 + $0x18] sm:$0xff]
  %v130 = vld [vmem:[%s1 + $0x20] sm:$0xff]
  %v131 = vld [vmem:[%s1 + $0x28] sm:$0xff]
  %v132 = vpack.c.bf16 %v111, %v110
  %v133 = vpack.c.bf16 %v113, %v112
  %v134 = vpack.c.bf16 %v115, %v114
  %v135 = vpack.c.bf16 %v117, %v116
  %v136 = vpack.c.bf16 %v119, %v118
  %v137 = vpack.c.bf16 %v121, %v120
  %v138 = vpack.c.bf16 %v123, %v122
  %v139 = vpack.c.bf16 %v125, %v124
  %v140 = vpack.c.bf16 %v127, %v126
  %v141 = vpack.c.bf16 %v129, %v128
  %v142 = vpack.c.bf16 %v131, %v130
  %vm143 = vcmask 392192
  %v145 = vsel %vm143, %v132, 0
  %v148 = vsel %vm143, %v133, 0
  %v151 = vsel %vm143, %v134, 0
  %v154 = vsel %vm143, %v135, 0
  %v157 = vsel %vm143, %v136, 0
  %v160 = vsel %vm143, %v137, 0
  %v163 = vsel %vm143, %v138, 0
  %v166 = vsel %vm143, %v139, 0
  %168 = vmatprep.subr.bf16.mxu0 0
  %169 = vmatpush1.bf16.msra.mxu0 %v140
  %170 = vmatprep.subr.bf16.mxu0 0
  %171 = vmatpush1.bf16.msra.mxu0 %v141
  %172 = vmatprep.subr.bf16.mxu0 0
  %173 = vmatpush1.bf16.msra.mxu0 %v142
  %174 = vmatprep.subr.bf16.mxu0 0
  %175 = vmatpush1.bf16.msra.mxu0 0
  %176 = vmatprep.subr.bf16.mxu0 0
  %177 = vmatpush1.bf16.msra.mxu0 0
  %178 = vmatprep.subr.bf16.mxu0 0
  %179 = vmatpush1.bf16.msra.mxu0 0
  %180 = vmatprep.subr.bf16.mxu0 0
  %181 = vmatpush1.bf16.msra.mxu0 0
  %182 = vmatprep.subr.bf16.mxu0 0
  %183 = vmatpush1.bf16.msra.mxu0 0
  %184 = vmatprep.subr.bf16.mxu0 0
  %185 = vmatpush1.bf16.msra.mxu0 0
  %186 = vmatprep.subr.bf16.mxu0 0
  %187 = vmatpush1.bf16.msra.mxu0 0
  %188 = vmatprep.subr.bf16.mxu0 0
  %189 = vmatpush1.bf16.msra.mxu0 0
  %190 = vmatprep.subr.bf16.mxu0 0
  %191 = vmatpush1.bf16.msra.mxu0 0
  %192 = vmatprep.subr.bf16.mxu0 0
  %193 = vmatpush1.bf16.msra.mxu0 0
  %194 = vmatprep.subr.bf16.mxu0 0
  %195 = vmatpush1.bf16.msra.mxu0 0
  %196 = vmatprep.subr.bf16.mxu0 0
  %197 = vmatpush1.bf16.msra.mxu0 0
  %198 = vmatprep.subr.bf16.mxu0 0
  %199 = vmatpush1.bf16.msra.mxu0 0
  %200 = vmatprep.mubr.bf16.mxu0 0
  %201 = vmatmul.mubr.bf16.gmra.mrb[0].mxu0 %v145
  %v202 = vpop.f32.mrb[0].mxu0
  %v203 = vadd.f32 0.0, %v202
  %v204 = vpop.f32.mrb[0].mxu0
  %v205 = vpop.f32.mrb[0].mxu0
  %v206 = vadd.f32 0.0, %v205
  %v207 = vpop.f32.mrb[0].mxu0
  %208 = vmatprep.mubr.bf16.mxu0 0
  %209 = vmatmul.mubr.bf16.gmra.mrb[0].mxu0 %v148
  %v210 = vpop.f32.mrb[0].mxu0
  %v211 = vadd.f32 0.0, %v210
  %v212 = vpop.f32.mrb[0].mxu0
  %v213 = vpop.f32.mrb[0].mxu0
  %v214 = vadd.f32 0.0, %v213
  %v215 = vpop.f32.mrb[0].mxu0
  %216 = vmatprep.mubr.bf16.mxu0 0
  %217 = vmatmul.mubr.bf16.gmra.mrb[0].mxu0 %v151
  %v218 = vpop.f32.mrb[0].mxu0
  %v219 = vadd.f32 0.0, %v218
  %v220 = vpop.f32.mrb[0].mxu0
  %v221 = vpop.f32.mrb[0].mxu0
  %v222 = vadd.f32 0.0, %v221
  %v223 = vpop.f32.mrb[0].mxu0
  %224 = vmatprep.mubr.bf16.mxu0 0
  %225 = vmatmul.mubr.bf16.gmra.mrb[0].mxu0 %v154
  %v226 = vpop.f32.mrb[0].mxu0
  %v227 = vadd.f32 0.0, %v226
  %v228 = vpop.f32.mrb[0].mxu0
  %v229 = vpop.f32.mrb[0].mxu0
  %v230 = vadd.f32 0.0, %v229
  %v231 = vpop.f32.mrb[0].mxu0
  %232 = vmatprep.mubr.bf16.mxu0 0
  %233 = vmatmul.mubr.bf16.gmra.mrb[0].mxu0 %v157
  %v234 = vpop.f32.mrb[0].mxu0
  %v235 = vadd.f32 0.0, %v234
  %v236 = vpop.f32.mrb[0].mxu0
  %v237 = vpop.f32.mrb[0].mxu0
  %v238 = vadd.f32 0.0, %v237
  %v239 = vpop.f32.mrb[0].mxu0
  %240 = vmatprep.mubr.bf16.mxu0 0
  %241 = vmatmul.mubr.bf16.gmra.mrb[0].mxu0 %v160
  %v242 = vpop.f32.mrb[0].mxu0
  %v243 = vadd.f32 0.0, %v242
  %v244 = vpop.f32.mrb[0].mxu0
  %v245 = vpop.f32.mrb[0].mxu0
  %v246 = vadd.f32 0.0, %v245
  %v247 = vpop.f32.mrb[0].mxu0
  %248 = vmatprep.mubr.bf16.mxu0 0
  %249 = vmatmul.mubr.bf16.gmra.mrb[0].mxu0 %v163
  %v250 = vpop.f32.mrb[0].mxu0
  %v251 = vadd.f32 0.0, %v250
  %v252 = vpop.f32.mrb[0].mxu0
  %v253 = vpop.f32.mrb[0].mxu0
  %v254 = vadd.f32 0.0, %v253
  %v255 = vpop.f32.mrb[0].mxu0
  %256 = vmatprep.mubr.bf16.mxu0 0
  %257 = vmatmul.mubr.bf16.gmra.mrb[0].mxu0 %v166
  %v258 = vpop.f32.mrb[0].mxu0
  %v259 = vadd.f32 0.0, %v258
  %v260 = vpop.f32.mrb[0].mxu0
  %v261 = vpop.f32.mrb[0].mxu0
  %v262 = vadd.f32 0.0, %v261
  %v263 = vpop.f32.mrb[0].mxu0
  %264 = vdwg.mxu0
  %v265 = vld [vmem:[%s2] sm:$0x1]
  %v266 = vld [vmem:[%s3] sm:$0x1]
  %v267 = vmul.f32 %v203, %v94
  %v268 = vmul.f32 %v206, %v95
  %v269 = vmul.f32 %v211, %v96
  %v270 = vmul.f32 %v214, %v97
  %v271 = vmul.f32 %v219, %v98
  %v272 = vmul.f32 %v222, %v99
  %v273 = vmul.f32 %v227, %v100
  %v274 = vmul.f32 %v230, %v101
  %v275 = vmul.f32 %v235, %v102
  %v276 = vmul.f32 %v238, %v103
  %v277 = vmul.f32 %v243, %v104
  %v278 = vmul.f32 %v246, %v105
  %v279 = vmul.f32 %v251, %v106
  %v280 = vmul.f32 %v254, %v107
  %v281 = vmul.f32 %v259, %v108
  %v282 = vmul.f32 %v262, %v109
  %v283 = vadd.f32 %v267, %v268
  %v284 = vadd.f32 %v283, %v269
  %v285 = vadd.f32 %v284, %v270
  %v286 = vadd.f32 %v285, %v271
  %v287 = vadd.f32 %v286, %v272
  %v288 = vadd.f32 %v287, %v273
  %v289 = vadd.f32 %v288, %v274
  %v290 = vadd.f32 %v289, %v275
  %v291 = vadd.f32 %v290, %v276
  %v292 = vadd.f32 %v291, %v277
  %v293 = vadd.f32 %v292, %v278
  %v294 = vadd.f32 %v293, %v279
  %v295 = vadd.f32 %v294, %v280
  %v296 = vadd.f32 %v295, %v281
  %v297 = vadd.f32 %v296, %v282
  %v298 = vrot.slane %v297, 4
  %v299 = vadd.f32 %v297, %v298
  %v300 = vrot.slane %v299, 2
  %v301 = vadd.f32 %v299, %v300
  %v302 = vrot.slane %v301, 1
  %v303 = vadd.f32 %v301, %v302
  %v304 = vmul.f32 %v303, 0.0078125
  %v305 = vsub.f32 %v203, %v304
  %v306 = vsub.f32 %v206, %v304
  %v307 = vsub.f32 %v211, %v304
  %v308 = vsub.f32 %v214, %v304
  %v309 = vsub.f32 %v219, %v304
  %v310 = vsub.f32 %v222, %v304
  %v311 = vsub.f32 %v227, %v304
  %v312 = vsub.f32 %v230, %v304
  %v313 = vsub.f32 %v235, %v304
  %v314 = vsub.f32 %v238, %v304
  %v315 = vsub.f32 %v243, %v304
  %v316 = vsub.f32 %v246, %v304
  %v317 = vsub.f32 %v251, %v304
  %v318 = vsub.f32 %v254, %v304
  %v319 = vsub.f32 %v259, %v304
  %v320 = vsub.f32 %v262, %v304
  %v321 = vmul.f32 %v305, %v94
  %v322 = vmul.f32 %v306, %v95
  %v323 = vmul.f32 %v307, %v96
  %v324 = vmul.f32 %v308, %v97
  %v325 = vmul.f32 %v309, %v98
  %v326 = vmul.f32 %v310, %v99
  %v327 = vmul.f32 %v311, %v100
  %v328 = vmul.f32 %v312, %v101
  %v329 = vmul.f32 %v313, %v102
  %v330 = vmul.f32 %v314, %v103
  %v331 = vmul.f32 %v315, %v104
  %v332 = vmul.f32 %v316, %v105
  %v333 = vmul.f32 %v317, %v106
  %v334 = vmul.f32 %v318, %v107
  %v335 = vmul.f32 %v319, %v108
  %v336 = vmul.f32 %v320, %v109
  %v337 = vmul.f32 %v321, %v321
  %v338 = vmul.f32 %v322, %v322
  %v339 = vmul.f32 %v323, %v323
  %v340 = vmul.f32 %v324, %v324
  %v341 = vmul.f32 %v325, %v325
  %v342 = vmul.f32 %v326, %v326
  %v343 = vmul.f32 %v327, %v327
  %v344 = vmul.f32 %v328, %v328
  %v345 = vmul.f32 %v329, %v329
  %v346 = vmul.f32 %v330, %v330
  %v347 = vmul.f32 %v331, %v331
  %v348 = vmul.f32 %v332, %v332
  %v349 = vmul.f32 %v333, %v333
  %v350 = vmul.f32 %v334, %v334
  %v351 = vmul.f32 %v335, %v335
  %v352 = vmul.f32 %v336, %v336
  %v353 = vadd.f32 %v337, %v338
  %v354 = vadd.f32 %v353, %v339
  %v355 = vadd.f32 %v354, %v340
  %v356 = vadd.f32 %v355, %v341
  %v357 = vadd.f32 %v356, %v342
  %v358 = vadd.f32 %v357, %v343
  %v359 = vadd.f32 %v358, %v344
  %v360 = vadd.f32 %v359, %v345
  %v361 = vadd.f32 %v360, %v346
  %v362 = vadd.f32 %v361, %v347
  %v363 = vadd.f32 %v362, %v348
  %v364 = vadd.f32 %v363, %v349
  %v365 = vadd.f32 %v364, %v350
  %v366 = vadd.f32 %v365, %v351
  %v367 = vadd.f32 %v366, %v352
  %v368 = vrot.slane %v367, 4
  %v369 = vadd.f32 %v367, %v368
  %v370 = vrot.slane %v369, 2
  %v371 = vadd.f32 %v369, %v370
  %v372 = vrot.slane %v371, 1
  %v373 = vadd.f32 %v371, %v372
  %v374 = vmul.f32 %v373, 0.0078125
  %v375 = vadd.f32 %v374, 1e-05
  %v376 = vrsqrt.pop %v375
  %v377 = vmul.f32 %v305, %v376
  %v378 = vmul.f32 %v306, %v376
  %v379 = vmul.f32 %v307, %v376
  %v380 = vmul.f32 %v308, %v376
  %v381 = vmul.f32 %v309, %v376
  %v382 = vmul.f32 %v310, %v376
  %v383 = vmul.f32 %v311, %v376
  %v384 = vmul.f32 %v312, %v376
  %v385 = vmul.f32 %v313, %v376
  %v386 = vmul.f32 %v314, %v376
  %v387 = vmul.f32 %v315, %v376
  %v388 = vmul.f32 %v316, %v376
  %v389 = vmul.f32 %v317, %v376
  %v390 = vmul.f32 %v318, %v376
  %v391 = vmul.f32 %v319, %v376
  %v392 = vmul.f32 %v320, %v376
  %v394 = vlaneseq
  %v395 = vshrl.u32 %v394, 7
  %v396 = vsub.s32 0, %v395
  %v397 = vrot.slane %v265, %v396
  %v399 = vmul.f32 %v377, %v397
  %v400 = vmul.f32 %v378, %v397
  %v401 = vmul.f32 %v379, %v397
  %v402 = vmul.f32 %v380, %v397
  %v403 = vmul.f32 %v381, %v397
  %v404 = vmul.f32 %v382, %v397
  %v405 = vmul.f32 %v383, %v397
  %v406 = vmul.f32 %v384, %v397
  %v407 = vmul.f32 %v385, %v397
  %v408 = vmul.f32 %v386, %v397
  %v409 = vmul.f32 %v387, %v397
  %v410 = vmul.f32 %v388, %v397
  %v411 = vmul.f32 %v389, %v397
  %v412 = vmul.f32 %v390, %v397
  %v413 = vmul.f32 %v391, %v397
  %v414 = vmul.f32 %v392, %v397
  %v416 = vlaneseq
  %v417 = vshrl.u32 %v416, 7
  %v418 = vsub.s32 0, %v417
  %v419 = vrot.slane %v266, %v418
  %v421 = vadd.f32 %v399, %v419
  %v422 = vadd.f32 %v400, %v419
  %v423 = vadd.f32 %v401, %v419
  %v424 = vadd.f32 %v402, %v419
  %v425 = vadd.f32 %v403, %v419
  %v426 = vadd.f32 %v404, %v419
  %v427 = vadd.f32 %v405, %v419
  %v428 = vadd.f32 %v406, %v419
  %v429 = vadd.f32 %v407, %v419
  %v430 = vadd.f32 %v408, %v419
  %v431 = vadd.f32 %v409, %v419
  %v432 = vadd.f32 %v410, %v419
  %v433 = vadd.f32 %v411, %v419
  %v434 = vadd.f32 %v412, %v419
  %v435 = vadd.f32 %v413, %v419
  %v436 = vadd.f32 %v414, %v419
  %v437 = vmax.f32 %v421, 0.0
  %v438 = vmax.f32 %v422, 0.0
  %v439 = vmax.f32 %v423, 0.0
  %v440 = vmax.f32 %v424, 0.0
  %v441 = vmax.f32 %v425, 0.0
  %v442 = vmax.f32 %v426, 0.0
  %v443 = vmax.f32 %v427, 0.0
  %v444 = vmax.f32 %v428, 0.0
  %v445 = vmax.f32 %v429, 0.0
  %v446 = vmax.f32 %v430, 0.0
  %v447 = vmax.f32 %v431, 0.0
  %v448 = vmax.f32 %v432, 0.0
  %v449 = vmax.f32 %v433, 0.0
  %v450 = vmax.f32 %v434, 0.0
  %v451 = vmax.f32 %v435, 0.0
  %v452 = vmax.f32 %v436, 0.0
  %v453 = vmul.f32 %v437, %v94
  %v454 = vmul.f32 %v438, %v95
  %v455 = vmul.f32 %v439, %v96
  %v456 = vmul.f32 %v440, %v97
  %v457 = vmul.f32 %v441, %v98
  %v458 = vmul.f32 %v442, %v99
  %v459 = vmul.f32 %v443, %v100
  %v460 = vmul.f32 %v444, %v101
  %v461 = vmul.f32 %v445, %v102
  %v462 = vmul.f32 %v446, %v103
  %v463 = vmul.f32 %v447, %v104
  %v464 = vmul.f32 %v448, %v105
  %v465 = vmul.f32 %v449, %v106
  %v466 = vmul.f32 %v450, %v107
  %v467 = vmul.f32 %v451, %v108
  %v468 = vmul.f32 %v452, %v109
  %469 = vst [vmem:[#allocation2] sm:$0xff] 0.0
  %470 = vst [vmem:[#allocation2 + $0x8] sm:$0xff] 0.0
  %471 = vst [vmem:[#allocation2 + $0x10] sm:$0xff] 0.0
  %472 = vst [vmem:[#allocation2 + $0x18] sm:$0xff] 0.0
  %473 = vst [vmem:[#allocation2 + $0x20] sm:$0xff] 0.0
  %474 = vst [vmem:[#allocation2 + $0x28] sm:$0xff] 0.0
  %475 = vst [vmem:[#allocation2 + $0x30] sm:$0xff] 0.0
  %476 = vst [vmem:[#allocation2 + $0x38] sm:$0xff] 0.0
  %477 = vst [vmem:[#allocation2 + $0x40] sm:$0xff] 0.0
  %478 = vst [vmem:[#allocation2 + $0x48] sm:$0xff] 0.0
  %479 = vst [vmem:[#allocation2 + $0x50] sm:$0xff] 0.0
  %480 = vst [vmem:[#allocation2 + $0x58] sm:$0xff] 0.0
  %481 = vst [vmem:[#allocation2 + $0x60] sm:$0xff] 0.0
  %482 = vst [vmem:[#allocation2 + $0x68] sm:$0xff] 0.0
  %483 = vst [vmem:[#allocation2 + $0x70] sm:$0xff] 0.0
  %484 = vst [vmem:[#allocation2 + $0x78] sm:$0xff] 0.0
  %485 = vst [vmem:[#allocation2 + $0x80] sm:$0xff] 0.0
  %486 = vst [vmem:[#allocation2 + $0x88] sm:$0xff] 0.0
  %487 = vst [vmem:[#allocation2 + $0x90] sm:$0xff] 0.0
  %488 = vst [vmem:[#allocation2 + $0x98] sm:$0xff] 0.0
  %489 = vst [vmem:[#allocation2 + $0x10] sm:$0xff] %v453
  %490 = vst [vmem:[#allocation2 + $0x18] sm:$0xff] %v454
  %491 = vst [vmem:[#allocation2 + $0x20] sm:$0xff] %v455
  %492 = vst [vmem:[#allocation2 + $0x28] sm:$0xff] %v456
  %493 = vst [vmem:[#allocation2 + $0x30] sm:$0xff] %v457
  %494 = vst [vmem:[#allocation2 + $0x38] sm:$0xff] %v458
  %495 = vst [vmem:[#allocation2 + $0x40] sm:$0xff] %v459
  %496 = vst [vmem:[#allocation2 + $0x48] sm:$0xff] %v460
  %497 = vst [vmem:[#allocation2 + $0x50] sm:$0xff] %v461
  %498 = vst [vmem:[#allocation2 + $0x58] sm:$0xff] %v462
  %499 = vst [vmem:[#allocation2 + $0x60] sm:$0xff] %v463
  %500 = vst [vmem:[#allocation2 + $0x68] sm:$0xff] %v464
  %501 = vst [vmem:[#allocation2 + $0x70] sm:$0xff] %v465
  %502 = vst [vmem:[#allocation2 + $0x78] sm:$0xff] %v466
  %503 = vst [vmem:[#allocation2 + $0x80] sm:$0xff] %v467
  %504 = vst [vmem:[#allocation2 + $0x88] sm:$0xff] %v468
  %v505 = vld [vmem:[%s7] sm:$0xff]
  %v506 = vld [vmem:[%s7 + $0x8] sm:$0xff]
  %v507 = vld [vmem:[%s7 + $0x10] sm:$0xff]
  %v508 = vld [vmem:[%s7 + $0x18] sm:$0xff]
  %v509 = vld [vmem:[%s7 + $0x20] sm:$0xff]
  %v510 = vld [vmem:[%s7 + $0x28] sm:$0xff]
  %v511 = vld [vmem:[%s7 + $0x30] sm:$0xff]
  %v512 = vld [vmem:[%s7 + $0x38] sm:$0xff]
  %v513 = vld [vmem:[%s7 + $0x40] sm:$0xff]
  %v514 = vld [vmem:[%s7 + $0x48] sm:$0xff]
  %v515 = vld [vmem:[%s7 + $0x50] sm:$0xff]
  %v516 = vld [vmem:[%s7 + $0x58] sm:$0xff]
  %v517 = vld [vmem:[%s7 + $0x60] sm:$0xff]
  %v518 = vld [vmem:[%s7 + $0x68] sm:$0xff]
  %v519 = vld [vmem:[%s7 + $0x70] sm:$0xff]
  %v520 = vld [vmem:[%s7 + $0x78] sm:$0xff]
  %v521 = vld [vmem:[%s8] sm:$0xff]
  %v522 = vld [vmem:[%s8 + $0x8] sm:$0xff]
  %v523 = vld [vmem:[%s8 + $0x10] sm:$0xff]
  %v524 = vld [vmem:[%s8 + $0x18] sm:$0xff]
  %v525 = vld [vmem:[%s8 + $0x20] sm:$0xff]
  %v526 = vld [vmem:[%s8 + $0x28] sm:$0xff]
  %v527 = vld [vmem:[%s8 + $0x30] sm:$0xff]
  %v528 = vld [vmem:[%s8 + $0x38] sm:$0xff]
  %v529 = vld [vmem:[%s8 + $0x40] sm:$0xff]
  %v530 = vld [vmem:[%s8 + $0x48] sm:$0xff]
  %v531 = vld [vmem:[%s8 + $0x50] sm:$0xff]
  %v532 = vld [vmem:[%s8 + $0x58] sm:$0xff]
  %v533 = vld [vmem:[%s8 + $0x60] sm:$0xff]
  %v534 = vld [vmem:[%s8 + $0x68] sm:$0xff]
  %v535 = vld [vmem:[%s8 + $0x70] sm:$0xff]
  %v536 = vld [vmem:[%s8 + $0x78] sm:$0xff]
  %v537 = vld [vmem:[#allocation2 + $0x7] sm:$0xff]
  %v538 = vld [vmem:[#allocation2 + $0xf] sm:$0xff]
  %v539 = vld [vmem:[#allocation2 + $0x17] sm:$0xff]
  %v540 = vld [vmem:[#allocation2 + $0x1f] sm:$0xff]
  %v541 = vld [vmem:[#allocation2 + $0x27] sm:$0xff]
  %v542 = vld [vmem:[#allocation2 + $0x2f] sm:$0xff]
  %v543 = vld [vmem:[#allocation2 + $0x37] sm:$0xff]
  %v544 = vld [vmem:[#allocation2 + $0x3f] sm:$0xff]
  %v545 = vld [vmem:[#allocation2 + $0x47] sm:$0xff]
  %v546 = vld [vmem:[#allocation2 + $0x4f] sm:$0xff]
  %v547 = vld [vmem:[#allocation2 + $0x57] sm:$0xff]
  %v548 = vld [vmem:[#allocation2 + $0x5f] sm:$0xff]
  %v549 = vld [vmem:[#allocation2 + $0x67] sm:$0xff]
  %v550 = vld [vmem:[#allocation2 + $0x6f] sm:$0xff]
  %v551 = vld [vmem:[#allocation2 + $0x77] sm:$0xff]
  %v552 = vld [vmem:[#allocation2 + $0x7f] sm:$0xff]
  %v553 = vadd.s32 %v505, 4294967295
  %v554 = vadd.s32 %v506, 4294967295
  %v555 = vadd.s32 %v507, 4294967295
  %v556 = vadd.s32 %v508, 4294967295
  %v557 = vadd.s32 %v509, 4294967295
  %v558 = vadd.s32 %v510, 4294967295
  %v559 = vadd.s32 %v511, 4294967295
  %v560 = vadd.s32 %v512, 4294967295
  %v561 = vadd.s32 %v513, 4294967295
  %v562 = vadd.s32 %v514, 4294967295
  %v563 = vadd.s32 %v515, 4294967295
  %v564 = vadd.s32 %v516, 4294967295
  %v565 = vadd.s32 %v517, 4294967295
  %v566 = vadd.s32 %v518, 4294967295
  %v567 = vadd.s32 %v519, 4294967295
  %v568 = vadd.s32 %v520, 4294967295
  %vm569 = vcmp.ge.s32.totalorder %v553, 0
  %vm570 = vcmp.ge.s32.totalorder %v554, 0
  %vm571 = vcmp.ge.s32.totalorder %v555, 0
  %vm572 = vcmp.ge.s32.totalorder %v556, 0
  %vm573 = vcmp.ge.s32.totalorder %v557, 0
  %vm574 = vcmp.ge.s32.totalorder %v558, 0
  %vm575 = vcmp.ge.s32.totalorder %v559, 0
  %vm576 = vcmp.ge.s32.totalorder %v560, 0
  %vm577 = vcmp.ge.s32.totalorder %v561, 0
  %vm578 = vcmp.ge.s32.totalorder %v562, 0
  %vm579 = vcmp.ge.s32.totalorder %v563, 0
  %vm580 = vcmp.ge.s32.totalorder %v564, 0
  %vm581 = vcmp.ge.s32.totalorder %v565, 0
  %vm582 = vcmp.ge.s32.totalorder %v566, 0
  %vm583 = vcmp.ge.s32.totalorder %v567, 0
  %vm584 = vcmp.ge.s32.totalorder %v568, 0
  %vm585 = vcmp.lt.s32.totalorder %v553, 8
  %vm586 = vcmp.lt.s32.totalorder %v554, 8
  %vm587 = vcmp.lt.s32.totalorder %v555, 8
  %vm588 = vcmp.lt.s32.totalorder %v556, 8
  %vm589 = vcmp.lt.s32.totalorder %v557, 8
  %vm590 = vcmp.lt.s32.totalorder %v558, 8
  %vm591 = vcmp.lt.s32.totalorder %v559, 8
  %vm592 = vcmp.lt.s32.totalorder %v560, 8
  %vm593 = vcmp.lt.s32.totalorder %v561, 8
  %vm594 = vcmp.lt.s32.totalorder %v562, 8
  %vm595 = vcmp.lt.s32.totalorder %v563, 8
  %vm596 = vcmp.lt.s32.totalorder %v564, 8
  %vm597 = vcmp.lt.s32.totalorder %v565, 8
  %vm598 = vcmp.lt.s32.totalorder %v566, 8
  %vm599 = vcmp.lt.s32.totalorder %v567, 8
  %vm600 = vcmp.lt.s32.totalorder %v568, 8
  %vm601 = vmand %vm569, %vm585
  %vm602 = vmand %vm570, %vm586
  %vm603 = vmand %vm571, %vm587
  %vm604 = vmand %vm572, %vm588
  %vm605 = vmand %vm573, %vm589
  %vm606 = vmand %vm574, %vm590
  %vm607 = vmand %vm575, %vm591
  %vm608 = vmand %vm576, %vm592
  %vm609 = vmand %vm577, %vm593
  %vm610 = vmand %vm578, %vm594
  %vm611 = vmand %vm579, %vm595
  %vm612 = vmand %vm580, %vm596
  %vm613 = vmand %vm581, %vm597
  %vm614 = vmand %vm582, %vm598
  %vm615 = vmand %vm583, %vm599
  %vm616 = vmand %vm584, %vm600
  %v617 = vadd.s32 %v521, 4294967295
  %v618 = vadd.s32 %v522, 4294967295
  %v619 = vadd.s32 %v523, 4294967295
  %v620 = vadd.s32 %v524, 4294967295
  %v621 = vadd.s32 %v525, 4294967295
  %v622 = vadd.s32 %v526, 4294967295
  %v623 = vadd.s32 %v527, 4294967295
  %v624 = vadd.s32 %v528, 4294967295
  %v625 = vadd.s32 %v529, 4294967295
  %v626 = vadd.s32 %v530, 4294967295
  %v627 = vadd.s32 %v531, 4294967295
  %v628 = vadd.s32 %v532, 4294967295
  %v629 = vadd.s32 %v533, 4294967295
  %v630 = vadd.s32 %v534, 4294967295
  %v631 = vadd.s32 %v535, 4294967295
  %v632 = vadd.s32 %v536, 4294967295
  %vm633 = vcmp.ge.s32.totalorder %v617, 0
  %vm634 = vcmp.ge.s32.totalorder %v618, 0
  %vm635 = vcmp.ge.s32.totalorder %v619, 0
  %vm636 = vcmp.ge.s32.totalorder %v620, 0
  %vm637 = vcmp.ge.s32.totalorder %v621, 0
  %vm638 = vcmp.ge.s32.totalorder %v622, 0
  %vm639 = vcmp.ge.s32.totalorder %v623, 0
  %vm640 = vcmp.ge.s32.totalorder %v624, 0
  %vm641 = vcmp.ge.s32.totalorder %v625, 0
  %vm642 = vcmp.ge.s32.totalorder %v626, 0
  %vm643 = vcmp.ge.s32.totalorder %v627, 0
  %vm644 = vcmp.ge.s32.totalorder %v628, 0
  %vm645 = vcmp.ge.s32.totalorder %v629, 0
  %vm646 = vcmp.ge.s32.totalorder %v630, 0
  %vm647 = vcmp.ge.s32.totalorder %v631, 0
  %vm648 = vcmp.ge.s32.totalorder %v632, 0
  %vm649 = vmand %vm601, %vm633
  %vm650 = vmand %vm602, %vm634
  %vm651 = vmand %vm603, %vm635
  %vm652 = vmand %vm604, %vm636
  %vm653 = vmand %vm605, %vm637
  %vm654 = vmand %vm606, %vm638
  %vm655 = vmand %vm607, %vm639
  %vm656 = vmand %vm608, %vm640
  %vm657 = vmand %vm609, %vm641
  %vm658 = vmand %vm610, %vm642
  %vm659 = vmand %vm611, %vm643
  %vm660 = vmand %vm612, %vm644
  %vm661 = vmand %vm613, %vm645
  %vm662 = vmand %vm614, %vm646
  %vm663 = vmand %vm615, %vm647
  %vm664 = vmand %vm616, %vm648
  %vm665 = vcmp.lt.s32.totalorder %v617, 8
  %vm666 = vcmp.lt.s32.totalorder %v618, 8
  %vm667 = vcmp.lt.s32.totalorder %v619, 8
  %vm668 = vcmp.lt.s32.totalorder %v620, 8
  %vm669 = vcmp.lt.s32.totalorder %v621, 8
  %vm670 = vcmp.lt.s32.totalorder %v622, 8
  %vm671 = vcmp.lt.s32.totalorder %v623, 8
  %vm672 = vcmp.lt.s32.totalorder %v624, 8
  %vm673 = vcmp.lt.s32.totalorder %v625, 8
  %vm674 = vcmp.lt.s32.totalorder %v626, 8
  %vm675 = vcmp.lt.s32.totalorder %v627, 8
  %vm676 = vcmp.lt.s32.totalorder %v628, 8
  %vm677 = vcmp.lt.s32.totalorder %v629, 8
  %vm678 = vcmp.lt.s32.totalorder %v630, 8
  %vm679 = vcmp.lt.s32.totalorder %v631, 8
  %vm680 = vcmp.lt.s32.totalorder %v632, 8
  %vm681 = vmand %vm649, %vm665
  %vm682 = vmand %vm650, %vm666
  %vm683 = vmand %vm651, %vm667
  %vm684 = vmand %vm652, %vm668
  %vm685 = vmand %vm653, %vm669
  %vm686 = vmand %vm654, %vm670
  %vm687 = vmand %vm655, %vm671
  %vm688 = vmand %vm656, %vm672
  %vm689 = vmand %vm657, %vm673
  %vm690 = vmand %vm658, %vm674
  %vm691 = vmand %vm659, %vm675
  %vm692 = vmand %vm660, %vm676
  %vm693 = vmand %vm661, %vm677
  %vm694 = vmand %vm662, %vm678
  %vm695 = vmand %vm663, %vm679
  %vm696 = vmand %vm664, %vm680
  %v697 = vsel %vm681, 1, 0
  %v698 = vsel %vm682, 1, 0
  %v699 = vsel %vm683, 1, 0
  %v700 = vsel %vm684, 1, 0
  %v701 = vsel %vm685, 1, 0
  %v702 = vsel %vm686, 1, 0
  %v703 = vsel %vm687, 1, 0
  %v704 = vsel %vm688, 1, 0
  %v705 = vsel %vm689, 1, 0
  %v706 = vsel %vm690, 1, 0
  %v707 = vsel %vm691, 1, 0
  %v708 = vsel %vm692, 1, 0
  %v709 = vsel %vm693, 1, 0
  %v710 = vsel %vm694, 1, 0
  %v711 = vsel %vm695, 1, 0
  %v712 = vsel %vm696, 1, 0
  %v713 = vcvt.s32.f32 %v697
  %v714 = vcvt.s32.f32 %v698
  %v715 = vcvt.s32.f32 %v699
  %v716 = vcvt.s32.f32 %v700
  %v717 = vcvt.s32.f32 %v701
  %v718 = vcvt.s32.f32 %v702
  %v719 = vcvt.s32.f32 %v703
  %v720 = vcvt.s32.f32 %v704
  %v721 = vcvt.s32.f32 %v705
  %v722 = vcvt.s32.f32 %v706
  %v723 = vcvt.s32.f32 %v707
  %v724 = vcvt.s32.f32 %v708
  %v725 = vcvt.s32.f32 %v709
  %v726 = vcvt.s32.f32 %v710
  %v727 = vcvt.s32.f32 %v711
  %v728 = vcvt.s32.f32 %v712
  %730 = vset.pattern.permute.xlu0 0
  %731 = vperm.xlu0 %730, %v713
  %v732 = vpop.permute.xlu0 %731
  %735 = vset.pattern.permute.xlu0 0
  %736 = vperm.xlu0 %735, %v714
  %v737 = vpop.permute.xlu0 %736
  %740 = vset.pattern.permute.xlu0 0
  %741 = vperm.xlu0 %740, %v715
  %v742 = vpop.permute.xlu0 %741
  %745 = vset.pattern.permute.xlu0 0
  %746 = vperm.xlu0 %745, %v716
  %v747 = vpop.permute.xlu0 %746
  %750 = vset.pattern.permute.xlu0 0
  %751 = vperm.xlu0 %750, %v717
  %v752 = vpop.permute.xlu0 %751
  %755 = vset.pattern.permute.xlu0 0
  %756 = vperm.xlu0 %755, %v718
  %v757 = vpop.permute.xlu0 %756
  %760 = vset.pattern.permute.xlu0 0
  %761 = vperm.xlu0 %760, %v719
  %v762 = vpop.permute.xlu0 %761
  %765 = vset.pattern.permute.xlu0 0
  %766 = vperm.xlu0 %765, %v720
  %v767 = vpop.permute.xlu0 %766
  %770 = vset.pattern.permute.xlu0 0
  %771 = vperm.xlu0 %770, %v721
  %v772 = vpop.permute.xlu0 %771
  %775 = vset.pattern.permute.xlu0 0
  %776 = vperm.xlu0 %775, %v722
  %v777 = vpop.permute.xlu0 %776
  %780 = vset.pattern.permute.xlu0 0
  %781 = vperm.xlu0 %780, %v723
  %v782 = vpop.permute.xlu0 %781
  %785 = vset.pattern.permute.xlu0 0
  %786 = vperm.xlu0 %785, %v724
  %v787 = vpop.permute.xlu0 %786
  %790 = vset.pattern.permute.xlu0 0
  %791 = vperm.xlu0 %790, %v725
  %v792 = vpop.permute.xlu0 %791
  %795 = vset.pattern.permute.xlu0 0
  %796 = vperm.xlu0 %795, %v726
  %v797 = vpop.permute.xlu0 %796
  %800 = vset.pattern.permute.xlu0 0
  %801 = vperm.xlu0 %800, %v727
  %v802 = vpop.permute.xlu0 %801
  %805 = vset.pattern.permute.xlu0 0
  %806 = vperm.xlu0 %805, %v728
  %v807 = vpop.permute.xlu0 %806
  %v809 = vmul.f32 %v537, %v732
  %v810 = vmul.f32 %v538, %v737
  %v811 = vmul.f32 %v539, %v742
  %v812 = vmul.f32 %v540, %v747
  %v813 = vmul.f32 %v541, %v752
  %v814 = vmul.f32 %v542, %v757
  %v815 = vmul.f32 %v543, %v762
  %v816 = vmul.f32 %v544, %v767
  %v817 = vmul.f32 %v545, %v772
  %v818 = vmul.f32 %v546, %v777
  %v819 = vmul.f32 %v547, %v782
  %v820 = vmul.f32 %v548, %v787
  %v821 = vmul.f32 %v549, %v792
  %v822 = vmul.f32 %v550, %v797
  %v823 = vmul.f32 %v551, %v802
  %v824 = vmul.f32 %v552, %v807
  %v825 = vld [vmem:[%s4] sm:$0xff]
  %v826 = vld [vmem:[%s4 + $0x8] sm:$0xff]
  %v827 = vld [vmem:[%s4 + $0x10] sm:$0xff]
  %v828 = vld [vmem:[%s4 + $0x18] sm:$0xff]
  %v829 = vld [vmem:[%s4 + $0x20] sm:$0xff]
  %v830 = vld [vmem:[%s4 + $0x28] sm:$0xff]
  %v831 = vld [vmem:[%s4 + $0x30] sm:$0xff]
  %v832 = vld [vmem:[%s4 + $0x38] sm:$0xff]
  %v833 = vld [vmem:[%s4 + $0x40] sm:$0xff]
  %v834 = vld [vmem:[%s4 + $0x48] sm:$0xff]
  %v835 = vld [vmem:[%s4 + $0x50] sm:$0xff]
  %v836 = vld [vmem:[%s4 + $0x58] sm:$0xff]
  %v837 = vld [vmem:[%s4 + $0x60] sm:$0xff]
  %v838 = vld [vmem:[%s4 + $0x68] sm:$0xff]
  %v839 = vld [vmem:[%s4 + $0x70] sm:$0xff]
  %v840 = vld [vmem:[%s4 + $0x78] sm:$0xff]
  %v841 = vpack.c.bf16 %v810, %v809
  %v842 = vpack.c.bf16 %v812, %v811
  %v843 = vpack.c.bf16 %v814, %v813
  %v844 = vpack.c.bf16 %v816, %v815
  %v845 = vpack.c.bf16 %v818, %v817
  %v846 = vpack.c.bf16 %v820, %v819
  %v847 = vpack.c.bf16 %v822, %v821
  %v848 = vpack.c.bf16 %v824, %v823
  %v849 = vpack.c.bf16 %v826, %v825
  %v850 = vpack.c.bf16 %v828, %v827
  %v851 = vpack.c.bf16 %v830, %v829
  %v852 = vpack.c.bf16 %v832, %v831
  %v853 = vpack.c.bf16 %v834, %v833
  %v854 = vpack.c.bf16 %v836, %v835
  %v855 = vpack.c.bf16 %v838, %v837
  %v856 = vpack.c.bf16 %v840, %v839
  %v857 = vld [vmem:[#allocation2 + $0x8] sm:$0xff]
  %v858 = vld [vmem:[#allocation2 + $0x10] sm:$0xff]
  %v859 = vld [vmem:[#allocation2 + $0x18] sm:$0xff]
  %v860 = vld [vmem:[#allocation2 + $0x20] sm:$0xff]
  %v861 = vld [vmem:[#allocation2 + $0x28] sm:$0xff]
  %v862 = vld [vmem:[#allocation2 + $0x30] sm:$0xff]
  %v863 = vld [vmem:[#allocation2 + $0x38] sm:$0xff]
  %v864 = vld [vmem:[#allocation2 + $0x40] sm:$0xff]
  %v865 = vld [vmem:[#allocation2 + $0x48] sm:$0xff]
  %v866 = vld [vmem:[#allocation2 + $0x50] sm:$0xff]
  %v867 = vld [vmem:[#allocation2 + $0x58] sm:$0xff]
  %v868 = vld [vmem:[#allocation2 + $0x60] sm:$0xff]
  %v869 = vld [vmem:[#allocation2 + $0x68] sm:$0xff]
  %v870 = vld [vmem:[#allocation2 + $0x70] sm:$0xff]
  %v871 = vld [vmem:[#allocation2 + $0x78] sm:$0xff]
  %v872 = vld [vmem:[#allocation2 + $0x80] sm:$0xff]
  %vm873 = vcmp.ge.s32.totalorder %v521, 0
  %vm874 = vcmp.ge.s32.totalorder %v522, 0
  %vm875 = vcmp.ge.s32.totalorder %v523, 0
  %vm876 = vcmp.ge.s32.totalorder %v524, 0
  %vm877 = vcmp.ge.s32.totalorder %v525, 0
  %vm878 = vcmp.ge.s32.totalorder %v526, 0
  %vm879 = vcmp.ge.s32.totalorder %v527, 0
  %vm880 = vcmp.ge.s32.totalorder %v528, 0
  %vm881 = vcmp.ge.s32.totalorder %v529, 0
  %vm882 = vcmp.ge.s32.totalorder %v530, 0
  %vm883 = vcmp.ge.s32.totalorder %v531, 0
  %vm884 = vcmp.ge.s32.totalorder %v532, 0
  %vm885 = vcmp.ge.s32.totalorder %v533, 0
  %vm886 = vcmp.ge.s32.totalorder %v534, 0
  %vm887 = vcmp.ge.s32.totalorder %v535, 0
  %vm888 = vcmp.ge.s32.totalorder %v536, 0
  %vm889 = vmand %vm601, %vm873
  %vm890 = vmand %vm602, %vm874
  %vm891 = vmand %vm603, %vm875
  %vm892 = vmand %vm604, %vm876
  %vm893 = vmand %vm605, %vm877
  %vm894 = vmand %vm606, %vm878
  %vm895 = vmand %vm607, %vm879
  %vm896 = vmand %vm608, %vm880
  %vm897 = vmand %vm609, %vm881
  %vm898 = vmand %vm610, %vm882
  %vm899 = vmand %vm611, %vm883
  %vm900 = vmand %vm612, %vm884
  %vm901 = vmand %vm613, %vm885
  %vm902 = vmand %vm614, %vm886
  %vm903 = vmand %vm615, %vm887
  %vm904 = vmand %vm616, %vm888
  %vm905 = vcmp.lt.s32.totalorder %v521, 8
  %vm906 = vcmp.lt.s32.totalorder %v522, 8
  %vm907 = vcmp.lt.s32.totalorder %v523, 8
  %vm908 = vcmp.lt.s32.totalorder %v524, 8
  %vm909 = vcmp.lt.s32.totalorder %v525, 8
  %vm910 = vcmp.lt.s32.totalorder %v526, 8
  %vm911 = vcmp.lt.s32.totalorder %v527, 8
  %vm912 = vcmp.lt.s32.totalorder %v528, 8
  %vm913 = vcmp.lt.s32.totalorder %v529, 8
  %vm914 = vcmp.lt.s32.totalorder %v530, 8
  %vm915 = vcmp.lt.s32.totalorder %v531, 8
  %vm916 = vcmp.lt.s32.totalorder %v532, 8
  %vm917 = vcmp.lt.s32.totalorder %v533, 8
  %vm918 = vcmp.lt.s32.totalorder %v534, 8
  %vm919 = vcmp.lt.s32.totalorder %v535, 8
  %vm920 = vcmp.lt.s32.totalorder %v536, 8
  %vm921 = vmand %vm889, %vm905
  %vm922 = vmand %vm890, %vm906
  %vm923 = vmand %vm891, %vm907
  %vm924 = vmand %vm892, %vm908
  %vm925 = vmand %vm893, %vm909
  %vm926 = vmand %vm894, %vm910
  %vm927 = vmand %vm895, %vm911
  %vm928 = vmand %vm896, %vm912
  %vm929 = vmand %vm897, %vm913
  %vm930 = vmand %vm898, %vm914
  %vm931 = vmand %vm899, %vm915
  %vm932 = vmand %vm900, %vm916
  %vm933 = vmand %vm901, %vm917
  %vm934 = vmand %vm902, %vm918
  %vm935 = vmand %vm903, %vm919
  %vm936 = vmand %vm904, %vm920
  %v937 = vsel %vm921, 1, 0
  %v938 = vsel %vm922, 1, 0
  %v939 = vsel %vm923, 1, 0
  %v940 = vsel %vm924, 1, 0
  %v941 = vsel %vm925, 1, 0
  %v942 = vsel %vm926, 1, 0
  %v943 = vsel %vm927, 1, 0
  %v944 = vsel %vm928, 1, 0
  %v945 = vsel %vm929, 1, 0
  %v946 = vsel %vm930, 1, 0
  %v947 = vsel %vm931, 1, 0
  %v948 = vsel %vm932, 1, 0
  %v949 = vsel %vm933, 1, 0
  %v950 = vsel %vm934, 1, 0
  %v951 = vsel %vm935, 1, 0
  %v952 = vsel %vm936, 1, 0
  %v953 = vcvt.s32.f32 %v937
  %v954 = vcvt.s32.f32 %v938
  %v955 = vcvt.s32.f32 %v939
  %v956 = vcvt.s32.f32 %v940
  %v957 = vcvt.s32.f32 %v941
  %v958 = vcvt.s32.f32 %v942
  %v959 = vcvt.s32.f32 %v943
  %v960 = vcvt.s32.f32 %v944
  %v961 = vcvt.s32.f32 %v945
  %v962 = vcvt.s32.f32 %v946
  %v963 = vcvt.s32.f32 %v947
  %v964 = vcvt.s32.f32 %v948
  %v965 = vcvt.s32.f32 %v949
  %v966 = vcvt.s32.f32 %v950
  %v967 = vcvt.s32.f32 %v951
  %v968 = vcvt.s32.f32 %v952
  %970 = vset.pattern.permute.xlu0 0
  %971 = vperm.xlu0 %970, %v953
  %v972 = vpop.permute.xlu0 %971
  %975 = vset.pattern.permute.xlu0 0
  %976 = vperm.xlu0 %975, %v954
  %v977 = vpop.permute.xlu0 %976
  %980 = vset.pattern.permute.xlu0 0
  %981 = vperm.xlu0 %980, %v955
  %v982 = vpop.permute.xlu0 %981
  %985 = vset.pattern.permute.xlu0 0
  %986 = vperm.xlu0 %985, %v956
  %v987 = vpop.permute.xlu0 %986
  %990 = vset.pattern.permute.xlu0 0
  %991 = vperm.xlu0 %990, %v957
  %v992 = vpop.permute.xlu0 %991
  %995 = vset.pattern.permute.xlu0 0
  %996 = vperm.xlu0 %995, %v958
  %v997 = vpop.permute.xlu0 %996
  %1000 = vset.pattern.permute.xlu0 0
  %1001 = vperm.xlu0 %1000, %v959
  %v1002 = vpop.permute.xlu0 %1001
  %1005 = vset.pattern.permute.xlu0 0
  %1006 = vperm.xlu0 %1005, %v960
  %v1007 = vpop.permute.xlu0 %1006
  %1010 = vset.pattern.permute.xlu0 0
  %1011 = vperm.xlu0 %1010, %v961
  %v1012 = vpop.permute.xlu0 %1011
  %1015 = vset.pattern.permute.xlu0 0
  %1016 = vperm.xlu0 %1015, %v962
  %v1017 = vpop.permute.xlu0 %1016
  %1020 = vset.pattern.permute.xlu0 0
  %1021 = vperm.xlu0 %1020, %v963
  %v1022 = vpop.permute.xlu0 %1021
  %1025 = vset.pattern.permute.xlu0 0
  %1026 = vperm.xlu0 %1025, %v964
  %v1027 = vpop.permute.xlu0 %1026
  %1030 = vset.pattern.permute.xlu0 0
  %1031 = vperm.xlu0 %1030, %v965
  %v1032 = vpop.permute.xlu0 %1031
  %1035 = vset.pattern.permute.xlu0 0
  %1036 = vperm.xlu0 %1035, %v966
  %v1037 = vpop.permute.xlu0 %1036
  %1040 = vset.pattern.permute.xlu0 0
  %1041 = vperm.xlu0 %1040, %v967
  %v1042 = vpop.permute.xlu0 %1041
  %1045 = vset.pattern.permute.xlu0 0
  %1046 = vperm.xlu0 %1045, %v968
  %v1047 = vpop.permute.xlu0 %1046
  %v1049 = vmul.f32 %v857, %v972
  %v1050 = vmul.f32 %v858, %v977
  %v1051 = vmul.f32 %v859, %v982
  %v1052 = vmul.f32 %v860, %v987
  %v1053 = vmul.f32 %v861, %v992
  %v1054 = vmul.f32 %v862, %v997
  %v1055 = vmul.f32 %v863, %v1002
  %v1056 = vmul.f32 %v864, %v1007
  %v1057 = vmul.f32 %v865, %v1012
  %v1058 = vmul.f32 %v866, %v1017
  %v1059 = vmul.f32 %v867, %v1022
  %v1060 = vmul.f32 %v868, %v1027
  %v1061 = vmul.f32 %v869, %v1032
  %v1062 = vmul.f32 %v870, %v1037
  %v1063 = vmul.f32 %v871, %v1042
  %v1064 = vmul.f32 %v872, %v1047
  %v1065 = vld [vmem:[%s4 + $0x80] sm:$0xff]
  %v1066 = vld [vmem:[%s4 + $0x88] sm:$0xff]
  %v1067 = vld [vmem:[%s4 + $0x90] sm:$0xff]
  %v1068 = vld [vmem:[%s4 + $0x98] sm:$0xff]
  %v1069 = vld [vmem:[%s4 + $0xa0] sm:$0xff]
  %v1070 = vld [vmem:[%s4 + $0xa8] sm:$0xff]
  %v1071 = vld [vmem:[%s4 + $0xb0] sm:$0xff]
  %v1072 = vld [vmem:[%s4 + $0xb8] sm:$0xff]
  %v1073 = vld [vmem:[%s4 + $0xc0] sm:$0xff]
  %v1074 = vld [vmem:[%s4 + $0xc8] sm:$0xff]
  %v1075 = vld [vmem:[%s4 + $0xd0] sm:$0xff]
  %v1076 = vld [vmem:[%s4 + $0xd8] sm:$0xff]
  %v1077 = vld [vmem:[%s4 + $0xe0] sm:$0xff]
  %v1078 = vld [vmem:[%s4 + $0xe8] sm:$0xff]
  %v1079 = vld [vmem:[%s4 + $0xf0] sm:$0xff]
  %v1080 = vld [vmem:[%s4 + $0xf8] sm:$0xff]
  %v1081 = vpack.c.bf16 %v1050, %v1049
  %v1082 = vpack.c.bf16 %v1052, %v1051
  %v1083 = vpack.c.bf16 %v1054, %v1053
  %v1084 = vpack.c.bf16 %v1056, %v1055
  %v1085 = vpack.c.bf16 %v1058, %v1057
  %v1086 = vpack.c.bf16 %v1060, %v1059
  %v1087 = vpack.c.bf16 %v1062, %v1061
  %v1088 = vpack.c.bf16 %v1064, %v1063
  %v1089 = vpack.c.bf16 %v1066, %v1065
  %v1090 = vpack.c.bf16 %v1068, %v1067
  %v1091 = vpack.c.bf16 %v1070, %v1069
  %v1092 = vpack.c.bf16 %v1072, %v1071
  %v1093 = vpack.c.bf16 %v1074, %v1073
  %v1094 = vpack.c.bf16 %v1076, %v1075
  %v1095 = vpack.c.bf16 %v1078, %v1077
  %v1096 = vpack.c.bf16 %v1080, %v1079
  %1097 = vmatprep.subr.bf16.mxu0 0
  %1098 = vmatpush1.bf16.msra.mxu0 %v1089
  %1099 = vmatprep.subr.bf16.mxu0 0
  %1100 = vmatpush1.bf16.msra.mxu0 %v1090
  %1101 = vmatprep.subr.bf16.mxu0 0
  %1102 = vmatpush1.bf16.msra.mxu0 %v1091
  %1103 = vmatprep.subr.bf16.mxu0 0
  %1104 = vmatpush1.bf16.msra.mxu0 %v1092
  %1105 = vmatprep.subr.bf16.mxu0 0
  %1106 = vmatpush1.bf16.msra.mxu0 %v1093
  %1107 = vmatprep.subr.bf16.mxu0 0
  %1108 = vmatpush1.bf16.msra.mxu0 %v1094
  %1109 = vmatprep.subr.bf16.mxu0 0
  %1110 = vmatpush1.bf16.msra.mxu0 %v1095
  %1111 = vmatprep.subr.bf16.mxu0 0
  %1112 = vmatpush1.bf16.msra.mxu0 %v1096
  %1113 = vmatprep.subr.bf16.mxu0 0
  %1114 = vmatpush1.bf16.msra.mxu0 0
  %1115 = vmatprep.subr.bf16.mxu0 0
  %1116 = vmatpush1.bf16.msra.mxu0 0
  %1117 = vmatprep.subr.bf16.mxu0 0
  %1118 = vmatpush1.bf16.msra.mxu0 0
  %1119 = vmatprep.subr.bf16.mxu0 0
  %1120 = vmatpush1.bf16.msra.mxu0 0
  %1121 = vmatprep.subr.bf16.mxu0 0
  %1122 = vmatpush1.bf16.msra.mxu0 0
  %1123 = vmatprep.subr.bf16.mxu0 0
  %1124 = vmatpush1.bf16.msra.mxu0 0
  %1125 = vmatprep.subr.bf16.mxu0 0
  %1126 = vmatpush1.bf16.msra.mxu0 0
  %1127 = vmatprep.subr.bf16.mxu0 0
  %1128 = vmatpush1.bf16.msra.mxu0 0
  %1129 = vmatprep.mubr.bf16.mxu0 0
  %1130 = vmatmul.mubr.bf16.gmra.mrb[0].mxu0 %v1081
  %v1131 = vpop.f32.mrb[0].mxu0
  %v1132 = vadd.f32 0.0, %v1131
  %v1133 = vpop.f32.mrb[0].mxu0
  %v1134 = vpop.f32.mrb[0].mxu0
  %v1135 = vadd.f32 0.0, %v1134
  %v1136 = vpop.f32.mrb[0].mxu0
  %1137 = vmatprep.mubr.bf16.mxu0 0
  %1138 = vmatmul.mubr.bf16.gmra.mrb[0].mxu0 %v1082
  %v1139 = vpop.f32.mrb[0].mxu0
  %v1140 = vadd.f32 0.0, %v1139
  %v1141 = vpop.f32.mrb[0].mxu0
  %v1142 = vpop.f32.mrb[0].mxu0
  %v1143 = vadd.f32 0.0, %v1142
  %v1144 = vpop.f32.mrb[0].mxu0
  %1145 = vmatprep.mubr.bf16.mxu0 0
  %1146 = vmatmul.mubr.bf16.gmra.mrb[0].mxu0 %v1083
  %v1147 = vpop.f32.mrb[0].mxu0
  %v1148 = vadd.f32 0.0, %v1147
  %v1149 = vpop.f32.mrb[0].mxu0
  %v1150 = vpop.f32.mrb[0].mxu0
  %v1151 = vadd.f32 0.0, %v1150
  %v1152 = vpop.f32.mrb[0].mxu0
  %1153 = vmatprep.mubr.bf16.mxu0 0
  %1154 = vmatmul.mubr.bf16.gmra.mrb[0].mxu0 %v1084
  %v1155 = vpop.f32.mrb[0].mxu0
  %v1156 = vadd.f32 0.0, %v1155
  %v1157 = vpop.f32.mrb[0].mxu0
  %v1158 = vpop.f32.mrb[0].mxu0
  %v1159 = vadd.f32 0.0, %v1158
  %v1160 = vpop.f32.mrb[0].mxu0
  %1161 = vmatprep.mubr.bf16.mxu0 0
  %1162 = vmatmul.mubr.bf16.gmra.mrb[0].mxu0 %v1085
  %v1163 = vpop.f32.mrb[0].mxu0
  %v1164 = vadd.f32 0.0, %v1163
  %v1165 = vpop.f32.mrb[0].mxu0
  %v1166 = vpop.f32.mrb[0].mxu0
  %v1167 = vadd.f32 0.0, %v1166
  %v1168 = vpop.f32.mrb[0].mxu0
  %1169 = vmatprep.mubr.bf16.mxu0 0
  %1170 = vmatmul.mubr.bf16.gmra.mrb[0].mxu0 %v1086
  %v1171 = vpop.f32.mrb[0].mxu0
  %v1172 = vadd.f32 0.0, %v1171
  %v1173 = vpop.f32.mrb[0].mxu0
  %v1174 = vpop.f32.mrb[0].mxu0
  %v1175 = vadd.f32 0.0, %v1174
  %v1176 = vpop.f32.mrb[0].mxu0
  %1177 = vmatprep.mubr.bf16.mxu0 0
  %1178 = vmatmul.mubr.bf16.gmra.mrb[0].mxu0 %v1087
  %v1179 = vpop.f32.mrb[0].mxu0
  %v1180 = vadd.f32 0.0, %v1179
  %v1181 = vpop.f32.mrb[0].mxu0
  %v1182 = vpop.f32.mrb[0].mxu0
  %v1183 = vadd.f32 0.0, %v1182
  %v1184 = vpop.f32.mrb[0].mxu0
  %1185 = vmatprep.mubr.bf16.mxu0 0
  %1186 = vmatmul.mubr.bf16.gmra.mrb[0].mxu0 %v1088
  %v1187 = vpop.f32.mrb[0].mxu0
  %v1188 = vadd.f32 0.0, %v1187
  %v1189 = vpop.f32.mrb[0].mxu0
  %v1190 = vpop.f32.mrb[0].mxu0
  %v1191 = vadd.f32 0.0, %v1190
  %v1192 = vpop.f32.mrb[0].mxu0
  %1193 = vdwg.mxu0
  %1194 = vmatprep.subr.bf16.mxu0 0
  %1195 = vmatpush1.bf16.msra.mxu0 %v849
  %1196 = vmatprep.subr.bf16.mxu0 0
  %1197 = vmatpush1.bf16.msra.mxu0 %v850
  %1198 = vmatprep.subr.bf16.mxu0 0
  %1199 = vmatpush1.bf16.msra.mxu0 %v851
  %1200 = vmatprep.subr.bf16.mxu0 0
  %1201 = vmatpush1.bf16.msra.mxu0 %v852
  %1202 = vmatprep.subr.bf16.mxu0 0
  %1203 = vmatpush1.bf16.msra.mxu0 %v853
  %1204 = vmatprep.subr.bf16.mxu0 0
  %1205 = vmatpush1.bf16.msra.mxu0 %v854
  %1206 = vmatprep.subr.bf16.mxu0 0
  %1207 = vmatpush1.bf16.msra.mxu0 %v855
  %1208 = vmatprep.subr.bf16.mxu0 0
  %1209 = vmatpush1.bf16.msra.mxu0 %v856
  %1210 = vmatprep.subr.bf16.mxu0 0
  %1211 = vmatpush1.bf16.msra.mxu0 0
  %1212 = vmatprep.subr.bf16.mxu0 0
  %1213 = vmatpush1.bf16.msra.mxu0 0
  %1214 = vmatprep.subr.bf16.mxu0 0
  %1215 = vmatpush1.bf16.msra.mxu0 0
  %1216 = vmatprep.subr.bf16.mxu0 0
  %1217 = vmatpush1.bf16.msra.mxu0 0
  %1218 = vmatprep.subr.bf16.mxu0 0
  %1219 = vmatpush1.bf16.msra.mxu0 0
  %1220 = vmatprep.subr.bf16.mxu0 0
  %1221 = vmatpush1.bf16.msra.mxu0 0
  %1222 = vmatprep.subr.bf16.mxu0 0
  %1223 = vmatpush1.bf16.msra.mxu0 0
  %1224 = vmatprep.subr.bf16.mxu0 0
  %1225 = vmatpush1.bf16.msra.mxu0 0
  %1226 = vmatprep.mubr.bf16.mxu0 0
  %1227 = vmatmul.mubr.bf16.gmra.mrb[0].mxu0 %v841
  %v1228 = vpop.f32.mrb[0].mxu0
  %v1229 = vadd.f32 %v1132, %v1228
  %v1230 = vpop.f32.mrb[0].mxu0
  %v1231 = vpop.f32.mrb[0].mxu0
  %v1232 = vadd.f32 %v1135, %v1231
  %v1233 = vpop.f32.mrb[0].mxu0
  %1234 = vmatprep.mubr.bf16.mxu0 0
  %1235 = vmatmul.mubr.bf16.gmra.mrb[0].mxu0 %v842
  %v1236 = vpop.f32.mrb[0].mxu0
  %v1237 = vadd.f32 %v1140, %v1236
  %v1238 = vpop.f32.mrb[0].mxu0
  %v1239 = vpop.f32.mrb[0].mxu0
  %v1240 = vadd.f32 %v1143, %v1239
  %v1241 = vpop.f32.mrb[0].mxu0
  %1242 = vmatprep.mubr.bf16.mxu0 0
  %1243 = vmatmul.mubr.bf16.gmra.mrb[0].mxu0 %v843
  %v1244 = vpop.f32.mrb[0].mxu0
  %v1245 = vadd.f32 %v1148, %v1244
  %v1246 = vpop.f32.mrb[0].mxu0
  %v1247 = vpop.f32.mrb[0].mxu0
  %v1248 = vadd.f32 %v1151, %v1247
  %v1249 = vpop.f32.mrb[0].mxu0
  %1250 = vmatprep.mubr.bf16.mxu0 0
  %1251 = vmatmul.mubr.bf16.gmra.mrb[0].mxu0 %v844
  %v1252 = vpop.f32.mrb[0].mxu0
  %v1253 = vadd.f32 %v1156, %v1252
  %v1254 = vpop.f32.mrb[0].mxu0
  %v1255 = vpop.f32.mrb[0].mxu0
  %v1256 = vadd.f32 %v1159, %v1255
  %v1257 = vpop.f32.mrb[0].mxu0
  %1258 = vmatprep.mubr.bf16.mxu0 0
  %1259 = vmatmul.mubr.bf16.gmra.mrb[0].mxu0 %v845
  %v1260 = vpop.f32.mrb[0].mxu0
  %v1261 = vadd.f32 %v1164, %v1260
  %v1262 = vpop.f32.mrb[0].mxu0
  %v1263 = vpop.f32.mrb[0].mxu0
  %v1264 = vadd.f32 %v1167, %v1263
  %v1265 = vpop.f32.mrb[0].mxu0
  %1266 = vmatprep.mubr.bf16.mxu0 0
  %1267 = vmatmul.mubr.bf16.gmra.mrb[0].mxu0 %v846
  %v1268 = vpop.f32.mrb[0].mxu0
  %v1269 = vadd.f32 %v1172, %v1268
  %v1270 = vpop.f32.mrb[0].mxu0
  %v1271 = vpop.f32.mrb[0].mxu0
  %v1272 = vadd.f32 %v1175, %v1271
  %v1273 = vpop.f32.mrb[0].mxu0
  %1274 = vmatprep.mubr.bf16.mxu0 0
  %1275 = vmatmul.mubr.bf16.gmra.mrb[0].mxu0 %v847
  %v1276 = vpop.f32.mrb[0].mxu0
  %v1277 = vadd.f32 %v1180, %v1276
  %v1278 = vpop.f32.mrb[0].mxu0
  %v1279 = vpop.f32.mrb[0].mxu0
  %v1280 = vadd.f32 %v1183, %v1279
  %v1281 = vpop.f32.mrb[0].mxu0
  %1282 = vmatprep.mubr.bf16.mxu0 0
  %1283 = vmatmul.mubr.bf16.gmra.mrb[0].mxu0 %v848
  %v1284 = vpop.f32.mrb[0].mxu0
  %v1285 = vadd.f32 %v1188, %v1284
  %v1286 = vpop.f32.mrb[0].mxu0
  %v1287 = vpop.f32.mrb[0].mxu0
  %v1288 = vadd.f32 %v1191, %v1287
  %v1289 = vpop.f32.mrb[0].mxu0
  %1290 = vdwg.mxu0
  %v1291 = vld [vmem:[#allocation2 + $0x9] sm:$0xff]
  %v1292 = vld [vmem:[#allocation2 + $0x11] sm:$0xff]
  %v1293 = vld [vmem:[#allocation2 + $0x19] sm:$0xff]
  %v1294 = vld [vmem:[#allocation2 + $0x21] sm:$0xff]
  %v1295 = vld [vmem:[#allocation2 + $0x29] sm:$0xff]
  %v1296 = vld [vmem:[#allocation2 + $0x31] sm:$0xff]
  %v1297 = vld [vmem:[#allocation2 + $0x39] sm:$0xff]
  %v1298 = vld [vmem:[#allocation2 + $0x41] sm:$0xff]
  %v1299 = vld [vmem:[#allocation2 + $0x49] sm:$0xff]
  %v1300 = vld [vmem:[#allocation2 + $0x51] sm:$0xff]
  %v1301 = vld [vmem:[#allocation2 + $0x59] sm:$0xff]
  %v1302 = vld [vmem:[#allocation2 + $0x61] sm:$0xff]
  %v1303 = vld [vmem:[#allocation2 + $0x69] sm:$0xff]
  %v1304 = vld [vmem:[#allocation2 + $0x71] sm:$0xff]
  %v1305 = vld [vmem:[#allocation2 + $0x79] sm:$0xff]
  %v1306 = vld [vmem:[#allocation2 + $0x81] sm:$0xff]
  %v1307 = vadd.s32 %v521, 1
  %v1308 = vadd.s32 %v522, 1
  %v1309 = vadd.s32 %v523, 1
  %v1310 = vadd.s32 %v524, 1
  %v1311 = vadd.s32 %v525, 1
  %v1312 = vadd.s32 %v526, 1
  %v1313 = vadd.s32 %v527, 1
  %v1314 = vadd.s32 %v528, 1
  %v1315 = vadd.s32 %v529, 1
  %v1316 = vadd.s32 %v530, 1
  %v1317 = vadd.s32 %v531, 1
  %v1318 = vadd.s32 %v532, 1
  %v1319 = vadd.s32 %v533, 1
  %v1320 = vadd.s32 %v534, 1
  %v1321 = vadd.s32 %v535, 1
  %v1322 = vadd.s32 %v536, 1
  %vm1323 = vcmp.ge.s32.totalorder %v1307, 0
  %vm1324 = vcmp.ge.s32.totalorder %v1308, 0
  %vm1325 = vcmp.ge.s32.totalorder %v1309, 0
  %vm1326 = vcmp.ge.s32.totalorder %v1310, 0
  %vm1327 = vcmp.ge.s32.totalorder %v1311, 0
  %vm1328 = vcmp.ge.s32.totalorder %v1312, 0
  %vm1329 = vcmp.ge.s32.totalorder %v1313, 0
  %vm1330 = vcmp.ge.s32.totalorder %v1314, 0
  %vm1331 = vcmp.ge.s32.totalorder %v1315, 0
  %vm1332 = vcmp.ge.s32.totalorder %v1316, 0
  %vm1333 = vcmp.ge.s32.totalorder %v1317, 0
  %vm1334 = vcmp.ge.s32.totalorder %v1318, 0
  %vm1335 = vcmp.ge.s32.totalorder %v1319, 0
  %vm1336 = vcmp.ge.s32.totalorder %v1320, 0
  %vm1337 = vcmp.ge.s32.totalorder %v1321, 0
  %vm1338 = vcmp.ge.s32.totalorder %v1322, 0
  %vm1339 = vmand %vm601, %vm1323
  %vm1340 = vmand %vm602, %vm1324
  %vm1341 = vmand %vm603, %vm1325
  %vm1342 = vmand %vm604, %vm1326
  %vm1343 = vmand %vm605, %vm1327
  %vm1344 = vmand %vm606, %vm1328
  %vm1345 = vmand %vm607, %vm1329
  %vm1346 = vmand %vm608, %vm1330
  %vm1347 = vmand %vm609, %vm1331
  %vm1348 = vmand %vm610, %vm1332
  %vm1349 = vmand %vm611, %vm1333
  %vm1350 = vmand %vm612, %vm1334
  %vm1351 = vmand %vm613, %vm1335
  %vm1352 = vmand %vm614, %vm1336
  %vm1353 = vmand %vm615, %vm1337
  %vm1354 = vmand %vm616, %vm1338
  %vm1355 = vcmp.lt.s32.totalorder %v1307, 8
  %vm1356 = vcmp.lt.s32.totalorder %v1308, 8
  %vm1357 = vcmp.lt.s32.totalorder %v1309, 8
  %vm1358 = vcmp.lt.s32.totalorder %v1310, 8
  %vm1359 = vcmp.lt.s32.totalorder %v1311, 8
  %vm1360 = vcmp.lt.s32.totalorder %v1312, 8
  %vm1361 = vcmp.lt.s32.totalorder %v1313, 8
  %vm1362 = vcmp.lt.s32.totalorder %v1314, 8
  %vm1363 = vcmp.lt.s32.totalorder %v1315, 8
  %vm1364 = vcmp.lt.s32.totalorder %v1316, 8
  %vm1365 = vcmp.lt.s32.totalorder %v1317, 8
  %vm1366 = vcmp.lt.s32.totalorder %v1318, 8
  %vm1367 = vcmp.lt.s32.totalorder %v1319, 8
  %vm1368 = vcmp.lt.s32.totalorder %v1320, 8
  %vm1369 = vcmp.lt.s32.totalorder %v1321, 8
  %vm1370 = vcmp.lt.s32.totalorder %v1322, 8
  %vm1371 = vmand %vm1339, %vm1355
  %vm1372 = vmand %vm1340, %vm1356
  %vm1373 = vmand %vm1341, %vm1357
  %vm1374 = vmand %vm1342, %vm1358
  %vm1375 = vmand %vm1343, %vm1359
  %vm1376 = vmand %vm1344, %vm1360
  %vm1377 = vmand %vm1345, %vm1361
  %vm1378 = vmand %vm1346, %vm1362
  %vm1379 = vmand %vm1347, %vm1363
  %vm1380 = vmand %vm1348, %vm1364
  %vm1381 = vmand %vm1349, %vm1365
  %vm1382 = vmand %vm1350, %vm1366
  %vm1383 = vmand %vm1351, %vm1367
  %vm1384 = vmand %vm1352, %vm1368
  %vm1385 = vmand %vm1353, %vm1369
  %vm1386 = vmand %vm1354, %vm1370
  %v1387 = vsel %vm1371, 1, 0
  %v1388 = vsel %vm1372, 1, 0
  %v1389 = vsel %vm1373, 1, 0
  %v1390 = vsel %vm1374, 1, 0
  %v1391 = vsel %vm1375, 1, 0
  %v1392 = vsel %vm1376, 1, 0
  %v1393 = vsel %vm1377, 1, 0
  %v1394 = vsel %vm1378, 1, 0
  %v1395 = vsel %vm1379, 1, 0
  %v1396 = vsel %vm1380, 1, 0
  %v1397 = vsel %vm1381, 1, 0
  %v1398 = vsel %vm1382, 1, 0
  %v1399 = vsel %vm1383, 1, 0
  %v1400 = vsel %vm1384, 1, 0
  %v1401 = vsel %vm1385, 1, 0
  %v1402 = vsel %vm1386, 1, 0
  %v1403 = vcvt.s32.f32 %v1387
  %v1404 = vcvt.s32.f32 %v1388
  %v1405 = vcvt.s32.f32 %v1389
  %v1406 = vcvt.s32.f32 %v1390
  %v1407 = vcvt.s32.f32 %v1391
  %v1408 = vcvt.s32.f32 %v1392
  %v1409 = vcvt.s32.f32 %v1393
  %v1410 = vcvt.s32.f32 %v1394
  %v1411 = vcvt.s32.f32 %v1395
  %v1412 = vcvt.s32.f32 %v1396
  %v1413 = vcvt.s32.f32 %v1397
  %v1414 = vcvt.s32.f32 %v1398
  %v1415 = vcvt.s32.f32 %v1399
  %v1416 = vcvt.s32.f32 %v1400
  %v1417 = vcvt.s32.f32 %v1401
  %v1418 = vcvt.s32.f32 %v1402
  %1420 = vset.pattern.permute.xlu0 0
  %1421 = vperm.xlu0 %1420, %v1403
  %v1422 = vpop.permute.xlu0 %1421
  %1425 = vset.pattern.permute.xlu0 0
  %1426 = vperm.xlu0 %1425, %v1404
  %v1427 = vpop.permute.xlu0 %1426
  %1430 = vset.pattern.permute.xlu0 0
  %1431 = vperm.xlu0 %1430, %v1405
  %v1432 = vpop.permute.xlu0 %1431
  %1435 = vset.pattern.permute.xlu0 0
  %1436 = vperm.xlu0 %1435, %v1406
  %v1437 = vpop.permute.xlu0 %1436
  %1440 = vset.pattern.permute.xlu0 0
  %1441 = vperm.xlu0 %1440, %v1407
  %v1442 = vpop.permute.xlu0 %1441
  %1445 = vset.pattern.permute.xlu0 0
  %1446 = vperm.xlu0 %1445, %v1408
  %v1447 = vpop.permute.xlu0 %1446
  %1450 = vset.pattern.permute.xlu0 0
  %1451 = vperm.xlu0 %1450, %v1409
  %v1452 = vpop.permute.xlu0 %1451
  %1455 = vset.pattern.permute.xlu0 0
  %1456 = vperm.xlu0 %1455, %v1410
  %v1457 = vpop.permute.xlu0 %1456
  %1460 = vset.pattern.permute.xlu0 0
  %1461 = vperm.xlu0 %1460, %v1411
  %v1462 = vpop.permute.xlu0 %1461
  %1465 = vset.pattern.permute.xlu0 0
  %1466 = vperm.xlu0 %1465, %v1412
  %v1467 = vpop.permute.xlu0 %1466
  %1470 = vset.pattern.permute.xlu0 0
  %1471 = vperm.xlu0 %1470, %v1413
  %v1472 = vpop.permute.xlu0 %1471
  %1475 = vset.pattern.permute.xlu0 0
  %1476 = vperm.xlu0 %1475, %v1414
  %v1477 = vpop.permute.xlu0 %1476
  %1480 = vset.pattern.permute.xlu0 0
  %1481 = vperm.xlu0 %1480, %v1415
  %v1482 = vpop.permute.xlu0 %1481
  %1485 = vset.pattern.permute.xlu0 0
  %1486 = vperm.xlu0 %1485, %v1416
  %v1487 = vpop.permute.xlu0 %1486
  %1490 = vset.pattern.permute.xlu0 0
  %1491 = vperm.xlu0 %1490, %v1417
  %v1492 = vpop.permute.xlu0 %1491
  %1495 = vset.pattern.permute.xlu0 0
  %1496 = vperm.xlu0 %1495, %v1418
  %v1497 = vpop.permute.xlu0 %1496
  %v1499 = vmul.f32 %v1291, %v1422
  %v1500 = vmul.f32 %v1292, %v1427
  %v1501 = vmul.f32 %v1293, %v1432
  %v1502 = vmul.f32 %v1294, %v1437
  %v1503 = vmul.f32 %v1295, %v1442
  %v1504 = vmul.f32 %v1296, %v1447
  %v1505 = vmul.f32 %v1297, %v1452
  %v1506 = vmul.f32 %v1298, %v1457
  %v1507 = vmul.f32 %v1299, %v1462
  %v1508 = vmul.f32 %v1300, %v1467
  %v1509 = vmul.f32 %v1301, %v1472
  %v1510 = vmul.f32 %v1302, %v1477
  %v1511 = vmul.f32 %v1303, %v1482
  %v1512 = vmul.f32 %v1304, %v1487
  %v1513 = vmul.f32 %v1305, %v1492
  %v1514 = vmul.f32 %v1306, %v1497
  %v1515 = vld [vmem:[%s4 + $0x100] sm:$0xff]
  %v1516 = vld [vmem:[%s4 + $0x108] sm:$0xff]
  %v1517 = vld [vmem:[%s4 + $0x110] sm:$0xff]
  %v1518 = vld [vmem:[%s4 + $0x118] sm:$0xff]
  %v1519 = vld [vmem:[%s4 + $0x120] sm:$0xff]
  %v1520 = vld [vmem:[%s4 + $0x128] sm:$0xff]
  %v1521 = vld [vmem:[%s4 + $0x130] sm:$0xff]
  %v1522 = vld [vmem:[%s4 + $0x138] sm:$0xff]
  %v1523 = vld [vmem:[%s4 + $0x140] sm:$0xff]
  %v1524 = vld [vmem:[%s4 + $0x148] sm:$0xff]
  %v1525 = vld [vmem:[%s4 + $0x150] sm:$0xff]
  %v1526 = vld [vmem:[%s4 + $0x158] sm:$0xff]
  %v1527 = vld [vmem:[%s4 + $0x160] sm:$0xff]
  %v1528 = vld [vmem:[%s4 + $0x168] sm:$0xff]
  %v1529 = vld [vmem:[%s4 + $0x170] sm:$0xff]
  %v1530 = vld [vmem:[%s4 + $0x178] sm:$0xff]
  %v1531 = vpack.c.bf16 %v1500, %v1499
  %v1532 = vpack.c.bf16 %v1502, %v1501
  %v1533 = vpack.c.bf16 %v1504, %v1503
  %v1534 = vpack.c.bf16 %v1506, %v1505
  %v1535 = vpack.c.bf16 %v1508, %v1507
  %v1536 = vpack.c.bf16 %v1510, %v1509
  %v1537 = vpack.c.bf16 %v1512, %v1511
  %v1538 = vpack.c.bf16 %v1514, %v1513
  %v1539 = vpack.c.bf16 %v1516, %v1515
  %v1540 = vpack.c.bf16 %v1518, %v1517
  %v1541 = vpack.c.bf16 %v1520, %v1519
  %v1542 = vpack.c.bf16 %v1522, %v1521
  %v1543 = vpack.c.bf16 %v1524, %v1523
  %v1544 = vpack.c.bf16 %v1526, %v1525
  %v1545 = vpack.c.bf16 %v1528, %v1527
  %v1546 = vpack.c.bf16 %v1530, %v1529
  %1547 = vmatprep.subr.bf16.mxu0 0
  %1548 = vmatpush1.bf16.msra.mxu0 %v1539
  %1549 = vmatprep.subr.bf16.mxu0 0
  %1550 = vmatpush1.bf16.msra.mxu0 %v1540
  %1551 = vmatprep.subr.bf16.mxu0 0
  %1552 = vmatpush1.bf16.msra.mxu0 %v1541
  %1553 = vmatprep.subr.bf16.mxu0 0
  %1554 = vmatpush1.bf16.msra.mxu0 %v1542
  %1555 = vmatprep.subr.bf16.mxu0 0
  %1556 = vmatpush1.bf16.msra.mxu0 %v1543
  %1557 = vmatprep.subr.bf16.mxu0 0
  %1558 = vmatpush1.bf16.msra.mxu0 %v1544
  %1559 = vmatprep.subr.bf16.mxu0 0
  %1560 = vmatpush1.bf16.msra.mxu0 %v1545
  %1561 = vmatprep.subr.bf16.mxu0 0
  %1562 = vmatpush1.bf16.msra.mxu0 %v1546
  %1563 = vmatprep.subr.bf16.mxu0 0
  %1564 = vmatpush1.bf16.msra.mxu0 0
  %1565 = vmatprep.subr.bf16.mxu0 0
  %1566 = vmatpush1.bf16.msra.mxu0 0
  %1567 = vmatprep.subr.bf16.mxu0 0
  %1568 = vmatpush1.bf16.msra.mxu0 0
  %1569 = vmatprep.subr.bf16.mxu0 0
  %1570 = vmatpush1.bf16.msra.mxu0 0
  %1571 = vmatprep.subr.bf16.mxu0 0
  %1572 = vmatpush1.bf16.msra.mxu0 0
  %1573 = vmatprep.subr.bf16.mxu0 0
  %1574 = vmatpush1.bf16.msra.mxu0 0
  %1575 = vmatprep.subr.bf16.mxu0 0
  %1576 = vmatpush1.bf16.msra.mxu0 0
  %1577 = vmatprep.subr.bf16.mxu0 0
  %1578 = vmatpush1.bf16.msra.mxu0 0
  %1579 = vmatprep.mubr.bf16.mxu0 0
  %1580 = vmatmul.mubr.bf16.gmra.mrb[0].mxu0 %v1531
  %v1581 = vpop.f32.mrb[0].mxu0
  %v1582 = vadd.f32 0.0, %v1581
  %v1583 = vpop.f32.mrb[0].mxu0
  %v1584 = vpop.f32.mrb[0].mxu0
  %v1585 = vadd.f32 0.0, %v1584
  %v1586 = vpop.f32.mrb[0].mxu0
  %1587 = vmatprep.mubr.bf16.mxu0 0
  %1588 = vmatmul.mubr.bf16.gmra.mrb[0].mxu0 %v1532
  %v1589 = vpop.f32.mrb[0].mxu0
  %v1590 = vadd.f32 0.0, %v1589
  %v1591 = vpop.f32.mrb[0].mxu0
  %v1592 = vpop.f32.mrb[0].mxu0
  %v1593 = vadd.f32 0.0, %v1592
  %v1594 = vpop.f32.mrb[0].mxu0
  %1595 = vmatprep.mubr.bf16.mxu0 0
  %1596 = vmatmul.mubr.bf16.gmra.mrb[0].mxu0 %v1533
  %v1597 = vpop.f32.mrb[0].mxu0
  %v1598 = vadd.f32 0.0, %v1597
  %v1599 = vpop.f32.mrb[0].mxu0
  %v1600 = vpop.f32.mrb[0].mxu0
  %v1601 = vadd.f32 0.0, %v1600
  %v1602 = vpop.f32.mrb[0].mxu0
  %1603 = vmatprep.mubr.bf16.mxu0 0
  %1604 = vmatmul.mubr.bf16.gmra.mrb[0].mxu0 %v1534
  %v1605 = vpop.f32.mrb[0].mxu0
  %v1606 = vadd.f32 0.0, %v1605
  %v1607 = vpop.f32.mrb[0].mxu0
  %v1608 = vpop.f32.mrb[0].mxu0
  %v1609 = vadd.f32 0.0, %v1608
  %v1610 = vpop.f32.mrb[0].mxu0
  %1611 = vmatprep.mubr.bf16.mxu0 0
  %1612 = vmatmul.mubr.bf16.gmra.mrb[0].mxu0 %v1535
  %v1613 = vpop.f32.mrb[0].mxu0
  %v1614 = vadd.f32 0.0, %v1613
  %v1615 = vpop.f32.mrb[0].mxu0
  %v1616 = vpop.f32.mrb[0].mxu0
  %v1617 = vadd.f32 0.0, %v1616
  %v1618 = vpop.f32.mrb[0].mxu0
  %1619 = vmatprep.mubr.bf16.mxu0 0
  %1620 = vmatmul.mubr.bf16.gmra.mrb[0].mxu0 %v1536
  %v1621 = vpop.f32.mrb[0].mxu0
  %v1622 = vadd.f32 0.0, %v1621
  %v1623 = vpop.f32.mrb[0].mxu0
  %v1624 = vpop.f32.mrb[0].mxu0
  %v1625 = vadd.f32 0.0, %v1624
  %v1626 = vpop.f32.mrb[0].mxu0
  %1627 = vmatprep.mubr.bf16.mxu0 0
  %1628 = vmatmul.mubr.bf16.gmra.mrb[0].mxu0 %v1537
  %v1629 = vpop.f32.mrb[0].mxu0
  %v1630 = vadd.f32 0.0, %v1629
  %v1631 = vpop.f32.mrb[0].mxu0
  %v1632 = vpop.f32.mrb[0].mxu0
  %v1633 = vadd.f32 0.0, %v1632
  %v1634 = vpop.f32.mrb[0].mxu0
  %1635 = vmatprep.mubr.bf16.mxu0 0
  %1636 = vmatmul.mubr.bf16.gmra.mrb[0].mxu0 %v1538
  %v1637 = vpop.f32.mrb[0].mxu0
  %v1638 = vadd.f32 0.0, %v1637
  %v1639 = vpop.f32.mrb[0].mxu0
  %v1640 = vpop.f32.mrb[0].mxu0
  %v1641 = vadd.f32 0.0, %v1640
  %v1642 = vpop.f32.mrb[0].mxu0
  %1643 = vdwg.mxu0
  %v1644 = vadd.f32 %v1229, %v1582
  %v1645 = vadd.f32 %v1232, %v1585
  %v1646 = vadd.f32 %v1237, %v1590
  %v1647 = vadd.f32 %v1240, %v1593
  %v1648 = vadd.f32 %v1245, %v1598
  %v1649 = vadd.f32 %v1248, %v1601
  %v1650 = vadd.f32 %v1253, %v1606
  %v1651 = vadd.f32 %v1256, %v1609
  %v1652 = vadd.f32 %v1261, %v1614
  %v1653 = vadd.f32 %v1264, %v1617
  %v1654 = vadd.f32 %v1269, %v1622
  %v1655 = vadd.f32 %v1272, %v1625
  %v1656 = vadd.f32 %v1277, %v1630
  %v1657 = vadd.f32 %v1280, %v1633
  %v1658 = vadd.f32 %v1285, %v1638
  %v1659 = vadd.f32 %v1288, %v1641
  %v1660 = vld [vmem:[#allocation2 + $0xf] sm:$0xff]
  %v1661 = vld [vmem:[#allocation2 + $0x17] sm:$0xff]
  %v1662 = vld [vmem:[#allocation2 + $0x1f] sm:$0xff]
  %v1663 = vld [vmem:[#allocation2 + $0x27] sm:$0xff]
  %v1664 = vld [vmem:[#allocation2 + $0x2f] sm:$0xff]
  %v1665 = vld [vmem:[#allocation2 + $0x37] sm:$0xff]
  %v1666 = vld [vmem:[#allocation2 + $0x3f] sm:$0xff]
  %v1667 = vld [vmem:[#allocation2 + $0x47] sm:$0xff]
  %v1668 = vld [vmem:[#allocation2 + $0x4f] sm:$0xff]
  %v1669 = vld [vmem:[#allocation2 + $0x57] sm:$0xff]
  %v1670 = vld [vmem:[#allocation2 + $0x5f] sm:$0xff]
  %v1671 = vld [vmem:[#allocation2 + $0x67] sm:$0xff]
  %v1672 = vld [vmem:[#allocation2 + $0x6f] sm:$0xff]
  %v1673 = vld [vmem:[#allocation2 + $0x77] sm:$0xff]
  %v1674 = vld [vmem:[#allocation2 + $0x7f] sm:$0xff]
  %v1675 = vld [vmem:[#allocation2 + $0x87] sm:$0xff]
  %vm1676 = vcmp.ge.s32.totalorder %v505, 0
  %vm1677 = vcmp.ge.s32.totalorder %v506, 0
  %vm1678 = vcmp.ge.s32.totalorder %v507, 0
  %vm1679 = vcmp.ge.s32.totalorder %v508, 0
  %vm1680 = vcmp.ge.s32.totalorder %v509, 0
  %vm1681 = vcmp.ge.s32.totalorder %v510, 0
  %vm1682 = vcmp.ge.s32.totalorder %v511, 0
  %vm1683 = vcmp.ge.s32.totalorder %v512, 0
  %vm1684 = vcmp.ge.s32.totalorder %v513, 0
  %vm1685 = vcmp.ge.s32.totalorder %v514, 0
  %vm1686 = vcmp.ge.s32.totalorder %v515, 0
  %vm1687 = vcmp.ge.s32.totalorder %v516, 0
  %vm1688 = vcmp.ge.s32.totalorder %v517, 0
  %vm1689 = vcmp.ge.s32.totalorder %v518, 0
  %vm1690 = vcmp.ge.s32.totalorder %v519, 0
  %vm1691 = vcmp.ge.s32.totalorder %v520, 0
  %vm1692 = vcmp.lt.s32.totalorder %v505, 8
  %vm1693 = vcmp.lt.s32.totalorder %v506, 8
  %vm1694 = vcmp.lt.s32.totalorder %v507, 8
  %vm1695 = vcmp.lt.s32.totalorder %v508, 8
  %vm1696 = vcmp.lt.s32.totalorder %v509, 8
  %vm1697 = vcmp.lt.s32.totalorder %v510, 8
  %vm1698 = vcmp.lt.s32.totalorder %v511, 8
  %vm1699 = vcmp.lt.s32.totalorder %v512, 8
  %vm1700 = vcmp.lt.s32.totalorder %v513, 8
  %vm1701 = vcmp.lt.s32.totalorder %v514, 8
  %vm1702 = vcmp.lt.s32.totalorder %v515, 8
  %vm1703 = vcmp.lt.s32.totalorder %v516, 8
  %vm1704 = vcmp.lt.s32.totalorder %v517, 8
  %vm1705 = vcmp.lt.s32.totalorder %v518, 8
  %vm1706 = vcmp.lt.s32.totalorder %v519, 8
  %vm1707 = vcmp.lt.s32.totalorder %v520, 8
  %vm1708 = vmand %vm1676, %vm1692
  %vm1709 = vmand %vm1677, %vm1693
  %vm1710 = vmand %vm1678, %vm1694
  %vm1711 = vmand %vm1679, %vm1695
  %vm1712 = vmand %vm1680, %vm1696
  %vm1713 = vmand %vm1681, %vm1697
  %vm1714 = vmand %vm1682, %vm1698
  %vm1715 = vmand %vm1683, %vm1699
  %vm1716 = vmand %vm1684, %vm1700
  %vm1717 = vmand %vm1685, %vm1701
  %vm1718 = vmand %vm1686, %vm1702
  %vm1719 = vmand %vm1687, %vm1703
  %vm1720 = vmand %vm1688, %vm1704
  %vm1721 = vmand %vm1689, %vm1705
  %vm1722 = vmand %vm1690, %vm1706
  %vm1723 = vmand %vm1691, %vm1707
  %vm1724 = vmand %vm1708, %vm633
  %vm1725 = vmand %vm1709, %vm634
  %vm1726 = vmand %vm1710, %vm635
  %vm1727 = vmand %vm1711, %vm636
  %vm1728 = vmand %vm1712, %vm637
  %vm1729 = vmand %vm1713, %vm638
  %vm1730 = vmand %vm1714, %vm639
  %vm1731 = vmand %vm1715, %vm640
  %vm1732 = vmand %vm1716, %vm641
  %vm1733 = vmand %vm1717, %vm642
  %vm1734 = vmand %vm1718, %vm643
  %vm1735 = vmand %vm1719, %vm644
  %vm1736 = vmand %vm1720, %vm645
  %vm1737 = vmand %vm1721, %vm646
  %vm1738 = vmand %vm1722, %vm647
  %vm1739 = vmand %vm1723, %vm648
  %vm1740 = vmand %vm1724, %vm665
  %vm1741 = vmand %vm1725, %vm666
  %vm1742 = vmand %vm1726, %vm667
  %vm1743 = vmand %vm1727, %vm668
  %vm1744 = vmand %vm1728, %vm669
  %vm1745 = vmand %vm1729, %vm670
  %vm1746 = vmand %vm1730, %vm671
  %vm1747 = vmand %vm1731, %vm672
  %vm1748 = vmand %vm1732, %vm673
  %vm1749 = vmand %vm1733, %vm674
  %vm1750 = vmand %vm1734, %vm675
  %vm1751 = vmand %vm1735, %vm676
  %vm1752 = vmand %vm1736, %vm677
  %vm1753 = vmand %vm1737, %vm678
  %vm1754 = vmand %vm1738, %vm679
  %vm1755 = vmand %vm1739, %vm680
  %v1756 = vsel %vm1740, 1, 0
  %v1757 = vsel %vm1741, 1, 0
  %v1758 = vsel %vm1742, 1, 0
  %v1759 = vsel %vm1743, 1, 0
  %v1760 = vsel %vm1744, 1, 0
  %v1761 = vsel %vm1745, 1, 0
  %v1762 = vsel %vm1746, 1, 0
  %v1763 = vsel %vm1747, 1, 0
  %v1764 = vsel %vm1748, 1, 0
  %v1765 = vsel %vm1749, 1, 0
  %v1766 = vsel %vm1750, 1, 0
  %v1767 = vsel %vm1751, 1, 0
  %v1768 = vsel %vm1752, 1, 0
  %v1769 = vsel %vm1753, 1, 0
  %v1770 = vsel %vm1754, 1, 0
  %v1771 = vsel %vm1755, 1, 0
  %v1772 = vcvt.s32.f32 %v1756
  %v1773 = vcvt.s32.f32 %v1757
  %v1774 = vcvt.s32.f32 %v1758
  %v1775 = vcvt.s32.f32 %v1759
  %v1776 = vcvt.s32.f32 %v1760
  %v1777 = vcvt.s32.f32 %v1761
  %v1778 = vcvt.s32.f32 %v1762
  %v1779 = vcvt.s32.f32 %v1763
  %v1780 = vcvt.s32.f32 %v1764
  %v1781 = vcvt.s32.f32 %v1765
  %v1782 = vcvt.s32.f32 %v1766
  %v1783 = vcvt.s32.f32 %v1767
  %v1784 = vcvt.s32.f32 %v1768
  %v1785 = vcvt.s32.f32 %v1769
  %v1786 = vcvt.s32.f32 %v1770
  %v1787 = vcvt.s32.f32 %v1771
  %1789 = vset.pattern.permute.xlu0 0
  %1790 = vperm.xlu0 %1789, %v1772
  %v1791 = vpop.permute.xlu0 %1790
  %1794 = vset.pattern.permute.xlu0 0
  %1795 = vperm.xlu0 %1794, %v1773
  %v1796 = vpop.permute.xlu0 %1795
  %1799 = vset.pattern.permute.xlu0 0
  %1800 = vperm.xlu0 %1799, %v1774
  %v1801 = vpop.permute.xlu0 %1800
  %1804 = vset.pattern.permute.xlu0 0
  %1805 = vperm.xlu0 %1804, %v1775
  %v1806 = vpop.permute.xlu0 %1805
  %1809 = vset.pattern.permute.xlu0 0
  %1810 = vperm.xlu0 %1809, %v1776
  %v1811 = vpop.permute.xlu0 %1810
  %1814 = vset.pattern.permute.xlu0 0
  %1815 = vperm.xlu0 %1814, %v1777
  %v1816 = vpop.permute.xlu0 %1815
  %1819 = vset.pattern.permute.xlu0 0
  %1820 = vperm.xlu0 %1819, %v1778
  %v1821 = vpop.permute.xlu0 %1820
  %1824 = vset.pattern.permute.xlu0 0
  %1825 = vperm.xlu0 %1824, %v1779
  %v1826 = vpop.permute.xlu0 %1825
  %1829 = vset.pattern.permute.xlu0 0
  %1830 = vperm.xlu0 %1829, %v1780
  %v1831 = vpop.permute.xlu0 %1830
  %1834 = vset.pattern.permute.xlu0 0
  %1835 = vperm.xlu0 %1834, %v1781
  %v1836 = vpop.permute.xlu0 %1835
  %1839 = vset.pattern.permute.xlu0 0
  %1840 = vperm.xlu0 %1839, %v1782
  %v1841 = vpop.permute.xlu0 %1840
  %1844 = vset.pattern.permute.xlu0 0
  %1845 = vperm.xlu0 %1844, %v1783
  %v1846 = vpop.permute.xlu0 %1845
  %1849 = vset.pattern.permute.xlu0 0
  %1850 = vperm.xlu0 %1849, %v1784
  %v1851 = vpop.permute.xlu0 %1850
  %1854 = vset.pattern.permute.xlu0 0
  %1855 = vperm.xlu0 %1854, %v1785
  %v1856 = vpop.permute.xlu0 %1855
  %1859 = vset.pattern.permute.xlu0 0
  %1860 = vperm.xlu0 %1859, %v1786
  %v1861 = vpop.permute.xlu0 %1860
  %1864 = vset.pattern.permute.xlu0 0
  %1865 = vperm.xlu0 %1864, %v1787
  %v1866 = vpop.permute.xlu0 %1865
  %v1868 = vmul.f32 %v1660, %v1791
  %v1869 = vmul.f32 %v1661, %v1796
  %v1870 = vmul.f32 %v1662, %v1801
  %v1871 = vmul.f32 %v1663, %v1806
  %v1872 = vmul.f32 %v1664, %v1811
  %v1873 = vmul.f32 %v1665, %v1816
  %v1874 = vmul.f32 %v1666, %v1821
  %v1875 = vmul.f32 %v1667, %v1826
  %v1876 = vmul.f32 %v1668, %v1831
  %v1877 = vmul.f32 %v1669, %v1836
  %v1878 = vmul.f32 %v1670, %v1841
  %v1879 = vmul.f32 %v1671, %v1846
  %v1880 = vmul.f32 %v1672, %v1851
  %v1881 = vmul.f32 %v1673, %v1856
  %v1882 = vmul.f32 %v1674, %v1861
  %v1883 = vmul.f32 %v1675, %v1866
  %v1884 = vld [vmem:[%s4 + $0x180] sm:$0xff]
  %v1885 = vld [vmem:[%s4 + $0x188] sm:$0xff]
  %v1886 = vld [vmem:[%s4 + $0x190] sm:$0xff]
  %v1887 = vld [vmem:[%s4 + $0x198] sm:$0xff]
  %v1888 = vld [vmem:[%s4 + $0x1a0] sm:$0xff]
  %v1889 = vld [vmem:[%s4 + $0x1a8] sm:$0xff]
  %v1890 = vld [vmem:[%s4 + $0x1b0] sm:$0xff]
  %v1891 = vld [vmem:[%s4 + $0x1b8] sm:$0xff]
  %v1892 = vld [vmem:[%s4 + $0x1c0] sm:$0xff]
  %v1893 = vld [vmem:[%s4 + $0x1c8] sm:$0xff]
  %v1894 = vld [vmem:[%s4 + $0x1d0] sm:$0xff]
  %v1895 = vld [vmem:[%s4 + $0x1d8] sm:$0xff]
  %v1896 = vld [vmem:[%s4 + $0x1e0] sm:$0xff]
  %v1897 = vld [vmem:[%s4 + $0x1e8] sm:$0xff]
  %v1898 = vld [vmem:[%s4 + $0x1f0] sm:$0xff]
  %v1899 = vld [vmem:[%s4 + $0x1f8] sm:$0xff]
  %v1900 = vpack.c.bf16 %v1869, %v1868
  %v1901 = vpack.c.bf16 %v1871, %v1870
  %v1902 = vpack.c.bf16 %v1873, %v1872
  %v1903 = vpack.c.bf16 %v1875, %v1874
  %v1904 = vpack.c.bf16 %v1877, %v1876
  %v1905 = vpack.c.bf16 %v1879, %v1878
  %v1906 = vpack.c.bf16 %v1881, %v1880
  %v1907 = vpack.c.bf16 %v1883, %v1882
  %v1908 = vpack.c.bf16 %v1885, %v1884
  %v1909 = vpack.c.bf16 %v1887, %v1886
  %v1910 = vpack.c.bf16 %v1889, %v1888
  %v1911 = vpack.c.bf16 %v1891, %v1890
  %v1912 = vpack.c.bf16 %v1893, %v1892
  %v1913 = vpack.c.bf16 %v1895, %v1894
  %v1914 = vpack.c.bf16 %v1897, %v1896
  %v1915 = vpack.c.bf16 %v1899, %v1898
  %1916 = vmatprep.subr.bf16.mxu0 0
  %1917 = vmatpush1.bf16.msra.mxu0 %v1908
  %1918 = vmatprep.subr.bf16.mxu0 0
  %1919 = vmatpush1.bf16.msra.mxu0 %v1909
  %1920 = vmatprep.subr.bf16.mxu0 0
  %1921 = vmatpush1.bf16.msra.mxu0 %v1910
  %1922 = vmatprep.subr.bf16.mxu0 0
  %1923 = vmatpush1.bf16.msra.mxu0 %v1911
  %1924 = vmatprep.subr.bf16.mxu0 0
  %1925 = vmatpush1.bf16.msra.mxu0 %v1912
  %1926 = vmatprep.subr.bf16.mxu0 0
  %1927 = vmatpush1.bf16.msra.mxu0 %v1913
  %1928 = vmatprep.subr.bf16.mxu0 0
  %1929 = vmatpush1.bf16.msra.mxu0 %v1914
  %1930 = vmatprep.subr.bf16.mxu0 0
  %1931 = vmatpush1.bf16.msra.mxu0 %v1915
  %1932 = vmatprep.subr.bf16.mxu0 0
  %1933 = vmatpush1.bf16.msra.mxu0 0
  %1934 = vmatprep.subr.bf16.mxu0 0
  %1935 = vmatpush1.bf16.msra.mxu0 0
  %1936 = vmatprep.subr.bf16.mxu0 0
  %1937 = vmatpush1.bf16.msra.mxu0 0
  %1938 = vmatprep.subr.bf16.mxu0 0
  %1939 = vmatpush1.bf16.msra.mxu0 0
  %1940 = vmatprep.subr.bf16.mxu0 0
  %1941 = vmatpush1.bf16.msra.mxu0 0
  %1942 = vmatprep.subr.bf16.mxu0 0
  %1943 = vmatpush1.bf16.msra.mxu0 0
  %1944 = vmatprep.subr.bf16.mxu0 0
  %1945 = vmatpush1.bf16.msra.mxu0 0
  %1946 = vmatprep.subr.bf16.mxu0 0
  %1947 = vmatpush1.bf16.msra.mxu0 0
  %1948 = vmatprep.mubr.bf16.mxu0 0
  %1949 = vmatmul.mubr.bf16.gmra.mrb[0].mxu0 %v1900
  %v1950 = vpop.f32.mrb[0].mxu0
  %v1951 = vadd.f32 0.0, %v1950
  %v1952 = vpop.f32.mrb[0].mxu0
  %v1953 = vpop.f32.mrb[0].mxu0
  %v1954 = vadd.f32 0.0, %v1953
  %v1955 = vpop.f32.mrb[0].mxu0
  %1956 = vmatprep.mubr.bf16.mxu0 0
  %1957 = vmatmul.mubr.bf16.gmra.mrb[0].mxu0 %v1901
  %v1958 = vpop.f32.mrb[0].mxu0
  %v1959 = vadd.f32 0.0, %v1958
  %v1960 = vpop.f32.mrb[0].mxu0
  %v1961 = vpop.f32.mrb[0].mxu0
  %v1962 = vadd.f32 0.0, %v1961
  %v1963 = vpop.f32.mrb[0].mxu0
  %1964 = vmatprep.mubr.bf16.mxu0 0
  %1965 = vmatmul.mubr.bf16.gmra.mrb[0].mxu0 %v1902
  %v1966 = vpop.f32.mrb[0].mxu0
  %v1967 = vadd.f32 0.0, %v1966
  %v1968 = vpop.f32.mrb[0].mxu0
  %v1969 = vpop.f32.mrb[0].mxu0
  %v1970 = vadd.f32 0.0, %v1969
  %v1971 = vpop.f32.mrb[0].mxu0
  %1972 = vmatprep.mubr.bf16.mxu0 0
  %1973 = vmatmul.mubr.bf16.gmra.mrb[0].mxu0 %v1903
  %v1974 = vpop.f32.mrb[0].mxu0
  %v1975 = vadd.f32 0.0, %v1974
  %v1976 = vpop.f32.mrb[0].mxu0
  %v1977 = vpop.f32.mrb[0].mxu0
  %v1978 = vadd.f32 0.0, %v1977
  %v1979 = vpop.f32.mrb[0].mxu0
  %1980 = vmatprep.mubr.bf16.mxu0 0
  %1981 = vmatmul.mubr.bf16.gmra.mrb[0].mxu0 %v1904
  %v1982 = vpop.f32.mrb[0].mxu0
  %v1983 = vadd.f32 0.0, %v1982
  %v1984 = vpop.f32.mrb[0].mxu0
  %v1985 = vpop.f32.mrb[0].mxu0
  %v1986 = vadd.f32 0.0, %v1985
  %v1987 = vpop.f32.mrb[0].mxu0
  %1988 = vmatprep.mubr.bf16.mxu0 0
  %1989 = vmatmul.mubr.bf16.gmra.mrb[0].mxu0 %v1905
  %v1990 = vpop.f32.mrb[0].mxu0
  %v1991 = vadd.f32 0.0, %v1990
  %v1992 = vpop.f32.mrb[0].mxu0
  %v1993 = vpop.f32.mrb[0].mxu0
  %v1994 = vadd.f32 0.0, %v1993
  %v1995 = vpop.f32.mrb[0].mxu0
  %1996 = vmatprep.mubr.bf16.mxu0 0
  %1997 = vmatmul.mubr.bf16.gmra.mrb[0].mxu0 %v1906
  %v1998 = vpop.f32.mrb[0].mxu0
  %v1999 = vadd.f32 0.0, %v1998
  %v2000 = vpop.f32.mrb[0].mxu0
  %v2001 = vpop.f32.mrb[0].mxu0
  %v2002 = vadd.f32 0.0, %v2001
  %v2003 = vpop.f32.mrb[0].mxu0
  %2004 = vmatprep.mubr.bf16.mxu0 0
  %2005 = vmatmul.mubr.bf16.gmra.mrb[0].mxu0 %v1907
  %v2006 = vpop.f32.mrb[0].mxu0
  %v2007 = vadd.f32 0.0, %v2006
  %v2008 = vpop.f32.mrb[0].mxu0
  %v2009 = vpop.f32.mrb[0].mxu0
  %v2010 = vadd.f32 0.0, %v2009
  %v2011 = vpop.f32.mrb[0].mxu0
  %2012 = vdwg.mxu0
  %v2013 = vadd.f32 %v1644, %v1951
  %v2014 = vadd.f32 %v1645, %v1954
  %v2015 = vadd.f32 %v1646, %v1959
  %v2016 = vadd.f32 %v1647, %v1962
  %v2017 = vadd.f32 %v1648, %v1967
  %v2018 = vadd.f32 %v1649, %v1970
  %v2019 = vadd.f32 %v1650, %v1975
  %v2020 = vadd.f32 %v1651, %v1978
  %v2021 = vadd.f32 %v1652, %v1983
  %v2022 = vadd.f32 %v1653, %v1986
  %v2023 = vadd.f32 %v1654, %v1991
  %v2024 = vadd.f32 %v1655, %v1994
  %v2025 = vadd.f32 %v1656, %v1999
  %v2026 = vadd.f32 %v1657, %v2002
  %v2027 = vadd.f32 %v1658, %v2007
  %v2028 = vadd.f32 %v1659, %v2010
  %v2029 = vld [vmem:[#allocation2 + $0x10] sm:$0xff]
  %v2030 = vld [vmem:[#allocation2 + $0x18] sm:$0xff]
  %v2031 = vld [vmem:[#allocation2 + $0x20] sm:$0xff]
  %v2032 = vld [vmem:[#allocation2 + $0x28] sm:$0xff]
  %v2033 = vld [vmem:[#allocation2 + $0x30] sm:$0xff]
  %v2034 = vld [vmem:[#allocation2 + $0x38] sm:$0xff]
  %v2035 = vld [vmem:[#allocation2 + $0x40] sm:$0xff]
  %v2036 = vld [vmem:[#allocation2 + $0x48] sm:$0xff]
  %v2037 = vld [vmem:[#allocation2 + $0x50] sm:$0xff]
  %v2038 = vld [vmem:[#allocation2 + $0x58] sm:$0xff]
  %v2039 = vld [vmem:[#allocation2 + $0x60] sm:$0xff]
  %v2040 = vld [vmem:[#allocation2 + $0x68] sm:$0xff]
  %v2041 = vld [vmem:[#allocation2 + $0x70] sm:$0xff]
  %v2042 = vld [vmem:[#allocation2 + $0x78] sm:$0xff]
  %v2043 = vld [vmem:[#allocation2 + $0x80] sm:$0xff]
  %v2044 = vld [vmem:[#allocation2 + $0x88] sm:$0xff]
  %vm2045 = vmand %vm1708, %vm873
  %vm2046 = vmand %vm1709, %vm874
  %vm2047 = vmand %vm1710, %vm875
  %vm2048 = vmand %vm1711, %vm876
  %vm2049 = vmand %vm1712, %vm877
  %vm2050 = vmand %vm1713, %vm878
  %vm2051 = vmand %vm1714, %vm879
  %vm2052 = vmand %vm1715, %vm880
  %vm2053 = vmand %vm1716, %vm881
  %vm2054 = vmand %vm1717, %vm882
  %vm2055 = vmand %vm1718, %vm883
  %vm2056 = vmand %vm1719, %vm884
  %vm2057 = vmand %vm1720, %vm885
  %vm2058 = vmand %vm1721, %vm886
  %vm2059 = vmand %vm1722, %vm887
  %vm2060 = vmand %vm1723, %vm888
  %vm2061 = vmand %vm2045, %vm905
  %vm2062 = vmand %vm2046, %vm906
  %vm2063 = vmand %vm2047, %vm907
  %vm2064 = vmand %vm2048, %vm908
  %vm2065 = vmand %vm2049, %vm909
  %vm2066 = vmand %vm2050, %vm910
  %vm2067 = vmand %vm2051, %vm911
  %vm2068 = vmand %vm2052, %vm912
  %vm2069 = vmand %vm2053, %vm913
  %vm2070 = vmand %vm2054, %vm914
  %vm2071 = vmand %vm2055, %vm915
  %vm2072 = vmand %vm2056, %vm916
  %vm2073 = vmand %vm2057, %vm917
  %vm2074 = vmand %vm2058, %vm918
  %vm2075 = vmand %vm2059, %vm919
  %vm2076 = vmand %vm2060, %vm920
  %v2077 = vsel %vm2061, 1, 0
  %v2078 = vsel %vm2062, 1, 0
  %v2079 = vsel %vm2063, 1, 0
  %v2080 = vsel %vm2064, 1, 0
  %v2081 = vsel %vm2065, 1, 0
  %v2082 = vsel %vm2066, 1, 0
  %v2083 = vsel %vm2067, 1, 0
  %v2084 = vsel %vm2068, 1, 0
  %v2085 = vsel %vm2069, 1, 0
  %v2086 = vsel %vm2070, 1, 0
  %v2087 = vsel %vm2071, 1, 0
  %v2088 = vsel %vm2072, 1, 0
  %v2089 = vsel %vm2073, 1, 0
  %v2090 = vsel %vm2074, 1, 0
  %v2091 = vsel %vm2075, 1, 0
  %v2092 = vsel %vm2076, 1, 0
  %v2093 = vcvt.s32.f32 %v2077
  %v2094 = vcvt.s32.f32 %v2078
  %v2095 = vcvt.s32.f32 %v2079
  %v2096 = vcvt.s32.f32 %v2080
  %v2097 = vcvt.s32.f32 %v2081
  %v2098 = vcvt.s32.f32 %v2082
  %v2099 = vcvt.s32.f32 %v2083
  %v2100 = vcvt.s32.f32 %v2084
  %v2101 = vcvt.s32.f32 %v2085
  %v2102 = vcvt.s32.f32 %v2086
  %v2103 = vcvt.s32.f32 %v2087
  %v2104 = vcvt.s32.f32 %v2088
  %v2105 = vcvt.s32.f32 %v2089
  %v2106 = vcvt.s32.f32 %v2090
  %v2107 = vcvt.s32.f32 %v2091
  %v2108 = vcvt.s32.f32 %v2092
  %2110 = vset.pattern.permute.xlu0 0
  %2111 = vperm.xlu0 %2110, %v2093
  %v2112 = vpop.permute.xlu0 %2111
  %2115 = vset.pattern.permute.xlu0 0
  %2116 = vperm.xlu0 %2115, %v2094
  %v2117 = vpop.permute.xlu0 %2116
  %2120 = vset.pattern.permute.xlu0 0
  %2121 = vperm.xlu0 %2120, %v2095
  %v2122 = vpop.permute.xlu0 %2121
  %2125 = vset.pattern.permute.xlu0 0
  %2126 = vperm.xlu0 %2125, %v2096
  %v2127 = vpop.permute.xlu0 %2126
  %2130 = vset.pattern.permute.xlu0 0
  %2131 = vperm.xlu0 %2130, %v2097
  %v2132 = vpop.permute.xlu0 %2131
  %2135 = vset.pattern.permute.xlu0 0
  %2136 = vperm.xlu0 %2135, %v2098
  %v2137 = vpop.permute.xlu0 %2136
  %2140 = vset.pattern.permute.xlu0 0
  %2141 = vperm.xlu0 %2140, %v2099
  %v2142 = vpop.permute.xlu0 %2141
  %2145 = vset.pattern.permute.xlu0 0
  %2146 = vperm.xlu0 %2145, %v2100
  %v2147 = vpop.permute.xlu0 %2146
  %2150 = vset.pattern.permute.xlu0 0
  %2151 = vperm.xlu0 %2150, %v2101
  %v2152 = vpop.permute.xlu0 %2151
  %2155 = vset.pattern.permute.xlu0 0
  %2156 = vperm.xlu0 %2155, %v2102
  %v2157 = vpop.permute.xlu0 %2156
  %2160 = vset.pattern.permute.xlu0 0
  %2161 = vperm.xlu0 %2160, %v2103
  %v2162 = vpop.permute.xlu0 %2161
  %2165 = vset.pattern.permute.xlu0 0
  %2166 = vperm.xlu0 %2165, %v2104
  %v2167 = vpop.permute.xlu0 %2166
  %2170 = vset.pattern.permute.xlu0 0
  %2171 = vperm.xlu0 %2170, %v2105
  %v2172 = vpop.permute.xlu0 %2171
  %2175 = vset.pattern.permute.xlu0 0
  %2176 = vperm.xlu0 %2175, %v2106
  %v2177 = vpop.permute.xlu0 %2176
  %2180 = vset.pattern.permute.xlu0 0
  %2181 = vperm.xlu0 %2180, %v2107
  %v2182 = vpop.permute.xlu0 %2181
  %2185 = vset.pattern.permute.xlu0 0
  %2186 = vperm.xlu0 %2185, %v2108
  %v2187 = vpop.permute.xlu0 %2186
  %v2189 = vmul.f32 %v2029, %v2112
  %v2190 = vmul.f32 %v2030, %v2117
  %v2191 = vmul.f32 %v2031, %v2122
  %v2192 = vmul.f32 %v2032, %v2127
  %v2193 = vmul.f32 %v2033, %v2132
  %v2194 = vmul.f32 %v2034, %v2137
  %v2195 = vmul.f32 %v2035, %v2142
  %v2196 = vmul.f32 %v2036, %v2147
  %v2197 = vmul.f32 %v2037, %v2152
  %v2198 = vmul.f32 %v2038, %v2157
  %v2199 = vmul.f32 %v2039, %v2162
  %v2200 = vmul.f32 %v2040, %v2167
  %v2201 = vmul.f32 %v2041, %v2172
  %v2202 = vmul.f32 %v2042, %v2177
  %v2203 = vmul.f32 %v2043, %v2182
  %v2204 = vmul.f32 %v2044, %v2187
  %v2205 = vld [vmem:[%s4 + $0x200] sm:$0xff]
  %v2206 = vld [vmem:[%s4 + $0x208] sm:$0xff]
  %v2207 = vld [vmem:[%s4 + $0x210] sm:$0xff]
  %v2208 = vld [vmem:[%s4 + $0x218] sm:$0xff]
  %v2209 = vld [vmem:[%s4 + $0x220] sm:$0xff]
  %v2210 = vld [vmem:[%s4 + $0x228] sm:$0xff]
  %v2211 = vld [vmem:[%s4 + $0x230] sm:$0xff]
  %v2212 = vld [vmem:[%s4 + $0x238] sm:$0xff]
  %v2213 = vld [vmem:[%s4 + $0x240] sm:$0xff]
  %v2214 = vld [vmem:[%s4 + $0x248] sm:$0xff]
  %v2215 = vld [vmem:[%s4 + $0x250] sm:$0xff]
  %v2216 = vld [vmem:[%s4 + $0x258] sm:$0xff]
  %v2217 = vld [vmem:[%s4 + $0x260] sm:$0xff]
  %v2218 = vld [vmem:[%s4 + $0x268] sm:$0xff]
  %v2219 = vld [vmem:[%s4 + $0x270] sm:$0xff]
  %v2220 = vld [vmem:[%s4 + $0x278] sm:$0xff]
  %v2221 = vpack.c.bf16 %v2190, %v2189
  %v2222 = vpack.c.bf16 %v2192, %v2191
  %v2223 = vpack.c.bf16 %v2194, %v2193
  %v2224 = vpack.c.bf16 %v2196, %v2195
  %v2225 = vpack.c.bf16 %v2198, %v2197
  %v2226 = vpack.c.bf16 %v2200, %v2199
  %v2227 = vpack.c.bf16 %v2202, %v2201
  %v2228 = vpack.c.bf16 %v2204, %v2203
  %v2229 = vpack.c.bf16 %v2206, %v2205
  %v2230 = vpack.c.bf16 %v2208, %v2207
  %v2231 = vpack.c.bf16 %v2210, %v2209
  %v2232 = vpack.c.bf16 %v2212, %v2211
  %v2233 = vpack.c.bf16 %v2214, %v2213
  %v2234 = vpack.c.bf16 %v2216, %v2215
  %v2235 = vpack.c.bf16 %v2218, %v2217
  %v2236 = vpack.c.bf16 %v2220, %v2219
  %2237 = vmatprep.subr.bf16.mxu0 0
  %2238 = vmatpush1.bf16.msra.mxu0 %v2229
  %2239 = vmatprep.subr.bf16.mxu0 0
  %2240 = vmatpush1.bf16.msra.mxu0 %v2230
  %2241 = vmatprep.subr.bf16.mxu0 0
  %2242 = vmatpush1.bf16.msra.mxu0 %v2231
  %2243 = vmatprep.subr.bf16.mxu0 0
  %2244 = vmatpush1.bf16.msra.mxu0 %v2232
  %2245 = vmatprep.subr.bf16.mxu0 0
  %2246 = vmatpush1.bf16.msra.mxu0 %v2233
  %2247 = vmatprep.subr.bf16.mxu0 0
  %2248 = vmatpush1.bf16.msra.mxu0 %v2234
  %2249 = vmatprep.subr.bf16.mxu0 0
  %2250 = vmatpush1.bf16.msra.mxu0 %v2235
  %2251 = vmatprep.subr.bf16.mxu0 0
  %2252 = vmatpush1.bf16.msra.mxu0 %v2236
  %2253 = vmatprep.subr.bf16.mxu0 0
  %2254 = vmatpush1.bf16.msra.mxu0 0
  %2255 = vmatprep.subr.bf16.mxu0 0
  %2256 = vmatpush1.bf16.msra.mxu0 0
  %2257 = vmatprep.subr.bf16.mxu0 0
  %2258 = vmatpush1.bf16.msra.mxu0 0
  %2259 = vmatprep.subr.bf16.mxu0 0
  %2260 = vmatpush1.bf16.msra.mxu0 0
  %2261 = vmatprep.subr.bf16.mxu0 0
  %2262 = vmatpush1.bf16.msra.mxu0 0
  %2263 = vmatprep.subr.bf16.mxu0 0
  %2264 = vmatpush1.bf16.msra.mxu0 0
  %2265 = vmatprep.subr.bf16.mxu0 0
  %2266 = vmatpush1.bf16.msra.mxu0 0
  %2267 = vmatprep.subr.bf16.mxu0 0
  %2268 = vmatpush1.bf16.msra.mxu0 0
  %2269 = vmatprep.mubr.bf16.mxu0 0
  %2270 = vmatmul.mubr.bf16.gmra.mrb[0].mxu0 %v2221
  %v2271 = vpop.f32.mrb[0].mxu0
  %v2272 = vadd.f32 0.0, %v2271
  %v2273 = vpop.f32.mrb[0].mxu0
  %v2274 = vpop.f32.mrb[0].mxu0
  %v2275 = vadd.f32 0.0, %v2274
  %v2276 = vpop.f32.mrb[0].mxu0
  %2277 = vmatprep.mubr.bf16.mxu0 0
  %2278 = vmatmul.mubr.bf16.gmra.mrb[0].mxu0 %v2222
  %v2279 = vpop.f32.mrb[0].mxu0
  %v2280 = vadd.f32 0.0, %v2279
  %v2281 = vpop.f32.mrb[0].mxu0
  %v2282 = vpop.f32.mrb[0].mxu0
  %v2283 = vadd.f32 0.0, %v2282
  %v2284 = vpop.f32.mrb[0].mxu0
  %2285 = vmatprep.mubr.bf16.mxu0 0
  %2286 = vmatmul.mubr.bf16.gmra.mrb[0].mxu0 %v2223
  %v2287 = vpop.f32.mrb[0].mxu0
  %v2288 = vadd.f32 0.0, %v2287
  %v2289 = vpop.f32.mrb[0].mxu0
  %v2290 = vpop.f32.mrb[0].mxu0
  %v2291 = vadd.f32 0.0, %v2290
  %v2292 = vpop.f32.mrb[0].mxu0
  %2293 = vmatprep.mubr.bf16.mxu0 0
  %2294 = vmatmul.mubr.bf16.gmra.mrb[0].mxu0 %v2224
  %v2295 = vpop.f32.mrb[0].mxu0
  %v2296 = vadd.f32 0.0, %v2295
  %v2297 = vpop.f32.mrb[0].mxu0
  %v2298 = vpop.f32.mrb[0].mxu0
  %v2299 = vadd.f32 0.0, %v2298
  %v2300 = vpop.f32.mrb[0].mxu0
  %2301 = vmatprep.mubr.bf16.mxu0 0
  %2302 = vmatmul.mubr.bf16.gmra.mrb[0].mxu0 %v2225
  %v2303 = vpop.f32.mrb[0].mxu0
  %v2304 = vadd.f32 0.0, %v2303
  %v2305 = vpop.f32.mrb[0].mxu0
  %v2306 = vpop.f32.mrb[0].mxu0
  %v2307 = vadd.f32 0.0, %v2306
  %v2308 = vpop.f32.mrb[0].mxu0
  %2309 = vmatprep.mubr.bf16.mxu0 0
  %2310 = vmatmul.mubr.bf16.gmra.mrb[0].mxu0 %v2226
  %v2311 = vpop.f32.mrb[0].mxu0
  %v2312 = vadd.f32 0.0, %v2311
  %v2313 = vpop.f32.mrb[0].mxu0
  %v2314 = vpop.f32.mrb[0].mxu0
  %v2315 = vadd.f32 0.0, %v2314
  %v2316 = vpop.f32.mrb[0].mxu0
  %2317 = vmatprep.mubr.bf16.mxu0 0
  %2318 = vmatmul.mubr.bf16.gmra.mrb[0].mxu0 %v2227
  %v2319 = vpop.f32.mrb[0].mxu0
  %v2320 = vadd.f32 0.0, %v2319
  %v2321 = vpop.f32.mrb[0].mxu0
  %v2322 = vpop.f32.mrb[0].mxu0
  %v2323 = vadd.f32 0.0, %v2322
  %v2324 = vpop.f32.mrb[0].mxu0
  %2325 = vmatprep.mubr.bf16.mxu0 0
  %2326 = vmatmul.mubr.bf16.gmra.mrb[0].mxu0 %v2228
  %v2327 = vpop.f32.mrb[0].mxu0
  %v2328 = vadd.f32 0.0, %v2327
  %v2329 = vpop.f32.mrb[0].mxu0
  %v2330 = vpop.f32.mrb[0].mxu0
  %v2331 = vadd.f32 0.0, %v2330
  %v2332 = vpop.f32.mrb[0].mxu0
  %2333 = vdwg.mxu0
  %v2334 = vadd.f32 %v2013, %v2272
  %v2335 = vadd.f32 %v2014, %v2275
  %v2336 = vadd.f32 %v2015, %v2280
  %v2337 = vadd.f32 %v2016, %v2283
  %v2338 = vadd.f32 %v2017, %v2288
  %v2339 = vadd.f32 %v2018, %v2291
  %v2340 = vadd.f32 %v2019, %v2296
  %v2341 = vadd.f32 %v2020, %v2299
  %v2342 = vadd.f32 %v2021, %v2304
  %v2343 = vadd.f32 %v2022, %v2307
  %v2344 = vadd.f32 %v2023, %v2312
  %v2345 = vadd.f32 %v2024, %v2315
  %v2346 = vadd.f32 %v2025, %v2320
  %v2347 = vadd.f32 %v2026, %v2323
  %v2348 = vadd.f32 %v2027, %v2328
  %v2349 = vadd.f32 %v2028, %v2331
  %v2350 = vld [vmem:[#allocation2 + $0x11] sm:$0xff]
  %v2351 = vld [vmem:[#allocation2 + $0x19] sm:$0xff]
  %v2352 = vld [vmem:[#allocation2 + $0x21] sm:$0xff]
  %v2353 = vld [vmem:[#allocation2 + $0x29] sm:$0xff]
  %v2354 = vld [vmem:[#allocation2 + $0x31] sm:$0xff]
  %v2355 = vld [vmem:[#allocation2 + $0x39] sm:$0xff]
  %v2356 = vld [vmem:[#allocation2 + $0x41] sm:$0xff]
  %v2357 = vld [vmem:[#allocation2 + $0x49] sm:$0xff]
  %v2358 = vld [vmem:[#allocation2 + $0x51] sm:$0xff]
  %v2359 = vld [vmem:[#allocation2 + $0x59] sm:$0xff]
  %v2360 = vld [vmem:[#allocation2 + $0x61] sm:$0xff]
  %v2361 = vld [vmem:[#allocation2 + $0x69] sm:$0xff]
  %v2362 = vld [vmem:[#allocation2 + $0x71] sm:$0xff]
  %v2363 = vld [vmem:[#allocation2 + $0x79] sm:$0xff]
  %v2364 = vld [vmem:[#allocation2 + $0x81] sm:$0xff]
  %v2365 = vld [vmem:[#allocation2 + $0x89] sm:$0xff]
  %vm2366 = vmand %vm1708, %vm1323
  %vm2367 = vmand %vm1709, %vm1324
  %vm2368 = vmand %vm1710, %vm1325
  %vm2369 = vmand %vm1711, %vm1326
  %vm2370 = vmand %vm1712, %vm1327
  %vm2371 = vmand %vm1713, %vm1328
  %vm2372 = vmand %vm1714, %vm1329
  %vm2373 = vmand %vm1715, %vm1330
  %vm2374 = vmand %vm1716, %vm1331
  %vm2375 = vmand %vm1717, %vm1332
  %vm2376 = vmand %vm1718, %vm1333
  %vm2377 = vmand %vm1719, %vm1334
  %vm2378 = vmand %vm1720, %vm1335
  %vm2379 = vmand %vm1721, %vm1336
  %vm2380 = vmand %vm1722, %vm1337
  %vm2381 = vmand %vm1723, %vm1338
  %vm2382 = vmand %vm2366, %vm1355
  %vm2383 = vmand %vm2367, %vm1356
  %vm2384 = vmand %vm2368, %vm1357
  %vm2385 = vmand %vm2369, %vm1358
  %vm2386 = vmand %vm2370, %vm1359
  %vm2387 = vmand %vm2371, %vm1360
  %vm2388 = vmand %vm2372, %vm1361
  %vm2389 = vmand %vm2373, %vm1362
  %vm2390 = vmand %vm2374, %vm1363
  %vm2391 = vmand %vm2375, %vm1364
  %vm2392 = vmand %vm2376, %vm1365
  %vm2393 = vmand %vm2377, %vm1366
  %vm2394 = vmand %vm2378, %vm1367
  %vm2395 = vmand %vm2379, %vm1368
  %vm2396 = vmand %vm2380, %vm1369
  %vm2397 = vmand %vm2381, %vm1370
  %v2398 = vsel %vm2382, 1, 0
  %v2399 = vsel %vm2383, 1, 0
  %v2400 = vsel %vm2384, 1, 0
  %v2401 = vsel %vm2385, 1, 0
  %v2402 = vsel %vm2386, 1, 0
  %v2403 = vsel %vm2387, 1, 0
  %v2404 = vsel %vm2388, 1, 0
  %v2405 = vsel %vm2389, 1, 0
  %v2406 = vsel %vm2390, 1, 0
  %v2407 = vsel %vm2391, 1, 0
  %v2408 = vsel %vm2392, 1, 0
  %v2409 = vsel %vm2393, 1, 0
  %v2410 = vsel %vm2394, 1, 0
  %v2411 = vsel %vm2395, 1, 0
  %v2412 = vsel %vm2396, 1, 0
  %v2413 = vsel %vm2397, 1, 0
  %v2414 = vcvt.s32.f32 %v2398
  %v2415 = vcvt.s32.f32 %v2399
  %v2416 = vcvt.s32.f32 %v2400
  %v2417 = vcvt.s32.f32 %v2401
  %v2418 = vcvt.s32.f32 %v2402
  %v2419 = vcvt.s32.f32 %v2403
  %v2420 = vcvt.s32.f32 %v2404
  %v2421 = vcvt.s32.f32 %v2405
  %v2422 = vcvt.s32.f32 %v2406
  %v2423 = vcvt.s32.f32 %v2407
  %v2424 = vcvt.s32.f32 %v2408
  %v2425 = vcvt.s32.f32 %v2409
  %v2426 = vcvt.s32.f32 %v2410
  %v2427 = vcvt.s32.f32 %v2411
  %v2428 = vcvt.s32.f32 %v2412
  %v2429 = vcvt.s32.f32 %v2413
  %2431 = vset.pattern.permute.xlu0 0
  %2432 = vperm.xlu0 %2431, %v2414
  %v2433 = vpop.permute.xlu0 %2432
  %2436 = vset.pattern.permute.xlu0 0
  %2437 = vperm.xlu0 %2436, %v2415
  %v2438 = vpop.permute.xlu0 %2437
  %2441 = vset.pattern.permute.xlu0 0
  %2442 = vperm.xlu0 %2441, %v2416
  %v2443 = vpop.permute.xlu0 %2442
  %2446 = vset.pattern.permute.xlu0 0
  %2447 = vperm.xlu0 %2446, %v2417
  %v2448 = vpop.permute.xlu0 %2447
  %2451 = vset.pattern.permute.xlu0 0
  %2452 = vperm.xlu0 %2451, %v2418
  %v2453 = vpop.permute.xlu0 %2452
  %2456 = vset.pattern.permute.xlu0 0
  %2457 = vperm.xlu0 %2456, %v2419
  %v2458 = vpop.permute.xlu0 %2457
  %2461 = vset.pattern.permute.xlu0 0
  %2462 = vperm.xlu0 %2461, %v2420
  %v2463 = vpop.permute.xlu0 %2462
  %2466 = vset.pattern.permute.xlu0 0
  %2467 = vperm.xlu0 %2466, %v2421
  %v2468 = vpop.permute.xlu0 %2467
  %2471 = vset.pattern.permute.xlu0 0
  %2472 = vperm.xlu0 %2471, %v2422
  %v2473 = vpop.permute.xlu0 %2472
  %2476 = vset.pattern.permute.xlu0 0
  %2477 = vperm.xlu0 %2476, %v2423
  %v2478 = vpop.permute.xlu0 %2477
  %2481 = vset.pattern.permute.xlu0 0
  %2482 = vperm.xlu0 %2481, %v2424
  %v2483 = vpop.permute.xlu0 %2482
  %2486 = vset.pattern.permute.xlu0 0
  %2487 = vperm.xlu0 %2486, %v2425
  %v2488 = vpop.permute.xlu0 %2487
  %2491 = vset.pattern.permute.xlu0 0
  %2492 = vperm.xlu0 %2491, %v2426
  %v2493 = vpop.permute.xlu0 %2492
  %2496 = vset.pattern.permute.xlu0 0
  %2497 = vperm.xlu0 %2496, %v2427
  %v2498 = vpop.permute.xlu0 %2497
  %2501 = vset.pattern.permute.xlu0 0
  %2502 = vperm.xlu0 %2501, %v2428
  %v2503 = vpop.permute.xlu0 %2502
  %2506 = vset.pattern.permute.xlu0 0
  %2507 = vperm.xlu0 %2506, %v2429
  %v2508 = vpop.permute.xlu0 %2507
  %v2510 = vmul.f32 %v2350, %v2433
  %v2511 = vmul.f32 %v2351, %v2438
  %v2512 = vmul.f32 %v2352, %v2443
  %v2513 = vmul.f32 %v2353, %v2448
  %v2514 = vmul.f32 %v2354, %v2453
  %v2515 = vmul.f32 %v2355, %v2458
  %v2516 = vmul.f32 %v2356, %v2463
  %v2517 = vmul.f32 %v2357, %v2468
  %v2518 = vmul.f32 %v2358, %v2473
  %v2519 = vmul.f32 %v2359, %v2478
  %v2520 = vmul.f32 %v2360, %v2483
  %v2521 = vmul.f32 %v2361, %v2488
  %v2522 = vmul.f32 %v2362, %v2493
  %v2523 = vmul.f32 %v2363, %v2498
  %v2524 = vmul.f32 %v2364, %v2503
  %v2525 = vmul.f32 %v2365, %v2508
  %v2526 = vld [vmem:[%s4 + $0x280] sm:$0xff]
  %v2527 = vld [vmem:[%s4 + $0x288] sm:$0xff]
  %v2528 = vld [vmem:[%s4 + $0x290] sm:$0xff]
  %v2529 = vld [vmem:[%s4 + $0x298] sm:$0xff]
  %v2530 = vld [vmem:[%s4 + $0x2a0] sm:$0xff]
  %v2531 = vld [vmem:[%s4 + $0x2a8] sm:$0xff]
  %v2532 = vld [vmem:[%s4 + $0x2b0] sm:$0xff]
  %v2533 = vld [vmem:[%s4 + $0x2b8] sm:$0xff]
  %v2534 = vld [vmem:[%s4 + $0x2c0] sm:$0xff]
  %v2535 = vld [vmem:[%s4 + $0x2c8] sm:$0xff]
  %v2536 = vld [vmem:[%s4 + $0x2d0] sm:$0xff]
  %v2537 = vld [vmem:[%s4 + $0x2d8] sm:$0xff]
  %v2538 = vld [vmem:[%s4 + $0x2e0] sm:$0xff]
  %v2539 = vld [vmem:[%s4 + $0x2e8] sm:$0xff]
  %v2540 = vld [vmem:[%s4 + $0x2f0] sm:$0xff]
  %v2541 = vld [vmem:[%s4 + $0x2f8] sm:$0xff]
  %v2542 = vpack.c.bf16 %v2511, %v2510
  %v2543 = vpack.c.bf16 %v2513, %v2512
  %v2544 = vpack.c.bf16 %v2515, %v2514
  %v2545 = vpack.c.bf16 %v2517, %v2516
  %v2546 = vpack.c.bf16 %v2519, %v2518
  %v2547 = vpack.c.bf16 %v2521, %v2520
  %v2548 = vpack.c.bf16 %v2523, %v2522
  %v2549 = vpack.c.bf16 %v2525, %v2524
  %v2550 = vpack.c.bf16 %v2527, %v2526
  %v2551 = vpack.c.bf16 %v2529, %v2528
  %v2552 = vpack.c.bf16 %v2531, %v2530
  %v2553 = vpack.c.bf16 %v2533, %v2532
  %v2554 = vpack.c.bf16 %v2535, %v2534
  %v2555 = vpack.c.bf16 %v2537, %v2536
  %v2556 = vpack.c.bf16 %v2539, %v2538
  %v2557 = vpack.c.bf16 %v2541, %v2540
  %2558 = vmatprep.subr.bf16.mxu0 0
  %2559 = vmatpush1.bf16.msra.mxu0 %v2550
  %2560 = vmatprep.subr.bf16.mxu0 0
  %2561 = vmatpush1.bf16.msra.mxu0 %v2551
  %2562 = vmatprep.subr.bf16.mxu0 0
  %2563 = vmatpush1.bf16.msra.mxu0 %v2552
  %2564 = vmatprep.subr.bf16.mxu0 0
  %2565 = vmatpush1.bf16.msra.mxu0 %v2553
  %2566 = vmatprep.subr.bf16.mxu0 0
  %2567 = vmatpush1.bf16.msra.mxu0 %v2554
  %2568 = vmatprep.subr.bf16.mxu0 0
  %2569 = vmatpush1.bf16.msra.mxu0 %v2555
  %2570 = vmatprep.subr.bf16.mxu0 0
  %2571 = vmatpush1.bf16.msra.mxu0 %v2556
  %2572 = vmatprep.subr.bf16.mxu0 0
  %2573 = vmatpush1.bf16.msra.mxu0 %v2557
  %2574 = vmatprep.subr.bf16.mxu0 0
  %2575 = vmatpush1.bf16.msra.mxu0 0
  %2576 = vmatprep.subr.bf16.mxu0 0
  %2577 = vmatpush1.bf16.msra.mxu0 0
  %2578 = vmatprep.subr.bf16.mxu0 0
  %2579 = vmatpush1.bf16.msra.mxu0 0
  %2580 = vmatprep.subr.bf16.mxu0 0
  %2581 = vmatpush1.bf16.msra.mxu0 0
  %2582 = vmatprep.subr.bf16.mxu0 0
  %2583 = vmatpush1.bf16.msra.mxu0 0
  %2584 = vmatprep.subr.bf16.mxu0 0
  %2585 = vmatpush1.bf16.msra.mxu0 0
  %2586 = vmatprep.subr.bf16.mxu0 0
  %2587 = vmatpush1.bf16.msra.mxu0 0
  %2588 = vmatprep.subr.bf16.mxu0 0
  %2589 = vmatpush1.bf16.msra.mxu0 0
  %2590 = vmatprep.mubr.bf16.mxu0 0
  %2591 = vmatmul.mubr.bf16.gmra.mrb[0].mxu0 %v2542
  %v2592 = vpop.f32.mrb[0].mxu0
  %v2593 = vadd.f32 0.0, %v2592
  %v2594 = vpop.f32.mrb[0].mxu0
  %v2595 = vpop.f32.mrb[0].mxu0
  %v2596 = vadd.f32 0.0, %v2595
  %v2597 = vpop.f32.mrb[0].mxu0
  %2598 = vmatprep.mubr.bf16.mxu0 0
  %2599 = vmatmul.mubr.bf16.gmra.mrb[0].mxu0 %v2543
  %v2600 = vpop.f32.mrb[0].mxu0
  %v2601 = vadd.f32 0.0, %v2600
  %v2602 = vpop.f32.mrb[0].mxu0
  %v2603 = vpop.f32.mrb[0].mxu0
  %v2604 = vadd.f32 0.0, %v2603
  %v2605 = vpop.f32.mrb[0].mxu0
  %2606 = vmatprep.mubr.bf16.mxu0 0
  %2607 = vmatmul.mubr.bf16.gmra.mrb[0].mxu0 %v2544
  %v2608 = vpop.f32.mrb[0].mxu0
  %v2609 = vadd.f32 0.0, %v2608
  %v2610 = vpop.f32.mrb[0].mxu0
  %v2611 = vpop.f32.mrb[0].mxu0
  %v2612 = vadd.f32 0.0, %v2611
  %v2613 = vpop.f32.mrb[0].mxu0
  %2614 = vmatprep.mubr.bf16.mxu0 0
  %2615 = vmatmul.mubr.bf16.gmra.mrb[0].mxu0 %v2545
  %v2616 = vpop.f32.mrb[0].mxu0
  %v2617 = vadd.f32 0.0, %v2616
  %v2618 = vpop.f32.mrb[0].mxu0
  %v2619 = vpop.f32.mrb[0].mxu0
  %v2620 = vadd.f32 0.0, %v2619
  %v2621 = vpop.f32.mrb[0].mxu0
  %2622 = vmatprep.mubr.bf16.mxu0 0
  %2623 = vmatmul.mubr.bf16.gmra.mrb[0].mxu0 %v2546
  %v2624 = vpop.f32.mrb[0].mxu0
  %v2625 = vadd.f32 0.0, %v2624
  %v2626 = vpop.f32.mrb[0].mxu0
  %v2627 = vpop.f32.mrb[0].mxu0
  %v2628 = vadd.f32 0.0, %v2627
  %v2629 = vpop.f32.mrb[0].mxu0
  %2630 = vmatprep.mubr.bf16.mxu0 0
  %2631 = vmatmul.mubr.bf16.gmra.mrb[0].mxu0 %v2547
  %v2632 = vpop.f32.mrb[0].mxu0
  %v2633 = vadd.f32 0.0, %v2632
  %v2634 = vpop.f32.mrb[0].mxu0
  %v2635 = vpop.f32.mrb[0].mxu0
  %v2636 = vadd.f32 0.0, %v2635
  %v2637 = vpop.f32.mrb[0].mxu0
  %2638 = vmatprep.mubr.bf16.mxu0 0
  %2639 = vmatmul.mubr.bf16.gmra.mrb[0].mxu0 %v2548
  %v2640 = vpop.f32.mrb[0].mxu0
  %v2641 = vadd.f32 0.0, %v2640
  %v2642 = vpop.f32.mrb[0].mxu0
  %v2643 = vpop.f32.mrb[0].mxu0
  %v2644 = vadd.f32 0.0, %v2643
  %v2645 = vpop.f32.mrb[0].mxu0
  %2646 = vmatprep.mubr.bf16.mxu0 0
  %2647 = vmatmul.mubr.bf16.gmra.mrb[0].mxu0 %v2549
  %v2648 = vpop.f32.mrb[0].mxu0
  %v2649 = vadd.f32 0.0, %v2648
  %v2650 = vpop.f32.mrb[0].mxu0
  %v2651 = vpop.f32.mrb[0].mxu0
  %v2652 = vadd.f32 0.0, %v2651
  %v2653 = vpop.f32.mrb[0].mxu0
  %2654 = vdwg.mxu0
  %v2655 = vadd.f32 %v2334, %v2593
  %v2656 = vadd.f32 %v2335, %v2596
  %v2657 = vadd.f32 %v2336, %v2601
  %v2658 = vadd.f32 %v2337, %v2604
  %v2659 = vadd.f32 %v2338, %v2609
  %v2660 = vadd.f32 %v2339, %v2612
  %v2661 = vadd.f32 %v2340, %v2617
  %v2662 = vadd.f32 %v2341, %v2620
  %v2663 = vadd.f32 %v2342, %v2625
  %v2664 = vadd.f32 %v2343, %v2628
  %v2665 = vadd.f32 %v2344, %v2633
  %v2666 = vadd.f32 %v2345, %v2636
  %v2667 = vadd.f32 %v2346, %v2641
  %v2668 = vadd.f32 %v2347, %v2644
  %v2669 = vadd.f32 %v2348, %v2649
  %v2670 = vadd.f32 %v2349, %v2652
  %v2671 = vld [vmem:[#allocation2 + $0x17] sm:$0xff]
  %v2672 = vld [vmem:[#allocation2 + $0x1f] sm:$0xff]
  %v2673 = vld [vmem:[#allocation2 + $0x27] sm:$0xff]
  %v2674 = vld [vmem:[#allocation2 + $0x2f] sm:$0xff]
  %v2675 = vld [vmem:[#allocation2 + $0x37] sm:$0xff]
  %v2676 = vld [vmem:[#allocation2 + $0x3f] sm:$0xff]
  %v2677 = vld [vmem:[#allocation2 + $0x47] sm:$0xff]
  %v2678 = vld [vmem:[#allocation2 + $0x4f] sm:$0xff]
  %v2679 = vld [vmem:[#allocation2 + $0x57] sm:$0xff]
  %v2680 = vld [vmem:[#allocation2 + $0x5f] sm:$0xff]
  %v2681 = vld [vmem:[#allocation2 + $0x67] sm:$0xff]
  %v2682 = vld [vmem:[#allocation2 + $0x6f] sm:$0xff]
  %v2683 = vld [vmem:[#allocation2 + $0x77] sm:$0xff]
  %v2684 = vld [vmem:[#allocation2 + $0x7f] sm:$0xff]
  %v2685 = vld [vmem:[#allocation2 + $0x87] sm:$0xff]
  %v2686 = vld [vmem:[#allocation2 + $0x8f] sm:$0xff]
  %v2687 = vadd.s32 %v505, 1
  %v2688 = vadd.s32 %v506, 1
  %v2689 = vadd.s32 %v507, 1
  %v2690 = vadd.s32 %v508, 1
  %v2691 = vadd.s32 %v509, 1
  %v2692 = vadd.s32 %v510, 1
  %v2693 = vadd.s32 %v511, 1
  %v2694 = vadd.s32 %v512, 1
  %v2695 = vadd.s32 %v513, 1
  %v2696 = vadd.s32 %v514, 1
  %v2697 = vadd.s32 %v515, 1
  %v2698 = vadd.s32 %v516, 1
  %v2699 = vadd.s32 %v517, 1
  %v2700 = vadd.s32 %v518, 1
  %v2701 = vadd.s32 %v519, 1
  %v2702 = vadd.s32 %v520, 1
  %vm2703 = vcmp.ge.s32.totalorder %v2687, 0
  %vm2704 = vcmp.ge.s32.totalorder %v2688, 0
  %vm2705 = vcmp.ge.s32.totalorder %v2689, 0
  %vm2706 = vcmp.ge.s32.totalorder %v2690, 0
  %vm2707 = vcmp.ge.s32.totalorder %v2691, 0
  %vm2708 = vcmp.ge.s32.totalorder %v2692, 0
  %vm2709 = vcmp.ge.s32.totalorder %v2693, 0
  %vm2710 = vcmp.ge.s32.totalorder %v2694, 0
  %vm2711 = vcmp.ge.s32.totalorder %v2695, 0
  %vm2712 = vcmp.ge.s32.totalorder %v2696, 0
  %vm2713 = vcmp.ge.s32.totalorder %v2697, 0
  %vm2714 = vcmp.ge.s32.totalorder %v2698, 0
  %vm2715 = vcmp.ge.s32.totalorder %v2699, 0
  %vm2716 = vcmp.ge.s32.totalorder %v2700, 0
  %vm2717 = vcmp.ge.s32.totalorder %v2701, 0
  %vm2718 = vcmp.ge.s32.totalorder %v2702, 0
  %vm2719 = vcmp.lt.s32.totalorder %v2687, 8
  %vm2720 = vcmp.lt.s32.totalorder %v2688, 8
  %vm2721 = vcmp.lt.s32.totalorder %v2689, 8
  %vm2722 = vcmp.lt.s32.totalorder %v2690, 8
  %vm2723 = vcmp.lt.s32.totalorder %v2691, 8
  %vm2724 = vcmp.lt.s32.totalorder %v2692, 8
  %vm2725 = vcmp.lt.s32.totalorder %v2693, 8
  %vm2726 = vcmp.lt.s32.totalorder %v2694, 8
  %vm2727 = vcmp.lt.s32.totalorder %v2695, 8
  %vm2728 = vcmp.lt.s32.totalorder %v2696, 8
  %vm2729 = vcmp.lt.s32.totalorder %v2697, 8
  %vm2730 = vcmp.lt.s32.totalorder %v2698, 8
  %vm2731 = vcmp.lt.s32.totalorder %v2699, 8
  %vm2732 = vcmp.lt.s32.totalorder %v2700, 8
  %vm2733 = vcmp.lt.s32.totalorder %v2701, 8
  %vm2734 = vcmp.lt.s32.totalorder %v2702, 8
  %vm2735 = vmand %vm2703, %vm2719
  %vm2736 = vmand %vm2704, %vm2720
  %vm2737 = vmand %vm2705, %vm2721
  %vm2738 = vmand %vm2706, %vm2722
  %vm2739 = vmand %vm2707, %vm2723
  %vm2740 = vmand %vm2708, %vm2724
  %vm2741 = vmand %vm2709, %vm2725
  %vm2742 = vmand %vm2710, %vm2726
  %vm2743 = vmand %vm2711, %vm2727
  %vm2744 = vmand %vm2712, %vm2728
  %vm2745 = vmand %vm2713, %vm2729
  %vm2746 = vmand %vm2714, %vm2730
  %vm2747 = vmand %vm2715, %vm2731
  %vm2748 = vmand %vm2716, %vm2732
  %vm2749 = vmand %vm2717, %vm2733
  %vm2750 = vmand %vm2718, %vm2734
  %vm2751 = vmand %vm2735, %vm633
  %vm2752 = vmand %vm2736, %vm634
  %vm2753 = vmand %vm2737, %vm635
  %vm2754 = vmand %vm2738, %vm636
  %vm2755 = vmand %vm2739, %vm637
  %vm2756 = vmand %vm2740, %vm638
  %vm2757 = vmand %vm2741, %vm639
  %vm2758 = vmand %vm2742, %vm640
  %vm2759 = vmand %vm2743, %vm641
  %vm2760 = vmand %vm2744, %vm642
  %vm2761 = vmand %vm2745, %vm643
  %vm2762 = vmand %vm2746, %vm644
  %vm2763 = vmand %vm2747, %vm645
  %vm2764 = vmand %vm2748, %vm646
  %vm2765 = vmand %vm2749, %vm647
  %vm2766 = vmand %vm2750, %vm648
  %vm2767 = vmand %vm2751, %vm665
  %vm2768 = vmand %vm2752, %vm666
  %vm2769 = vmand %vm2753, %vm667
  %vm2770 = vmand %vm2754, %vm668
  %vm2771 = vmand %vm2755, %vm669
  %vm2772 = vmand %vm2756, %vm670
  %vm2773 = vmand %vm2757, %vm671
  %vm2774 = vmand %vm2758, %vm672
  %vm2775 = vmand %vm2759, %vm673
  %vm2776 = vmand %vm2760, %vm674
  %vm2777 = vmand %vm2761, %vm675
  %vm2778 = vmand %vm2762, %vm676
  %vm2779 = vmand %vm2763, %vm677
  %vm2780 = vmand %vm2764, %vm678
  %vm2781 = vmand %vm2765, %vm679
  %vm2782 = vmand %vm2766, %vm680
  %v2783 = vsel %vm2767, 1, 0
  %v2784 = vsel %vm2768, 1, 0
  %v2785 = vsel %vm2769, 1, 0
  %v2786 = vsel %vm2770, 1, 0
  %v2787 = vsel %vm2771, 1, 0
  %v2788 = vsel %vm2772, 1, 0
  %v2789 = vsel %vm2773, 1, 0
  %v2790 = vsel %vm2774, 1, 0
  %v2791 = vsel %vm2775, 1, 0
  %v2792 = vsel %vm2776, 1, 0
  %v2793 = vsel %vm2777, 1, 0
  %v2794 = vsel %vm2778, 1, 0
  %v2795 = vsel %vm2779, 1, 0
  %v2796 = vsel %vm2780, 1, 0
  %v2797 = vsel %vm2781, 1, 0
  %v2798 = vsel %vm2782, 1, 0
  %v2799 = vcvt.s32.f32 %v2783
  %v2800 = vcvt.s32.f32 %v2784
  %v2801 = vcvt.s32.f32 %v2785
  %v2802 = vcvt.s32.f32 %v2786
  %v2803 = vcvt.s32.f32 %v2787
  %v2804 = vcvt.s32.f32 %v2788
  %v2805 = vcvt.s32.f32 %v2789
  %v2806 = vcvt.s32.f32 %v2790
  %v2807 = vcvt.s32.f32 %v2791
  %v2808 = vcvt.s32.f32 %v2792
  %v2809 = vcvt.s32.f32 %v2793
  %v2810 = vcvt.s32.f32 %v2794
  %v2811 = vcvt.s32.f32 %v2795
  %v2812 = vcvt.s32.f32 %v2796
  %v2813 = vcvt.s32.f32 %v2797
  %v2814 = vcvt.s32.f32 %v2798
  %2816 = vset.pattern.permute.xlu0 0
  %2817 = vperm.xlu0 %2816, %v2799
  %v2818 = vpop.permute.xlu0 %2817
  %2821 = vset.pattern.permute.xlu0 0
  %2822 = vperm.xlu0 %2821, %v2800
  %v2823 = vpop.permute.xlu0 %2822
  %2826 = vset.pattern.permute.xlu0 0
  %2827 = vperm.xlu0 %2826, %v2801
  %v2828 = vpop.permute.xlu0 %2827
  %2831 = vset.pattern.permute.xlu0 0
  %2832 = vperm.xlu0 %2831, %v2802
  %v2833 = vpop.permute.xlu0 %2832
  %2836 = vset.pattern.permute.xlu0 0
  %2837 = vperm.xlu0 %2836, %v2803
  %v2838 = vpop.permute.xlu0 %2837
  %2841 = vset.pattern.permute.xlu0 0
  %2842 = vperm.xlu0 %2841, %v2804
  %v2843 = vpop.permute.xlu0 %2842
  %2846 = vset.pattern.permute.xlu0 0
  %2847 = vperm.xlu0 %2846, %v2805
  %v2848 = vpop.permute.xlu0 %2847
  %2851 = vset.pattern.permute.xlu0 0
  %2852 = vperm.xlu0 %2851, %v2806
  %v2853 = vpop.permute.xlu0 %2852
  %2856 = vset.pattern.permute.xlu0 0
  %2857 = vperm.xlu0 %2856, %v2807
  %v2858 = vpop.permute.xlu0 %2857
  %2861 = vset.pattern.permute.xlu0 0
  %2862 = vperm.xlu0 %2861, %v2808
  %v2863 = vpop.permute.xlu0 %2862
  %2866 = vset.pattern.permute.xlu0 0
  %2867 = vperm.xlu0 %2866, %v2809
  %v2868 = vpop.permute.xlu0 %2867
  %2871 = vset.pattern.permute.xlu0 0
  %2872 = vperm.xlu0 %2871, %v2810
  %v2873 = vpop.permute.xlu0 %2872
  %2876 = vset.pattern.permute.xlu0 0
  %2877 = vperm.xlu0 %2876, %v2811
  %v2878 = vpop.permute.xlu0 %2877
  %2881 = vset.pattern.permute.xlu0 0
  %2882 = vperm.xlu0 %2881, %v2812
  %v2883 = vpop.permute.xlu0 %2882
  %2886 = vset.pattern.permute.xlu0 0
  %2887 = vperm.xlu0 %2886, %v2813
  %v2888 = vpop.permute.xlu0 %2887
  %2891 = vset.pattern.permute.xlu0 0
  %2892 = vperm.xlu0 %2891, %v2814
  %v2893 = vpop.permute.xlu0 %2892
  %v2895 = vmul.f32 %v2671, %v2818
  %v2896 = vmul.f32 %v2672, %v2823
  %v2897 = vmul.f32 %v2673, %v2828
  %v2898 = vmul.f32 %v2674, %v2833
  %v2899 = vmul.f32 %v2675, %v2838
  %v2900 = vmul.f32 %v2676, %v2843
  %v2901 = vmul.f32 %v2677, %v2848
  %v2902 = vmul.f32 %v2678, %v2853
  %v2903 = vmul.f32 %v2679, %v2858
  %v2904 = vmul.f32 %v2680, %v2863
  %v2905 = vmul.f32 %v2681, %v2868
  %v2906 = vmul.f32 %v2682, %v2873
  %v2907 = vmul.f32 %v2683, %v2878
  %v2908 = vmul.f32 %v2684, %v2883
  %v2909 = vmul.f32 %v2685, %v2888
  %v2910 = vmul.f32 %v2686, %v2893
  %v2911 = vld [vmem:[%s4 + $0x300] sm:$0xff]
  %v2912 = vld [vmem:[%s4 + $0x308] sm:$0xff]
  %v2913 = vld [vmem:[%s4 + $0x310] sm:$0xff]
  %v2914 = vld [vmem:[%s4 + $0x318] sm:$0xff]
  %v2915 = vld [vmem:[%s4 + $0x320] sm:$0xff]
  %v2916 = vld [vmem:[%s4 + $0x328] sm:$0xff]
  %v2917 = vld [vmem:[%s4 + $0x330] sm:$0xff]
  %v2918 = vld [vmem:[%s4 + $0x338] sm:$0xff]
  %v2919 = vld [vmem:[%s4 + $0x340] sm:$0xff]
  %v2920 = vld [vmem:[%s4 + $0x348] sm:$0xff]
  %v2921 = vld [vmem:[%s4 + $0x350] sm:$0xff]
  %v2922 = vld [vmem:[%s4 + $0x358] sm:$0xff]
  %v2923 = vld [vmem:[%s4 + $0x360] sm:$0xff]
  %v2924 = vld [vmem:[%s4 + $0x368] sm:$0xff]
  %v2925 = vld [vmem:[%s4 + $0x370] sm:$0xff]
  %v2926 = vld [vmem:[%s4 + $0x378] sm:$0xff]
  %v2927 = vpack.c.bf16 %v2896, %v2895
  %v2928 = vpack.c.bf16 %v2898, %v2897
  %v2929 = vpack.c.bf16 %v2900, %v2899
  %v2930 = vpack.c.bf16 %v2902, %v2901
  %v2931 = vpack.c.bf16 %v2904, %v2903
  %v2932 = vpack.c.bf16 %v2906, %v2905
  %v2933 = vpack.c.bf16 %v2908, %v2907
  %v2934 = vpack.c.bf16 %v2910, %v2909
  %v2935 = vpack.c.bf16 %v2912, %v2911
  %v2936 = vpack.c.bf16 %v2914, %v2913
  %v2937 = vpack.c.bf16 %v2916, %v2915
  %v2938 = vpack.c.bf16 %v2918, %v2917
  %v2939 = vpack.c.bf16 %v2920, %v2919
  %v2940 = vpack.c.bf16 %v2922, %v2921
  %v2941 = vpack.c.bf16 %v2924, %v2923
  %v2942 = vpack.c.bf16 %v2926, %v2925
  %2943 = vmatprep.subr.bf16.mxu0 0
  %2944 = vmatpush1.bf16.msra.mxu0 %v2935
  %2945 = vmatprep.subr.bf16.mxu0 0
  %2946 = vmatpush1.bf16.msra.mxu0 %v2936
  %2947 = vmatprep.subr.bf16.mxu0 0
  %2948 = vmatpush1.bf16.msra.mxu0 %v2937
  %2949 = vmatprep.subr.bf16.mxu0 0
  %2950 = vmatpush1.bf16.msra.mxu0 %v2938
  %2951 = vmatprep.subr.bf16.mxu0 0
  %2952 = vmatpush1.bf16.msra.mxu0 %v2939
  %2953 = vmatprep.subr.bf16.mxu0 0
  %2954 = vmatpush1.bf16.msra.mxu0 %v2940
  %2955 = vmatprep.subr.bf16.mxu0 0
  %2956 = vmatpush1.bf16.msra.mxu0 %v2941
  %2957 = vmatprep.subr.bf16.mxu0 0
  %2958 = vmatpush1.bf16.msra.mxu0 %v2942
  %2959 = vmatprep.subr.bf16.mxu0 0
  %2960 = vmatpush1.bf16.msra.mxu0 0
  %2961 = vmatprep.subr.bf16.mxu0 0
  %2962 = vmatpush1.bf16.msra.mxu0 0
  %2963 = vmatprep.subr.bf16.mxu0 0
  %2964 = vmatpush1.bf16.msra.mxu0 0
  %2965 = vmatprep.subr.bf16.mxu0 0
  %2966 = vmatpush1.bf16.msra.mxu0 0
  %2967 = vmatprep.subr.bf16.mxu0 0
  %2968 = vmatpush1.bf16.msra.mxu0 0
  %2969 = vmatprep.subr.bf16.mxu0 0
  %2970 = vmatpush1.bf16.msra.mxu0 0
  %2971 = vmatprep.subr.bf16.mxu0 0
  %2972 = vmatpush1.bf16.msra.mxu0 0
  %2973 = vmatprep.subr.bf16.mxu0 0
  %2974 = vmatpush1.bf16.msra.mxu0 0
  %2975 = vmatprep.mubr.bf16.mxu0 0
  %2976 = vmatmul.mubr.bf16.gmra.mrb[0].mxu0 %v2927
  %v2977 = vpop.f32.mrb[0].mxu0
  %v2978 = vadd.f32 0.0, %v2977
  %v2979 = vpop.f32.mrb[0].mxu0
  %v2980 = vpop.f32.mrb[0].mxu0
  %v2981 = vadd.f32 0.0, %v2980
  %v2982 = vpop.f32.mrb[0].mxu0
  %2983 = vmatprep.mubr.bf16.mxu0 0
  %2984 = vmatmul.mubr.bf16.gmra.mrb[0].mxu0 %v2928
  %v2985 = vpop.f32.mrb[0].mxu0
  %v2986 = vadd.f32 0.0, %v2985
  %v2987 = vpop.f32.mrb[0].mxu0
  %v2988 = vpop.f32.mrb[0].mxu0
  %v2989 = vadd.f32 0.0, %v2988
  %v2990 = vpop.f32.mrb[0].mxu0
  %2991 = vmatprep.mubr.bf16.mxu0 0
  %2992 = vmatmul.mubr.bf16.gmra.mrb[0].mxu0 %v2929
  %v2993 = vpop.f32.mrb[0].mxu0
  %v2994 = vadd.f32 0.0, %v2993
  %v2995 = vpop.f32.mrb[0].mxu0
  %v2996 = vpop.f32.mrb[0].mxu0
  %v2997 = vadd.f32 0.0, %v2996
  %v2998 = vpop.f32.mrb[0].mxu0
  %2999 = vmatprep.mubr.bf16.mxu0 0
  %3000 = vmatmul.mubr.bf16.gmra.mrb[0].mxu0 %v2930
  %v3001 = vpop.f32.mrb[0].mxu0
  %v3002 = vadd.f32 0.0, %v3001
  %v3003 = vpop.f32.mrb[0].mxu0
  %v3004 = vpop.f32.mrb[0].mxu0
  %v3005 = vadd.f32 0.0, %v3004
  %v3006 = vpop.f32.mrb[0].mxu0
  %3007 = vmatprep.mubr.bf16.mxu0 0
  %3008 = vmatmul.mubr.bf16.gmra.mrb[0].mxu0 %v2931
  %v3009 = vpop.f32.mrb[0].mxu0
  %v3010 = vadd.f32 0.0, %v3009
  %v3011 = vpop.f32.mrb[0].mxu0
  %v3012 = vpop.f32.mrb[0].mxu0
  %v3013 = vadd.f32 0.0, %v3012
  %v3014 = vpop.f32.mrb[0].mxu0
  %3015 = vmatprep.mubr.bf16.mxu0 0
  %3016 = vmatmul.mubr.bf16.gmra.mrb[0].mxu0 %v2932
  %v3017 = vpop.f32.mrb[0].mxu0
  %v3018 = vadd.f32 0.0, %v3017
  %v3019 = vpop.f32.mrb[0].mxu0
  %v3020 = vpop.f32.mrb[0].mxu0
  %v3021 = vadd.f32 0.0, %v3020
  %v3022 = vpop.f32.mrb[0].mxu0
  %3023 = vmatprep.mubr.bf16.mxu0 0
  %3024 = vmatmul.mubr.bf16.gmra.mrb[0].mxu0 %v2933
  %v3025 = vpop.f32.mrb[0].mxu0
  %v3026 = vadd.f32 0.0, %v3025
  %v3027 = vpop.f32.mrb[0].mxu0
  %v3028 = vpop.f32.mrb[0].mxu0
  %v3029 = vadd.f32 0.0, %v3028
  %v3030 = vpop.f32.mrb[0].mxu0
  %3031 = vmatprep.mubr.bf16.mxu0 0
  %3032 = vmatmul.mubr.bf16.gmra.mrb[0].mxu0 %v2934
  %v3033 = vpop.f32.mrb[0].mxu0
  %v3034 = vadd.f32 0.0, %v3033
  %v3035 = vpop.f32.mrb[0].mxu0
  %v3036 = vpop.f32.mrb[0].mxu0
  %v3037 = vadd.f32 0.0, %v3036
  %v3038 = vpop.f32.mrb[0].mxu0
  %3039 = vdwg.mxu0
  %v3040 = vadd.f32 %v2655, %v2978
  %v3041 = vadd.f32 %v2656, %v2981
  %v3042 = vadd.f32 %v2657, %v2986
  %v3043 = vadd.f32 %v2658, %v2989
  %v3044 = vadd.f32 %v2659, %v2994
  %v3045 = vadd.f32 %v2660, %v2997
  %v3046 = vadd.f32 %v2661, %v3002
  %v3047 = vadd.f32 %v2662, %v3005
  %v3048 = vadd.f32 %v2663, %v3010
  %v3049 = vadd.f32 %v2664, %v3013
  %v3050 = vadd.f32 %v2665, %v3018
  %v3051 = vadd.f32 %v2666, %v3021
  %v3052 = vadd.f32 %v2667, %v3026
  %v3053 = vadd.f32 %v2668, %v3029
  %v3054 = vadd.f32 %v2669, %v3034
  %v3055 = vadd.f32 %v2670, %v3037
  %v3056 = vld [vmem:[#allocation2 + $0x18] sm:$0xff]
  %v3057 = vld [vmem:[#allocation2 + $0x20] sm:$0xff]
  %v3058 = vld [vmem:[#allocation2 + $0x28] sm:$0xff]
  %v3059 = vld [vmem:[#allocation2 + $0x30] sm:$0xff]
  %v3060 = vld [vmem:[#allocation2 + $0x38] sm:$0xff]
  %v3061 = vld [vmem:[#allocation2 + $0x40] sm:$0xff]
  %v3062 = vld [vmem:[#allocation2 + $0x48] sm:$0xff]
  %v3063 = vld [vmem:[#allocation2 + $0x50] sm:$0xff]
  %v3064 = vld [vmem:[#allocation2 + $0x58] sm:$0xff]
  %v3065 = vld [vmem:[#allocation2 + $0x60] sm:$0xff]
  %v3066 = vld [vmem:[#allocation2 + $0x68] sm:$0xff]
  %v3067 = vld [vmem:[#allocation2 + $0x70] sm:$0xff]
  %v3068 = vld [vmem:[#allocation2 + $0x78] sm:$0xff]
  %v3069 = vld [vmem:[#allocation2 + $0x80] sm:$0xff]
  %v3070 = vld [vmem:[#allocation2 + $0x88] sm:$0xff]
  %v3071 = vld [vmem:[#allocation2 + $0x90] sm:$0xff]
  %vm3072 = vmand %vm2735, %vm873
  %vm3073 = vmand %vm2736, %vm874
  %vm3074 = vmand %vm2737, %vm875
  %vm3075 = vmand %vm2738, %vm876
  %vm3076 = vmand %vm2739, %vm877
  %vm3077 = vmand %vm2740, %vm878
  %vm3078 = vmand %vm2741, %vm879
  %vm3079 = vmand %vm2742, %vm880
  %vm3080 = vmand %vm2743, %vm881
  %vm3081 = vmand %vm2744, %vm882
  %vm3082 = vmand %vm2745, %vm883
  %vm3083 = vmand %vm2746, %vm884
  %vm3084 = vmand %vm2747, %vm885
  %vm3085 = vmand %vm2748, %vm886
  %vm3086 = vmand %vm2749, %vm887
  %vm3087 = vmand %vm2750, %vm888
  %vm3088 = vmand %vm3072, %vm905
  %vm3089 = vmand %vm3073, %vm906
  %vm3090 = vmand %vm3074, %vm907
  %vm3091 = vmand %vm3075, %vm908
  %vm3092 = vmand %vm3076, %vm909
  %vm3093 = vmand %vm3077, %vm910
  %vm3094 = vmand %vm3078, %vm911
  %vm3095 = vmand %vm3079, %vm912
  %vm3096 = vmand %vm3080, %vm913
  %vm3097 = vmand %vm3081, %vm914
  %vm3098 = vmand %vm3082, %vm915
  %vm3099 = vmand %vm3083, %vm916
  %vm3100 = vmand %vm3084, %vm917
  %vm3101 = vmand %vm3085, %vm918
  %vm3102 = vmand %vm3086, %vm919
  %vm3103 = vmand %vm3087, %vm920
  %v3104 = vsel %vm3088, 1, 0
  %v3105 = vsel %vm3089, 1, 0
  %v3106 = vsel %vm3090, 1, 0
  %v3107 = vsel %vm3091, 1, 0
  %v3108 = vsel %vm3092, 1, 0
  %v3109 = vsel %vm3093, 1, 0
  %v3110 = vsel %vm3094, 1, 0
  %v3111 = vsel %vm3095, 1, 0
  %v3112 = vsel %vm3096, 1, 0
  %v3113 = vsel %vm3097, 1, 0
  %v3114 = vsel %vm3098, 1, 0
  %v3115 = vsel %vm3099, 1, 0
  %v3116 = vsel %vm3100, 1, 0
  %v3117 = vsel %vm3101, 1, 0
  %v3118 = vsel %vm3102, 1, 0
  %v3119 = vsel %vm3103, 1, 0
  %v3120 = vcvt.s32.f32 %v3104
  %v3121 = vcvt.s32.f32 %v3105
  %v3122 = vcvt.s32.f32 %v3106
  %v3123 = vcvt.s32.f32 %v3107
  %v3124 = vcvt.s32.f32 %v3108
  %v3125 = vcvt.s32.f32 %v3109
  %v3126 = vcvt.s32.f32 %v3110
  %v3127 = vcvt.s32.f32 %v3111
  %v3128 = vcvt.s32.f32 %v3112
  %v3129 = vcvt.s32.f32 %v3113
  %v3130 = vcvt.s32.f32 %v3114
  %v3131 = vcvt.s32.f32 %v3115
  %v3132 = vcvt.s32.f32 %v3116
  %v3133 = vcvt.s32.f32 %v3117
  %v3134 = vcvt.s32.f32 %v3118
  %v3135 = vcvt.s32.f32 %v3119
  %3137 = vset.pattern.permute.xlu0 0
  %3138 = vperm.xlu0 %3137, %v3120
  %v3139 = vpop.permute.xlu0 %3138
  %3142 = vset.pattern.permute.xlu0 0
  %3143 = vperm.xlu0 %3142, %v3121
  %v3144 = vpop.permute.xlu0 %3143
  %3147 = vset.pattern.permute.xlu0 0
  %3148 = vperm.xlu0 %3147, %v3122
  %v3149 = vpop.permute.xlu0 %3148
  %3152 = vset.pattern.permute.xlu0 0
  %3153 = vperm.xlu0 %3152, %v3123
  %v3154 = vpop.permute.xlu0 %3153
  %3157 = vset.pattern.permute.xlu0 0
  %3158 = vperm.xlu0 %3157, %v3124
  %v3159 = vpop.permute.xlu0 %3158
  %3162 = vset.pattern.permute.xlu0 0
  %3163 = vperm.xlu0 %3162, %v3125
  %v3164 = vpop.permute.xlu0 %3163
  %3167 = vset.pattern.permute.xlu0 0
  %3168 = vperm.xlu0 %3167, %v3126
  %v3169 = vpop.permute.xlu0 %3168
  %3172 = vset.pattern.permute.xlu0 0
  %3173 = vperm.xlu0 %3172, %v3127
  %v3174 = vpop.permute.xlu0 %3173
  %3177 = vset.pattern.permute.xlu0 0
  %3178 = vperm.xlu0 %3177, %v3128
  %v3179 = vpop.permute.xlu0 %3178
  %3182 = vset.pattern.permute.xlu0 0
  %3183 = vperm.xlu0 %3182, %v3129
  %v3184 = vpop.permute.xlu0 %3183
  %3187 = vset.pattern.permute.xlu0 0
  %3188 = vperm.xlu0 %3187, %v3130
  %v3189 = vpop.permute.xlu0 %3188
  %3192 = vset.pattern.permute.xlu0 0
  %3193 = vperm.xlu0 %3192, %v3131
  %v3194 = vpop.permute.xlu0 %3193
  %3197 = vset.pattern.permute.xlu0 0
  %3198 = vperm.xlu0 %3197, %v3132
  %v3199 = vpop.permute.xlu0 %3198
  %3202 = vset.pattern.permute.xlu0 0
  %3203 = vperm.xlu0 %3202, %v3133
  %v3204 = vpop.permute.xlu0 %3203
  %3207 = vset.pattern.permute.xlu0 0
  %3208 = vperm.xlu0 %3207, %v3134
  %v3209 = vpop.permute.xlu0 %3208
  %3212 = vset.pattern.permute.xlu0 0
  %3213 = vperm.xlu0 %3212, %v3135
  %v3214 = vpop.permute.xlu0 %3213
  %v3216 = vmul.f32 %v3056, %v3139
  %v3217 = vmul.f32 %v3057, %v3144
  %v3218 = vmul.f32 %v3058, %v3149
  %v3219 = vmul.f32 %v3059, %v3154
  %v3220 = vmul.f32 %v3060, %v3159
  %v3221 = vmul.f32 %v3061, %v3164
  %v3222 = vmul.f32 %v3062, %v3169
  %v3223 = vmul.f32 %v3063, %v3174
  %v3224 = vmul.f32 %v3064, %v3179
  %v3225 = vmul.f32 %v3065, %v3184
  %v3226 = vmul.f32 %v3066, %v3189
  %v3227 = vmul.f32 %v3067, %v3194
  %v3228 = vmul.f32 %v3068, %v3199
  %v3229 = vmul.f32 %v3069, %v3204
  %v3230 = vmul.f32 %v3070, %v3209
  %v3231 = vmul.f32 %v3071, %v3214
  %v3232 = vld [vmem:[%s4 + $0x380] sm:$0xff]
  %v3233 = vld [vmem:[%s4 + $0x388] sm:$0xff]
  %v3234 = vld [vmem:[%s4 + $0x390] sm:$0xff]
  %v3235 = vld [vmem:[%s4 + $0x398] sm:$0xff]
  %v3236 = vld [vmem:[%s4 + $0x3a0] sm:$0xff]
  %v3237 = vld [vmem:[%s4 + $0x3a8] sm:$0xff]
  %v3238 = vld [vmem:[%s4 + $0x3b0] sm:$0xff]
  %v3239 = vld [vmem:[%s4 + $0x3b8] sm:$0xff]
  %v3240 = vld [vmem:[%s4 + $0x3c0] sm:$0xff]
  %v3241 = vld [vmem:[%s4 + $0x3c8] sm:$0xff]
  %v3242 = vld [vmem:[%s4 + $0x3d0] sm:$0xff]
  %v3243 = vld [vmem:[%s4 + $0x3d8] sm:$0xff]
  %v3244 = vld [vmem:[%s4 + $0x3e0] sm:$0xff]
  %v3245 = vld [vmem:[%s4 + $0x3e8] sm:$0xff]
  %v3246 = vld [vmem:[%s4 + $0x3f0] sm:$0xff]
  %v3247 = vld [vmem:[%s4 + $0x3f8] sm:$0xff]
  %v3248 = vpack.c.bf16 %v3217, %v3216
  %v3249 = vpack.c.bf16 %v3219, %v3218
  %v3250 = vpack.c.bf16 %v3221, %v3220
  %v3251 = vpack.c.bf16 %v3223, %v3222
  %v3252 = vpack.c.bf16 %v3225, %v3224
  %v3253 = vpack.c.bf16 %v3227, %v3226
  %v3254 = vpack.c.bf16 %v3229, %v3228
  %v3255 = vpack.c.bf16 %v3231, %v3230
  %v3256 = vpack.c.bf16 %v3233, %v3232
  %v3257 = vpack.c.bf16 %v3235, %v3234
  %v3258 = vpack.c.bf16 %v3237, %v3236
  %v3259 = vpack.c.bf16 %v3239, %v3238
  %v3260 = vpack.c.bf16 %v3241, %v3240
  %v3261 = vpack.c.bf16 %v3243, %v3242
  %v3262 = vpack.c.bf16 %v3245, %v3244
  %v3263 = vpack.c.bf16 %v3247, %v3246
  %3264 = vmatprep.subr.bf16.mxu0 0
  %3265 = vmatpush1.bf16.msra.mxu0 %v3256
  %3266 = vmatprep.subr.bf16.mxu0 0
  %3267 = vmatpush1.bf16.msra.mxu0 %v3257
  %3268 = vmatprep.subr.bf16.mxu0 0
  %3269 = vmatpush1.bf16.msra.mxu0 %v3258
  %3270 = vmatprep.subr.bf16.mxu0 0
  %3271 = vmatpush1.bf16.msra.mxu0 %v3259
  %3272 = vmatprep.subr.bf16.mxu0 0
  %3273 = vmatpush1.bf16.msra.mxu0 %v3260
  %3274 = vmatprep.subr.bf16.mxu0 0
  %3275 = vmatpush1.bf16.msra.mxu0 %v3261
  %3276 = vmatprep.subr.bf16.mxu0 0
  %3277 = vmatpush1.bf16.msra.mxu0 %v3262
  %3278 = vmatprep.subr.bf16.mxu0 0
  %3279 = vmatpush1.bf16.msra.mxu0 %v3263
  %3280 = vmatprep.subr.bf16.mxu0 0
  %3281 = vmatpush1.bf16.msra.mxu0 0
  %3282 = vmatprep.subr.bf16.mxu0 0
  %3283 = vmatpush1.bf16.msra.mxu0 0
  %3284 = vmatprep.subr.bf16.mxu0 0
  %3285 = vmatpush1.bf16.msra.mxu0 0
  %3286 = vmatprep.subr.bf16.mxu0 0
  %3287 = vmatpush1.bf16.msra.mxu0 0
  %3288 = vmatprep.subr.bf16.mxu0 0
  %3289 = vmatpush1.bf16.msra.mxu0 0
  %3290 = vmatprep.subr.bf16.mxu0 0
  %3291 = vmatpush1.bf16.msra.mxu0 0
  %3292 = vmatprep.subr.bf16.mxu0 0
  %3293 = vmatpush1.bf16.msra.mxu0 0
  %3294 = vmatprep.subr.bf16.mxu0 0
  %3295 = vmatpush1.bf16.msra.mxu0 0
  %3296 = vmatprep.mubr.bf16.mxu0 0
  %3297 = vmatmul.mubr.bf16.gmra.mrb[0].mxu0 %v3248
  %v3298 = vpop.f32.mrb[0].mxu0
  %v3299 = vadd.f32 0.0, %v3298
  %v3300 = vpop.f32.mrb[0].mxu0
  %v3301 = vpop.f32.mrb[0].mxu0
  %v3302 = vadd.f32 0.0, %v3301
  %v3303 = vpop.f32.mrb[0].mxu0
  %3304 = vmatprep.mubr.bf16.mxu0 0
  %3305 = vmatmul.mubr.bf16.gmra.mrb[0].mxu0 %v3249
  %v3306 = vpop.f32.mrb[0].mxu0
  %v3307 = vadd.f32 0.0, %v3306
  %v3308 = vpop.f32.mrb[0].mxu0
  %v3309 = vpop.f32.mrb[0].mxu0
  %v3310 = vadd.f32 0.0, %v3309
  %v3311 = vpop.f32.mrb[0].mxu0
  %3312 = vmatprep.mubr.bf16.mxu0 0
  %3313 = vmatmul.mubr.bf16.gmra.mrb[0].mxu0 %v3250
  %v3314 = vpop.f32.mrb[0].mxu0
  %v3315 = vadd.f32 0.0, %v3314
  %v3316 = vpop.f32.mrb[0].mxu0
  %v3317 = vpop.f32.mrb[0].mxu0
  %v3318 = vadd.f32 0.0, %v3317
  %v3319 = vpop.f32.mrb[0].mxu0
  %3320 = vmatprep.mubr.bf16.mxu0 0
  %3321 = vmatmul.mubr.bf16.gmra.mrb[0].mxu0 %v3251
  %v3322 = vpop.f32.mrb[0].mxu0
  %v3323 = vadd.f32 0.0, %v3322
  %v3324 = vpop.f32.mrb[0].mxu0
  %v3325 = vpop.f32.mrb[0].mxu0
  %v3326 = vadd.f32 0.0, %v3325
  %v3327 = vpop.f32.mrb[0].mxu0
  %3328 = vmatprep.mubr.bf16.mxu0 0
  %3329 = vmatmul.mubr.bf16.gmra.mrb[0].mxu0 %v3252
  %v3330 = vpop.f32.mrb[0].mxu0
  %v3331 = vadd.f32 0.0, %v3330
  %v3332 = vpop.f32.mrb[0].mxu0
  %v3333 = vpop.f32.mrb[0].mxu0
  %v3334 = vadd.f32 0.0, %v3333
  %v3335 = vpop.f32.mrb[0].mxu0
  %3336 = vmatprep.mubr.bf16.mxu0 0
  %3337 = vmatmul.mubr.bf16.gmra.mrb[0].mxu0 %v3253
  %v3338 = vpop.f32.mrb[0].mxu0
  %v3339 = vadd.f32 0.0, %v3338
  %v3340 = vpop.f32.mrb[0].mxu0
  %v3341 = vpop.f32.mrb[0].mxu0
  %v3342 = vadd.f32 0.0, %v3341
  %v3343 = vpop.f32.mrb[0].mxu0
  %3344 = vmatprep.mubr.bf16.mxu0 0
  %3345 = vmatmul.mubr.bf16.gmra.mrb[0].mxu0 %v3254
  %v3346 = vpop.f32.mrb[0].mxu0
  %v3347 = vadd.f32 0.0, %v3346
  %v3348 = vpop.f32.mrb[0].mxu0
  %v3349 = vpop.f32.mrb[0].mxu0
  %v3350 = vadd.f32 0.0, %v3349
  %v3351 = vpop.f32.mrb[0].mxu0
  %3352 = vmatprep.mubr.bf16.mxu0 0
  %3353 = vmatmul.mubr.bf16.gmra.mrb[0].mxu0 %v3255
  %v3354 = vpop.f32.mrb[0].mxu0
  %v3355 = vadd.f32 0.0, %v3354
  %v3356 = vpop.f32.mrb[0].mxu0
  %v3357 = vpop.f32.mrb[0].mxu0
  %v3358 = vadd.f32 0.0, %v3357
  %v3359 = vpop.f32.mrb[0].mxu0
  %3360 = vdwg.mxu0
  %v3361 = vadd.f32 %v3040, %v3299
  %v3362 = vadd.f32 %v3041, %v3302
  %v3363 = vadd.f32 %v3042, %v3307
  %v3364 = vadd.f32 %v3043, %v3310
  %v3365 = vadd.f32 %v3044, %v3315
  %v3366 = vadd.f32 %v3045, %v3318
  %v3367 = vadd.f32 %v3046, %v3323
  %v3368 = vadd.f32 %v3047, %v3326
  %v3369 = vadd.f32 %v3048, %v3331
  %v3370 = vadd.f32 %v3049, %v3334
  %v3371 = vadd.f32 %v3050, %v3339
  %v3372 = vadd.f32 %v3051, %v3342
  %v3373 = vadd.f32 %v3052, %v3347
  %v3374 = vadd.f32 %v3053, %v3350
  %v3375 = vadd.f32 %v3054, %v3355
  %v3376 = vadd.f32 %v3055, %v3358
  %v3377 = vld [vmem:[#allocation2 + $0x19] sm:$0xff]
  %v3378 = vld [vmem:[#allocation2 + $0x21] sm:$0xff]
  %v3379 = vld [vmem:[#allocation2 + $0x29] sm:$0xff]
  %v3380 = vld [vmem:[#allocation2 + $0x31] sm:$0xff]
  %v3381 = vld [vmem:[#allocation2 + $0x39] sm:$0xff]
  %v3382 = vld [vmem:[#allocation2 + $0x41] sm:$0xff]
  %v3383 = vld [vmem:[#allocation2 + $0x49] sm:$0xff]
  %v3384 = vld [vmem:[#allocation2 + $0x51] sm:$0xff]
  %v3385 = vld [vmem:[#allocation2 + $0x59] sm:$0xff]
  %v3386 = vld [vmem:[#allocation2 + $0x61] sm:$0xff]
  %v3387 = vld [vmem:[#allocation2 + $0x69] sm:$0xff]
  %v3388 = vld [vmem:[#allocation2 + $0x71] sm:$0xff]
  %v3389 = vld [vmem:[#allocation2 + $0x79] sm:$0xff]
  %v3390 = vld [vmem:[#allocation2 + $0x81] sm:$0xff]
  %v3391 = vld [vmem:[#allocation2 + $0x89] sm:$0xff]
  %v3392 = vld [vmem:[#allocation2 + $0x91] sm:$0xff]
  %vm3393 = vmand %vm2735, %vm1323
  %vm3394 = vmand %vm2736, %vm1324
  %vm3395 = vmand %vm2737, %vm1325
  %vm3396 = vmand %vm2738, %vm1326
  %vm3397 = vmand %vm2739, %vm1327
  %vm3398 = vmand %vm2740, %vm1328
  %vm3399 = vmand %vm2741, %vm1329
  %vm3400 = vmand %vm2742, %vm1330
  %vm3401 = vmand %vm2743, %vm1331
  %vm3402 = vmand %vm2744, %vm1332
  %vm3403 = vmand %vm2745, %vm1333
  %vm3404 = vmand %vm2746, %vm1334
  %vm3405 = vmand %vm2747, %vm1335
  %vm3406 = vmand %vm2748, %vm1336
  %vm3407 = vmand %vm2749, %vm1337
  %vm3408 = vmand %vm2750, %vm1338
  %vm3409 = vmand %vm3393, %vm1355
  %vm3410 = vmand %vm3394, %vm1356
  %vm3411 = vmand %vm3395, %vm1357
  %vm3412 = vmand %vm3396, %vm1358
  %vm3413 = vmand %vm3397, %vm1359
  %vm3414 = vmand %vm3398, %vm1360
  %vm3415 = vmand %vm3399, %vm1361
  %vm3416 = vmand %vm3400, %vm1362
  %vm3417 = vmand %vm3401, %vm1363
  %vm3418 = vmand %vm3402, %vm1364
  %vm3419 = vmand %vm3403, %vm1365
  %vm3420 = vmand %vm3404, %vm1366
  %vm3421 = vmand %vm3405, %vm1367
  %vm3422 = vmand %vm3406, %vm1368
  %vm3423 = vmand %vm3407, %vm1369
  %vm3424 = vmand %vm3408, %vm1370
  %v3425 = vsel %vm3409, 1, 0
  %v3426 = vsel %vm3410, 1, 0
  %v3427 = vsel %vm3411, 1, 0
  %v3428 = vsel %vm3412, 1, 0
  %v3429 = vsel %vm3413, 1, 0
  %v3430 = vsel %vm3414, 1, 0
  %v3431 = vsel %vm3415, 1, 0
  %v3432 = vsel %vm3416, 1, 0
  %v3433 = vsel %vm3417, 1, 0
  %v3434 = vsel %vm3418, 1, 0
  %v3435 = vsel %vm3419, 1, 0
  %v3436 = vsel %vm3420, 1, 0
  %v3437 = vsel %vm3421, 1, 0
  %v3438 = vsel %vm3422, 1, 0
  %v3439 = vsel %vm3423, 1, 0
  %v3440 = vsel %vm3424, 1, 0
  %v3441 = vcvt.s32.f32 %v3425
  %v3442 = vcvt.s32.f32 %v3426
  %v3443 = vcvt.s32.f32 %v3427
  %v3444 = vcvt.s32.f32 %v3428
  %v3445 = vcvt.s32.f32 %v3429
  %v3446 = vcvt.s32.f32 %v3430
  %v3447 = vcvt.s32.f32 %v3431
  %v3448 = vcvt.s32.f32 %v3432
  %v3449 = vcvt.s32.f32 %v3433
  %v3450 = vcvt.s32.f32 %v3434
  %v3451 = vcvt.s32.f32 %v3435
  %v3452 = vcvt.s32.f32 %v3436
  %v3453 = vcvt.s32.f32 %v3437
  %v3454 = vcvt.s32.f32 %v3438
  %v3455 = vcvt.s32.f32 %v3439
  %v3456 = vcvt.s32.f32 %v3440
  %3458 = vset.pattern.permute.xlu0 0
  %3459 = vperm.xlu0 %3458, %v3441
  %v3460 = vpop.permute.xlu0 %3459
  %3463 = vset.pattern.permute.xlu0 0
  %3464 = vperm.xlu0 %3463, %v3442
  %v3465 = vpop.permute.xlu0 %3464
  %3468 = vset.pattern.permute.xlu0 0
  %3469 = vperm.xlu0 %3468, %v3443
  %v3470 = vpop.permute.xlu0 %3469
  %3473 = vset.pattern.permute.xlu0 0
  %3474 = vperm.xlu0 %3473, %v3444
  %v3475 = vpop.permute.xlu0 %3474
  %3478 = vset.pattern.permute.xlu0 0
  %3479 = vperm.xlu0 %3478, %v3445
  %v3480 = vpop.permute.xlu0 %3479
  %3483 = vset.pattern.permute.xlu0 0
  %3484 = vperm.xlu0 %3483, %v3446
  %v3485 = vpop.permute.xlu0 %3484
  %3488 = vset.pattern.permute.xlu0 0
  %3489 = vperm.xlu0 %3488, %v3447
  %v3490 = vpop.permute.xlu0 %3489
  %3493 = vset.pattern.permute.xlu0 0
  %3494 = vperm.xlu0 %3493, %v3448
  %v3495 = vpop.permute.xlu0 %3494
  %3498 = vset.pattern.permute.xlu0 0
  %3499 = vperm.xlu0 %3498, %v3449
  %v3500 = vpop.permute.xlu0 %3499
  %3503 = vset.pattern.permute.xlu0 0
  %3504 = vperm.xlu0 %3503, %v3450
  %v3505 = vpop.permute.xlu0 %3504
  %3508 = vset.pattern.permute.xlu0 0
  %3509 = vperm.xlu0 %3508, %v3451
  %v3510 = vpop.permute.xlu0 %3509
  %3513 = vset.pattern.permute.xlu0 0
  %3514 = vperm.xlu0 %3513, %v3452
  %v3515 = vpop.permute.xlu0 %3514
  %3518 = vset.pattern.permute.xlu0 0
  %3519 = vperm.xlu0 %3518, %v3453
  %v3520 = vpop.permute.xlu0 %3519
  %3523 = vset.pattern.permute.xlu0 0
  %3524 = vperm.xlu0 %3523, %v3454
  %v3525 = vpop.permute.xlu0 %3524
  %3528 = vset.pattern.permute.xlu0 0
  %3529 = vperm.xlu0 %3528, %v3455
  %v3530 = vpop.permute.xlu0 %3529
  %3533 = vset.pattern.permute.xlu0 0
  %3534 = vperm.xlu0 %3533, %v3456
  %v3535 = vpop.permute.xlu0 %3534
  %v3537 = vmul.f32 %v3377, %v3460
  %v3538 = vmul.f32 %v3378, %v3465
  %v3539 = vmul.f32 %v3379, %v3470
  %v3540 = vmul.f32 %v3380, %v3475
  %v3541 = vmul.f32 %v3381, %v3480
  %v3542 = vmul.f32 %v3382, %v3485
  %v3543 = vmul.f32 %v3383, %v3490
  %v3544 = vmul.f32 %v3384, %v3495
  %v3545 = vmul.f32 %v3385, %v3500
  %v3546 = vmul.f32 %v3386, %v3505
  %v3547 = vmul.f32 %v3387, %v3510
  %v3548 = vmul.f32 %v3388, %v3515
  %v3549 = vmul.f32 %v3389, %v3520
  %v3550 = vmul.f32 %v3390, %v3525
  %v3551 = vmul.f32 %v3391, %v3530
  %v3552 = vmul.f32 %v3392, %v3535
  %v3553 = vld [vmem:[%s4 + $0x400] sm:$0xff]
  %v3554 = vld [vmem:[%s4 + $0x408] sm:$0xff]
  %v3555 = vld [vmem:[%s4 + $0x410] sm:$0xff]
  %v3556 = vld [vmem:[%s4 + $0x418] sm:$0xff]
  %v3557 = vld [vmem:[%s4 + $0x420] sm:$0xff]
  %v3558 = vld [vmem:[%s4 + $0x428] sm:$0xff]
  %v3559 = vld [vmem:[%s4 + $0x430] sm:$0xff]
  %v3560 = vld [vmem:[%s4 + $0x438] sm:$0xff]
  %v3561 = vld [vmem:[%s4 + $0x440] sm:$0xff]
  %v3562 = vld [vmem:[%s4 + $0x448] sm:$0xff]
  %v3563 = vld [vmem:[%s4 + $0x450] sm:$0xff]
  %v3564 = vld [vmem:[%s4 + $0x458] sm:$0xff]
  %v3565 = vld [vmem:[%s4 + $0x460] sm:$0xff]
  %v3566 = vld [vmem:[%s4 + $0x468] sm:$0xff]
  %v3567 = vld [vmem:[%s4 + $0x470] sm:$0xff]
  %v3568 = vld [vmem:[%s4 + $0x478] sm:$0xff]
  %v3569 = vpack.c.bf16 %v3538, %v3537
  %v3570 = vpack.c.bf16 %v3540, %v3539
  %v3571 = vpack.c.bf16 %v3542, %v3541
  %v3572 = vpack.c.bf16 %v3544, %v3543
  %v3573 = vpack.c.bf16 %v3546, %v3545
  %v3574 = vpack.c.bf16 %v3548, %v3547
  %v3575 = vpack.c.bf16 %v3550, %v3549
  %v3576 = vpack.c.bf16 %v3552, %v3551
  %v3577 = vpack.c.bf16 %v3554, %v3553
  %v3578 = vpack.c.bf16 %v3556, %v3555
  %v3579 = vpack.c.bf16 %v3558, %v3557
  %v3580 = vpack.c.bf16 %v3560, %v3559
  %v3581 = vpack.c.bf16 %v3562, %v3561
  %v3582 = vpack.c.bf16 %v3564, %v3563
  %v3583 = vpack.c.bf16 %v3566, %v3565
  %v3584 = vpack.c.bf16 %v3568, %v3567
  %3585 = vmatprep.subr.bf16.mxu0 0
  %3586 = vmatpush1.bf16.msra.mxu0 %v3577
  %3587 = vmatprep.subr.bf16.mxu0 0
  %3588 = vmatpush1.bf16.msra.mxu0 %v3578
  %3589 = vmatprep.subr.bf16.mxu0 0
  %3590 = vmatpush1.bf16.msra.mxu0 %v3579
  %3591 = vmatprep.subr.bf16.mxu0 0
  %3592 = vmatpush1.bf16.msra.mxu0 %v3580
  %3593 = vmatprep.subr.bf16.mxu0 0
  %3594 = vmatpush1.bf16.msra.mxu0 %v3581
  %3595 = vmatprep.subr.bf16.mxu0 0
  %3596 = vmatpush1.bf16.msra.mxu0 %v3582
  %3597 = vmatprep.subr.bf16.mxu0 0
  %3598 = vmatpush1.bf16.msra.mxu0 %v3583
  %3599 = vmatprep.subr.bf16.mxu0 0
  %3600 = vmatpush1.bf16.msra.mxu0 %v3584
  %3601 = vmatprep.subr.bf16.mxu0 0
  %3602 = vmatpush1.bf16.msra.mxu0 0
  %3603 = vmatprep.subr.bf16.mxu0 0
  %3604 = vmatpush1.bf16.msra.mxu0 0
  %3605 = vmatprep.subr.bf16.mxu0 0
  %3606 = vmatpush1.bf16.msra.mxu0 0
  %3607 = vmatprep.subr.bf16.mxu0 0
  %3608 = vmatpush1.bf16.msra.mxu0 0
  %3609 = vmatprep.subr.bf16.mxu0 0
  %3610 = vmatpush1.bf16.msra.mxu0 0
  %3611 = vmatprep.subr.bf16.mxu0 0
  %3612 = vmatpush1.bf16.msra.mxu0 0
  %3613 = vmatprep.subr.bf16.mxu0 0
  %3614 = vmatpush1.bf16.msra.mxu0 0
  %3615 = vmatprep.subr.bf16.mxu0 0
  %3616 = vmatpush1.bf16.msra.mxu0 0
  %3617 = vmatprep.mubr.bf16.mxu0 0
  %3618 = vmatmul.mubr.bf16.gmra.mrb[0].mxu0 %v3569
  %v3619 = vpop.f32.mrb[0].mxu0
  %v3620 = vadd.f32 0.0, %v3619
  %v3621 = vpop.f32.mrb[0].mxu0
  %v3622 = vpop.f32.mrb[0].mxu0
  %v3623 = vadd.f32 0.0, %v3622
  %v3624 = vpop.f32.mrb[0].mxu0
  %3625 = vmatprep.mubr.bf16.mxu0 0
  %3626 = vmatmul.mubr.bf16.gmra.mrb[0].mxu0 %v3570
  %v3627 = vpop.f32.mrb[0].mxu0
  %v3628 = vadd.f32 0.0, %v3627
  %v3629 = vpop.f32.mrb[0].mxu0
  %v3630 = vpop.f32.mrb[0].mxu0
  %v3631 = vadd.f32 0.0, %v3630
  %v3632 = vpop.f32.mrb[0].mxu0
  %3633 = vmatprep.mubr.bf16.mxu0 0
  %3634 = vmatmul.mubr.bf16.gmra.mrb[0].mxu0 %v3571
  %v3635 = vpop.f32.mrb[0].mxu0
  %v3636 = vadd.f32 0.0, %v3635
  %v3637 = vpop.f32.mrb[0].mxu0
  %v3638 = vpop.f32.mrb[0].mxu0
  %v3639 = vadd.f32 0.0, %v3638
  %v3640 = vpop.f32.mrb[0].mxu0
  %3641 = vmatprep.mubr.bf16.mxu0 0
  %3642 = vmatmul.mubr.bf16.gmra.mrb[0].mxu0 %v3572
  %v3643 = vpop.f32.mrb[0].mxu0
  %v3644 = vadd.f32 0.0, %v3643
  %v3645 = vpop.f32.mrb[0].mxu0
  %v3646 = vpop.f32.mrb[0].mxu0
  %v3647 = vadd.f32 0.0, %v3646
  %v3648 = vpop.f32.mrb[0].mxu0
  %3649 = vmatprep.mubr.bf16.mxu0 0
  %3650 = vmatmul.mubr.bf16.gmra.mrb[0].mxu0 %v3573
  %v3651 = vpop.f32.mrb[0].mxu0
  %v3652 = vadd.f32 0.0, %v3651
  %v3653 = vpop.f32.mrb[0].mxu0
  %v3654 = vpop.f32.mrb[0].mxu0
  %v3655 = vadd.f32 0.0, %v3654
  %v3656 = vpop.f32.mrb[0].mxu0
  %3657 = vmatprep.mubr.bf16.mxu0 0
  %3658 = vmatmul.mubr.bf16.gmra.mrb[0].mxu0 %v3574
  %v3659 = vpop.f32.mrb[0].mxu0
  %v3660 = vadd.f32 0.0, %v3659
  %v3661 = vpop.f32.mrb[0].mxu0
  %v3662 = vpop.f32.mrb[0].mxu0
  %v3663 = vadd.f32 0.0, %v3662
  %v3664 = vpop.f32.mrb[0].mxu0
  %3665 = vmatprep.mubr.bf16.mxu0 0
  %3666 = vmatmul.mubr.bf16.gmra.mrb[0].mxu0 %v3575
  %v3667 = vpop.f32.mrb[0].mxu0
  %v3668 = vadd.f32 0.0, %v3667
  %v3669 = vpop.f32.mrb[0].mxu0
  %v3670 = vpop.f32.mrb[0].mxu0
  %v3671 = vadd.f32 0.0, %v3670
  %v3672 = vpop.f32.mrb[0].mxu0
  %3673 = vmatprep.mubr.bf16.mxu0 0
  %3674 = vmatmul.mubr.bf16.gmra.mrb[0].mxu0 %v3576
  %v3675 = vpop.f32.mrb[0].mxu0
  %v3676 = vadd.f32 0.0, %v3675
  %v3677 = vpop.f32.mrb[0].mxu0
  %v3678 = vpop.f32.mrb[0].mxu0
  %v3679 = vadd.f32 0.0, %v3678
  %v3680 = vpop.f32.mrb[0].mxu0
  %3681 = vdwg.mxu0
  %v3682 = vadd.f32 %v3361, %v3620
  %v3683 = vadd.f32 %v3362, %v3623
  %v3684 = vadd.f32 %v3363, %v3628
  %v3685 = vadd.f32 %v3364, %v3631
  %v3686 = vadd.f32 %v3365, %v3636
  %v3687 = vadd.f32 %v3366, %v3639
  %v3688 = vadd.f32 %v3367, %v3644
  %v3689 = vadd.f32 %v3368, %v3647
  %v3690 = vadd.f32 %v3369, %v3652
  %v3691 = vadd.f32 %v3370, %v3655
  %v3692 = vadd.f32 %v3371, %v3660
  %v3693 = vadd.f32 %v3372, %v3663
  %v3694 = vadd.f32 %v3373, %v3668
  %v3695 = vadd.f32 %v3374, %v3671
  %v3696 = vadd.f32 %v3375, %v3676
  %v3697 = vadd.f32 %v3376, %v3679
  %v3698 = vld [vmem:[%s5] sm:$0x1]
  %v3699 = vld [vmem:[%s6] sm:$0x1]
  %v3700 = vmul.f32 %v3682, %v94
  %v3701 = vmul.f32 %v3683, %v95
  %v3702 = vmul.f32 %v3684, %v96
  %v3703 = vmul.f32 %v3685, %v97
  %v3704 = vmul.f32 %v3686, %v98
  %v3705 = vmul.f32 %v3687, %v99
  %v3706 = vmul.f32 %v3688, %v100
  %v3707 = vmul.f32 %v3689, %v101
  %v3708 = vmul.f32 %v3690, %v102
  %v3709 = vmul.f32 %v3691, %v103
  %v3710 = vmul.f32 %v3692, %v104
  %v3711 = vmul.f32 %v3693, %v105
  %v3712 = vmul.f32 %v3694, %v106
  %v3713 = vmul.f32 %v3695, %v107
  %v3714 = vmul.f32 %v3696, %v108
  %v3715 = vmul.f32 %v3697, %v109
  %v3716 = vadd.f32 %v3700, %v3701
  %v3717 = vadd.f32 %v3716, %v3702
  %v3718 = vadd.f32 %v3717, %v3703
  %v3719 = vadd.f32 %v3718, %v3704
  %v3720 = vadd.f32 %v3719, %v3705
  %v3721 = vadd.f32 %v3720, %v3706
  %v3722 = vadd.f32 %v3721, %v3707
  %v3723 = vadd.f32 %v3722, %v3708
  %v3724 = vadd.f32 %v3723, %v3709
  %v3725 = vadd.f32 %v3724, %v3710
  %v3726 = vadd.f32 %v3725, %v3711
  %v3727 = vadd.f32 %v3726, %v3712
  %v3728 = vadd.f32 %v3727, %v3713
  %v3729 = vadd.f32 %v3728, %v3714
  %v3730 = vadd.f32 %v3729, %v3715
  %v3731 = vrot.slane %v3730, 4
  %v3732 = vadd.f32 %v3730, %v3731
  %v3733 = vrot.slane %v3732, 2
  %v3734 = vadd.f32 %v3732, %v3733
  %v3735 = vrot.slane %v3734, 1
  %v3736 = vadd.f32 %v3734, %v3735
  %v3737 = vmul.f32 %v3736, 0.0078125
  %v3738 = vsub.f32 %v3682, %v3737
  %v3739 = vsub.f32 %v3683, %v3737
  %v3740 = vsub.f32 %v3684, %v3737
  %v3741 = vsub.f32 %v3685, %v3737
  %v3742 = vsub.f32 %v3686, %v3737
  %v3743 = vsub.f32 %v3687, %v3737
  %v3744 = vsub.f32 %v3688, %v3737
  %v3745 = vsub.f32 %v3689, %v3737
  %v3746 = vsub.f32 %v3690, %v3737
  %v3747 = vsub.f32 %v3691, %v3737
  %v3748 = vsub.f32 %v3692, %v3737
  %v3749 = vsub.f32 %v3693, %v3737
  %v3750 = vsub.f32 %v3694, %v3737
  %v3751 = vsub.f32 %v3695, %v3737
  %v3752 = vsub.f32 %v3696, %v3737
  %v3753 = vsub.f32 %v3697, %v3737
  %v3754 = vmul.f32 %v3738, %v94
  %v3755 = vmul.f32 %v3739, %v95
  %v3756 = vmul.f32 %v3740, %v96
  %v3757 = vmul.f32 %v3741, %v97
  %v3758 = vmul.f32 %v3742, %v98
  %v3759 = vmul.f32 %v3743, %v99
  %v3760 = vmul.f32 %v3744, %v100
  %v3761 = vmul.f32 %v3745, %v101
  %v3762 = vmul.f32 %v3746, %v102
  %v3763 = vmul.f32 %v3747, %v103
  %v3764 = vmul.f32 %v3748, %v104
  %v3765 = vmul.f32 %v3749, %v105
  %v3766 = vmul.f32 %v3750, %v106
  %v3767 = vmul.f32 %v3751, %v107
  %v3768 = vmul.f32 %v3752, %v108
  %v3769 = vmul.f32 %v3753, %v109
  %v3770 = vmul.f32 %v3754, %v3754
  %v3771 = vmul.f32 %v3755, %v3755
  %v3772 = vmul.f32 %v3756, %v3756
  %v3773 = vmul.f32 %v3757, %v3757
  %v3774 = vmul.f32 %v3758, %v3758
  %v3775 = vmul.f32 %v3759, %v3759
  %v3776 = vmul.f32 %v3760, %v3760
  %v3777 = vmul.f32 %v3761, %v3761
  %v3778 = vmul.f32 %v3762, %v3762
  %v3779 = vmul.f32 %v3763, %v3763
  %v3780 = vmul.f32 %v3764, %v3764
  %v3781 = vmul.f32 %v3765, %v3765
  %v3782 = vmul.f32 %v3766, %v3766
  %v3783 = vmul.f32 %v3767, %v3767
  %v3784 = vmul.f32 %v3768, %v3768
  %v3785 = vmul.f32 %v3769, %v3769
  %v3786 = vadd.f32 %v3770, %v3771
  %v3787 = vadd.f32 %v3786, %v3772
  %v3788 = vadd.f32 %v3787, %v3773
  %v3789 = vadd.f32 %v3788, %v3774
  %v3790 = vadd.f32 %v3789, %v3775
  %v3791 = vadd.f32 %v3790, %v3776
  %v3792 = vadd.f32 %v3791, %v3777
  %v3793 = vadd.f32 %v3792, %v3778
  %v3794 = vadd.f32 %v3793, %v3779
  %v3795 = vadd.f32 %v3794, %v3780
  %v3796 = vadd.f32 %v3795, %v3781
  %v3797 = vadd.f32 %v3796, %v3782
  %v3798 = vadd.f32 %v3797, %v3783
  %v3799 = vadd.f32 %v3798, %v3784
  %v3800 = vadd.f32 %v3799, %v3785
  %v3801 = vrot.slane %v3800, 4
  %v3802 = vadd.f32 %v3800, %v3801
  %v3803 = vrot.slane %v3802, 2
  %v3804 = vadd.f32 %v3802, %v3803
  %v3805 = vrot.slane %v3804, 1
  %v3806 = vadd.f32 %v3804, %v3805
  %v3807 = vmul.f32 %v3806, 0.0078125
  %v3808 = vadd.f32 %v3807, 1e-05
  %v3809 = vrsqrt.pop %v3808
  %v3810 = vmul.f32 %v3738, %v3809
  %v3811 = vmul.f32 %v3739, %v3809
  %v3812 = vmul.f32 %v3740, %v3809
  %v3813 = vmul.f32 %v3741, %v3809
  %v3814 = vmul.f32 %v3742, %v3809
  %v3815 = vmul.f32 %v3743, %v3809
  %v3816 = vmul.f32 %v3744, %v3809
  %v3817 = vmul.f32 %v3745, %v3809
  %v3818 = vmul.f32 %v3746, %v3809
  %v3819 = vmul.f32 %v3747, %v3809
  %v3820 = vmul.f32 %v3748, %v3809
  %v3821 = vmul.f32 %v3749, %v3809
  %v3822 = vmul.f32 %v3750, %v3809
  %v3823 = vmul.f32 %v3751, %v3809
  %v3824 = vmul.f32 %v3752, %v3809
  %v3825 = vmul.f32 %v3753, %v3809
  %v3827 = vlaneseq
  %v3828 = vshrl.u32 %v3827, 7
  %v3829 = vsub.s32 0, %v3828
  %v3830 = vrot.slane %v3698, %v3829
  %v3832 = vmul.f32 %v3810, %v3830
  %v3833 = vmul.f32 %v3811, %v3830
  %v3834 = vmul.f32 %v3812, %v3830
  %v3835 = vmul.f32 %v3813, %v3830
  %v3836 = vmul.f32 %v3814, %v3830
  %v3837 = vmul.f32 %v3815, %v3830
  %v3838 = vmul.f32 %v3816, %v3830
  %v3839 = vmul.f32 %v3817, %v3830
  %v3840 = vmul.f32 %v3818, %v3830
  %v3841 = vmul.f32 %v3819, %v3830
  %v3842 = vmul.f32 %v3820, %v3830
  %v3843 = vmul.f32 %v3821, %v3830
  %v3844 = vmul.f32 %v3822, %v3830
  %v3845 = vmul.f32 %v3823, %v3830
  %v3846 = vmul.f32 %v3824, %v3830
  %v3847 = vmul.f32 %v3825, %v3830
  %v3849 = vlaneseq
  %v3850 = vshrl.u32 %v3849, 7
  %v3851 = vsub.s32 0, %v3850
  %v3852 = vrot.slane %v3699, %v3851
  %v3854 = vadd.f32 %v3832, %v3852
  %v3855 = vadd.f32 %v3833, %v3852
  %v3856 = vadd.f32 %v3834, %v3852
  %v3857 = vadd.f32 %v3835, %v3852
  %v3858 = vadd.f32 %v3836, %v3852
  %v3859 = vadd.f32 %v3837, %v3852
  %v3860 = vadd.f32 %v3838, %v3852
  %v3861 = vadd.f32 %v3839, %v3852
  %v3862 = vadd.f32 %v3840, %v3852
  %v3863 = vadd.f32 %v3841, %v3852
  %v3864 = vadd.f32 %v3842, %v3852
  %v3865 = vadd.f32 %v3843, %v3852
  %v3866 = vadd.f32 %v3844, %v3852
  %v3867 = vadd.f32 %v3845, %v3852
  %v3868 = vadd.f32 %v3846, %v3852
  %v3869 = vadd.f32 %v3847, %v3852
  %v3870 = vld [vmem:[%s9] sm:$0xff]
  %v3871 = vld [vmem:[%s9 + $0x8] sm:$0xff]
  %v3872 = vld [vmem:[%s9 + $0x10] sm:$0xff]
  %v3873 = vld [vmem:[%s9 + $0x18] sm:$0xff]
  %v3874 = vld [vmem:[%s9 + $0x20] sm:$0xff]
  %v3875 = vld [vmem:[%s9 + $0x28] sm:$0xff]
  %v3876 = vld [vmem:[%s9 + $0x30] sm:$0xff]
  %v3877 = vld [vmem:[%s9 + $0x38] sm:$0xff]
  %v3878 = vld [vmem:[%s9 + $0x40] sm:$0xff]
  %v3879 = vld [vmem:[%s9 + $0x48] sm:$0xff]
  %v3880 = vld [vmem:[%s9 + $0x50] sm:$0xff]
  %v3881 = vld [vmem:[%s9 + $0x58] sm:$0xff]
  %v3882 = vld [vmem:[%s9 + $0x60] sm:$0xff]
  %v3883 = vld [vmem:[%s9 + $0x68] sm:$0xff]
  %v3884 = vld [vmem:[%s9 + $0x70] sm:$0xff]
  %v3885 = vld [vmem:[%s9 + $0x78] sm:$0xff]
  %v3886 = vld [vmem:[%s10] sm:$0xff]
  %v3887 = vld [vmem:[%s10 + $0x8] sm:$0xff]
  %v3888 = vpack.c.bf16 %v3871, %v3870
  %v3889 = vpack.c.bf16 %v3873, %v3872
  %v3890 = vpack.c.bf16 %v3875, %v3874
  %v3891 = vpack.c.bf16 %v3877, %v3876
  %v3892 = vpack.c.bf16 %v3879, %v3878
  %v3893 = vpack.c.bf16 %v3881, %v3880
  %v3894 = vpack.c.bf16 %v3883, %v3882
  %v3895 = vpack.c.bf16 %v3885, %v3884
  %v3896 = vpack.c.bf16 %v3887, %v3886
  %vm3897 = vcmask 130048
  %v3899 = vsel %vm3897, %v3888, 0
  %v3902 = vsel %vm3897, %v3889, 0
  %v3905 = vsel %vm3897, %v3890, 0
  %v3908 = vsel %vm3897, %v3891, 0
  %v3911 = vsel %vm3897, %v3892, 0
  %v3914 = vsel %vm3897, %v3893, 0
  %v3917 = vsel %vm3897, %v3894, 0
  %v3920 = vsel %vm3897, %v3895, 0
  %3922 = vmatprep.subr.bf16.mxu0 0
  %3923 = vmatpush1.bf16.msra.mxu0 %v3896
  %3924 = vmatprep.subr.bf16.mxu0 0
  %3925 = vmatpush1.bf16.msra.mxu0 0
  %3926 = vmatprep.subr.bf16.mxu0 0
  %3927 = vmatpush1.bf16.msra.mxu0 0
  %3928 = vmatprep.subr.bf16.mxu0 0
  %3929 = vmatpush1.bf16.msra.mxu0 0
  %3930 = vmatprep.subr.bf16.mxu0 0
  %3931 = vmatpush1.bf16.msra.mxu0 0
  %3932 = vmatprep.subr.bf16.mxu0 0
  %3933 = vmatpush1.bf16.msra.mxu0 0
  %3934 = vmatprep.subr.bf16.mxu0 0
  %3935 = vmatpush1.bf16.msra.mxu0 0
  %3936 = vmatprep.subr.bf16.mxu0 0
  %3937 = vmatpush1.bf16.msra.mxu0 0
  %3938 = vmatprep.subr.bf16.mxu0 0
  %3939 = vmatpush1.bf16.msra.mxu0 0
  %3940 = vmatprep.subr.bf16.mxu0 0
  %3941 = vmatpush1.bf16.msra.mxu0 0
  %3942 = vmatprep.subr.bf16.mxu0 0
  %3943 = vmatpush1.bf16.msra.mxu0 0
  %3944 = vmatprep.subr.bf16.mxu0 0
  %3945 = vmatpush1.bf16.msra.mxu0 0
  %3946 = vmatprep.subr.bf16.mxu0 0
  %3947 = vmatpush1.bf16.msra.mxu0 0
  %3948 = vmatprep.subr.bf16.mxu0 0
  %3949 = vmatpush1.bf16.msra.mxu0 0
  %3950 = vmatprep.subr.bf16.mxu0 0
  %3951 = vmatpush1.bf16.msra.mxu0 0
  %3952 = vmatprep.subr.bf16.mxu0 0
  %3953 = vmatpush1.bf16.msra.mxu0 0
  %3954 = vmatprep.mubr.bf16.mxu0 0
  %3955 = vmatmul.mubr.bf16.gmra.mrb[0].mxu0 %v3899
  %v3956 = vpop.f32.mrb[0].mxu0
  %v3957 = vadd.f32 0.0, %v3956
  %v3958 = vpop.f32.mrb[0].mxu0
  %v3959 = vpop.f32.mrb[0].mxu0
  %v3960 = vadd.f32 0.0, %v3959
  %v3961 = vpop.f32.mrb[0].mxu0
  %3962 = vmatprep.mubr.bf16.mxu0 0
  %3963 = vmatmul.mubr.bf16.gmra.mrb[0].mxu0 %v3902
  %v3964 = vpop.f32.mrb[0].mxu0
  %v3965 = vadd.f32 0.0, %v3964
  %v3966 = vpop.f32.mrb[0].mxu0
  %v3967 = vpop.f32.mrb[0].mxu0
  %v3968 = vadd.f32 0.0, %v3967
  %v3969 = vpop.f32.mrb[0].mxu0
  %3970 = vmatprep.mubr.bf16.mxu0 0
  %3971 = vmatmul.mubr.bf16.gmra.mrb[0].mxu0 %v3905
  %v3972 = vpop.f32.mrb[0].mxu0
  %v3973 = vadd.f32 0.0, %v3972
  %v3974 = vpop.f32.mrb[0].mxu0
  %v3975 = vpop.f32.mrb[0].mxu0
  %v3976 = vadd.f32 0.0, %v3975
  %v3977 = vpop.f32.mrb[0].mxu0
  %3978 = vmatprep.mubr.bf16.mxu0 0
  %3979 = vmatmul.mubr.bf16.gmra.mrb[0].mxu0 %v3908
  %v3980 = vpop.f32.mrb[0].mxu0
  %v3981 = vadd.f32 0.0, %v3980
  %v3982 = vpop.f32.mrb[0].mxu0
  %v3983 = vpop.f32.mrb[0].mxu0
  %v3984 = vadd.f32 0.0, %v3983
  %v3985 = vpop.f32.mrb[0].mxu0
  %3986 = vmatprep.mubr.bf16.mxu0 0
  %3987 = vmatmul.mubr.bf16.gmra.mrb[0].mxu0 %v3911
  %v3988 = vpop.f32.mrb[0].mxu0
  %v3989 = vadd.f32 0.0, %v3988
  %v3990 = vpop.f32.mrb[0].mxu0
  %v3991 = vpop.f32.mrb[0].mxu0
  %v3992 = vadd.f32 0.0, %v3991
  %v3993 = vpop.f32.mrb[0].mxu0
  %3994 = vmatprep.mubr.bf16.mxu0 0
  %3995 = vmatmul.mubr.bf16.gmra.mrb[0].mxu0 %v3914
  %v3996 = vpop.f32.mrb[0].mxu0
  %v3997 = vadd.f32 0.0, %v3996
  %v3998 = vpop.f32.mrb[0].mxu0
  %v3999 = vpop.f32.mrb[0].mxu0
  %v4000 = vadd.f32 0.0, %v3999
  %v4001 = vpop.f32.mrb[0].mxu0
  %4002 = vmatprep.mubr.bf16.mxu0 0
  %4003 = vmatmul.mubr.bf16.gmra.mrb[0].mxu0 %v3917
  %v4004 = vpop.f32.mrb[0].mxu0
  %v4005 = vadd.f32 0.0, %v4004
  %v4006 = vpop.f32.mrb[0].mxu0
  %v4007 = vpop.f32.mrb[0].mxu0
  %v4008 = vadd.f32 0.0, %v4007
  %v4009 = vpop.f32.mrb[0].mxu0
  %4010 = vmatprep.mubr.bf16.mxu0 0
  %4011 = vmatmul.mubr.bf16.gmra.mrb[0].mxu0 %v3920
  %v4012 = vpop.f32.mrb[0].mxu0
  %v4013 = vadd.f32 0.0, %v4012
  %v4014 = vpop.f32.mrb[0].mxu0
  %v4015 = vpop.f32.mrb[0].mxu0
  %v4016 = vadd.f32 0.0, %v4015
  %v4017 = vpop.f32.mrb[0].mxu0
  %4018 = vdwg.mxu0
  %v4019 = vld [vmem:[%s11] sm:$0x1]
  %v4020 = vld [vmem:[%s12] sm:$0x1]
  %v4021 = vmul.f32 %v3957, %v94
  %v4022 = vmul.f32 %v3960, %v95
  %v4023 = vmul.f32 %v3965, %v96
  %v4024 = vmul.f32 %v3968, %v97
  %v4025 = vmul.f32 %v3973, %v98
  %v4026 = vmul.f32 %v3976, %v99
  %v4027 = vmul.f32 %v3981, %v100
  %v4028 = vmul.f32 %v3984, %v101
  %v4029 = vmul.f32 %v3989, %v102
  %v4030 = vmul.f32 %v3992, %v103
  %v4031 = vmul.f32 %v3997, %v104
  %v4032 = vmul.f32 %v4000, %v105
  %v4033 = vmul.f32 %v4005, %v106
  %v4034 = vmul.f32 %v4008, %v107
  %v4035 = vmul.f32 %v4013, %v108
  %v4036 = vmul.f32 %v4016, %v109
  %v4037 = vadd.f32 %v4021, %v4022
  %v4038 = vadd.f32 %v4037, %v4023
  %v4039 = vadd.f32 %v4038, %v4024
  %v4040 = vadd.f32 %v4039, %v4025
  %v4041 = vadd.f32 %v4040, %v4026
  %v4042 = vadd.f32 %v4041, %v4027
  %v4043 = vadd.f32 %v4042, %v4028
  %v4044 = vadd.f32 %v4043, %v4029
  %v4045 = vadd.f32 %v4044, %v4030
  %v4046 = vadd.f32 %v4045, %v4031
  %v4047 = vadd.f32 %v4046, %v4032
  %v4048 = vadd.f32 %v4047, %v4033
  %v4049 = vadd.f32 %v4048, %v4034
  %v4050 = vadd.f32 %v4049, %v4035
  %v4051 = vadd.f32 %v4050, %v4036
  %v4052 = vrot.slane %v4051, 4
  %v4053 = vadd.f32 %v4051, %v4052
  %v4054 = vrot.slane %v4053, 2
  %v4055 = vadd.f32 %v4053, %v4054
  %v4056 = vrot.slane %v4055, 1
  %v4057 = vadd.f32 %v4055, %v4056
  %v4058 = vmul.f32 %v4057, 0.0078125
  %v4059 = vsub.f32 %v3957, %v4058
  %v4060 = vsub.f32 %v3960, %v4058
  %v4061 = vsub.f32 %v3965, %v4058
  %v4062 = vsub.f32 %v3968, %v4058
  %v4063 = vsub.f32 %v3973, %v4058
  %v4064 = vsub.f32 %v3976, %v4058
  %v4065 = vsub.f32 %v3981, %v4058
  %v4066 = vsub.f32 %v3984, %v4058
  %v4067 = vsub.f32 %v3989, %v4058
  %v4068 = vsub.f32 %v3992, %v4058
  %v4069 = vsub.f32 %v3997, %v4058
  %v4070 = vsub.f32 %v4000, %v4058
  %v4071 = vsub.f32 %v4005, %v4058
  %v4072 = vsub.f32 %v4008, %v4058
  %v4073 = vsub.f32 %v4013, %v4058
  %v4074 = vsub.f32 %v4016, %v4058
  %v4075 = vmul.f32 %v4059, %v94
  %v4076 = vmul.f32 %v4060, %v95
  %v4077 = vmul.f32 %v4061, %v96
  %v4078 = vmul.f32 %v4062, %v97
  %v4079 = vmul.f32 %v4063, %v98
  %v4080 = vmul.f32 %v4064, %v99
  %v4081 = vmul.f32 %v4065, %v100
  %v4082 = vmul.f32 %v4066, %v101
  %v4083 = vmul.f32 %v4067, %v102
  %v4084 = vmul.f32 %v4068, %v103
  %v4085 = vmul.f32 %v4069, %v104
  %v4086 = vmul.f32 %v4070, %v105
  %v4087 = vmul.f32 %v4071, %v106
  %v4088 = vmul.f32 %v4072, %v107
  %v4089 = vmul.f32 %v4073, %v108
  %v4090 = vmul.f32 %v4074, %v109
  %v4091 = vmul.f32 %v4075, %v4075
  %v4092 = vmul.f32 %v4076, %v4076
  %v4093 = vmul.f32 %v4077, %v4077
  %v4094 = vmul.f32 %v4078, %v4078
  %v4095 = vmul.f32 %v4079, %v4079
  %v4096 = vmul.f32 %v4080, %v4080
  %v4097 = vmul.f32 %v4081, %v4081
  %v4098 = vmul.f32 %v4082, %v4082
  %v4099 = vmul.f32 %v4083, %v4083
  %v4100 = vmul.f32 %v4084, %v4084
  %v4101 = vmul.f32 %v4085, %v4085
  %v4102 = vmul.f32 %v4086, %v4086
  %v4103 = vmul.f32 %v4087, %v4087
  %v4104 = vmul.f32 %v4088, %v4088
  %v4105 = vmul.f32 %v4089, %v4089
  %v4106 = vmul.f32 %v4090, %v4090
  %v4107 = vadd.f32 %v4091, %v4092
  %v4108 = vadd.f32 %v4107, %v4093
  %v4109 = vadd.f32 %v4108, %v4094
  %v4110 = vadd.f32 %v4109, %v4095
  %v4111 = vadd.f32 %v4110, %v4096
  %v4112 = vadd.f32 %v4111, %v4097
  %v4113 = vadd.f32 %v4112, %v4098
  %v4114 = vadd.f32 %v4113, %v4099
  %v4115 = vadd.f32 %v4114, %v4100
  %v4116 = vadd.f32 %v4115, %v4101
  %v4117 = vadd.f32 %v4116, %v4102
  %v4118 = vadd.f32 %v4117, %v4103
  %v4119 = vadd.f32 %v4118, %v4104
  %v4120 = vadd.f32 %v4119, %v4105
  %v4121 = vadd.f32 %v4120, %v4106
  %v4122 = vrot.slane %v4121, 4
  %v4123 = vadd.f32 %v4121, %v4122
  %v4124 = vrot.slane %v4123, 2
  %v4125 = vadd.f32 %v4123, %v4124
  %v4126 = vrot.slane %v4125, 1
  %v4127 = vadd.f32 %v4125, %v4126
  %v4128 = vmul.f32 %v4127, 0.0078125
  %v4129 = vadd.f32 %v4128, 1e-05
  %v4130 = vrsqrt.pop %v4129
  %v4131 = vmul.f32 %v4059, %v4130
  %v4132 = vmul.f32 %v4060, %v4130
  %v4133 = vmul.f32 %v4061, %v4130
  %v4134 = vmul.f32 %v4062, %v4130
  %v4135 = vmul.f32 %v4063, %v4130
  %v4136 = vmul.f32 %v4064, %v4130
  %v4137 = vmul.f32 %v4065, %v4130
  %v4138 = vmul.f32 %v4066, %v4130
  %v4139 = vmul.f32 %v4067, %v4130
  %v4140 = vmul.f32 %v4068, %v4130
  %v4141 = vmul.f32 %v4069, %v4130
  %v4142 = vmul.f32 %v4070, %v4130
  %v4143 = vmul.f32 %v4071, %v4130
  %v4144 = vmul.f32 %v4072, %v4130
  %v4145 = vmul.f32 %v4073, %v4130
  %v4146 = vmul.f32 %v4074, %v4130
  %v4148 = vlaneseq
  %v4149 = vshrl.u32 %v4148, 7
  %v4150 = vsub.s32 0, %v4149
  %v4151 = vrot.slane %v4019, %v4150
  %v4153 = vmul.f32 %v4131, %v4151
  %v4154 = vmul.f32 %v4132, %v4151
  %v4155 = vmul.f32 %v4133, %v4151
  %v4156 = vmul.f32 %v4134, %v4151
  %v4157 = vmul.f32 %v4135, %v4151
  %v4158 = vmul.f32 %v4136, %v4151
  %v4159 = vmul.f32 %v4137, %v4151
  %v4160 = vmul.f32 %v4138, %v4151
  %v4161 = vmul.f32 %v4139, %v4151
  %v4162 = vmul.f32 %v4140, %v4151
  %v4163 = vmul.f32 %v4141, %v4151
  %v4164 = vmul.f32 %v4142, %v4151
  %v4165 = vmul.f32 %v4143, %v4151
  %v4166 = vmul.f32 %v4144, %v4151
  %v4167 = vmul.f32 %v4145, %v4151
  %v4168 = vmul.f32 %v4146, %v4151
  %v4170 = vlaneseq
  %v4171 = vshrl.u32 %v4170, 7
  %v4172 = vsub.s32 0, %v4171
  %v4173 = vrot.slane %v4020, %v4172
  %v4175 = vadd.f32 %v4153, %v4173
  %v4176 = vadd.f32 %v4154, %v4173
  %v4177 = vadd.f32 %v4155, %v4173
  %v4178 = vadd.f32 %v4156, %v4173
  %v4179 = vadd.f32 %v4157, %v4173
  %v4180 = vadd.f32 %v4158, %v4173
  %v4181 = vadd.f32 %v4159, %v4173
  %v4182 = vadd.f32 %v4160, %v4173
  %v4183 = vadd.f32 %v4161, %v4173
  %v4184 = vadd.f32 %v4162, %v4173
  %v4185 = vadd.f32 %v4163, %v4173
  %v4186 = vadd.f32 %v4164, %v4173
  %v4187 = vadd.f32 %v4165, %v4173
  %v4188 = vadd.f32 %v4166, %v4173
  %v4189 = vadd.f32 %v4167, %v4173
  %v4190 = vadd.f32 %v4168, %v4173
  %v4191 = vadd.f32 %v3854, %v4175
  %v4192 = vadd.f32 %v3855, %v4176
  %v4193 = vadd.f32 %v3856, %v4177
  %v4194 = vadd.f32 %v3857, %v4178
  %v4195 = vadd.f32 %v3858, %v4179
  %v4196 = vadd.f32 %v3859, %v4180
  %v4197 = vadd.f32 %v3860, %v4181
  %v4198 = vadd.f32 %v3861, %v4182
  %v4199 = vadd.f32 %v3862, %v4183
  %v4200 = vadd.f32 %v3863, %v4184
  %v4201 = vadd.f32 %v3864, %v4185
  %v4202 = vadd.f32 %v3865, %v4186
  %v4203 = vadd.f32 %v3866, %v4187
  %v4204 = vadd.f32 %v3867, %v4188
  %v4205 = vadd.f32 %v3868, %v4189
  %v4206 = vadd.f32 %v3869, %v4190
  %v4207 = vmax.f32 %v4191, 0.0
  %v4208 = vmax.f32 %v4192, 0.0
  %v4209 = vmax.f32 %v4193, 0.0
  %v4210 = vmax.f32 %v4194, 0.0
  %v4211 = vmax.f32 %v4195, 0.0
  %v4212 = vmax.f32 %v4196, 0.0
  %v4213 = vmax.f32 %v4197, 0.0
  %v4214 = vmax.f32 %v4198, 0.0
  %v4215 = vmax.f32 %v4199, 0.0
  %v4216 = vmax.f32 %v4200, 0.0
  %v4217 = vmax.f32 %v4201, 0.0
  %v4218 = vmax.f32 %v4202, 0.0
  %v4219 = vmax.f32 %v4203, 0.0
  %v4220 = vmax.f32 %v4204, 0.0
  %v4221 = vmax.f32 %v4205, 0.0
  %v4222 = vmax.f32 %v4206, 0.0
  %4223 = vst [vmem:[%s13] sm:$0xff] %v4207
  %4224 = vst [vmem:[%s13 + $0x8] sm:$0xff] %v4208
  %4225 = vst [vmem:[%s13 + $0x10] sm:$0xff] %v4209
  %4226 = vst [vmem:[%s13 + $0x18] sm:$0xff] %v4210
  %4227 = vst [vmem:[%s13 + $0x20] sm:$0xff] %v4211
  %4228 = vst [vmem:[%s13 + $0x28] sm:$0xff] %v4212
  %4229 = vst [vmem:[%s13 + $0x30] sm:$0xff] %v4213
  %4230 = vst [vmem:[%s13 + $0x38] sm:$0xff] %v4214
  %4231 = vst [vmem:[%s13 + $0x40] sm:$0xff] %v4215
  %4232 = vst [vmem:[%s13 + $0x48] sm:$0xff] %v4216
  %4233 = vst [vmem:[%s13 + $0x50] sm:$0xff] %v4217
  %4234 = vst [vmem:[%s13 + $0x58] sm:$0xff] %v4218
  %4235 = vst [vmem:[%s13 + $0x60] sm:$0xff] %v4219
  %4236 = vst [vmem:[%s13 + $0x68] sm:$0xff] %v4220
  %4237 = vst [vmem:[%s13 + $0x70] sm:$0xff] %v4221
  %4238 = vst [vmem:[%s13 + $0x78] sm:$0xff] %v4222
  // Predicated region
  $region54: #{resblock_forward.1} parent=0 // pred_check
    _
  $region55: #{resblock_forward.1} parent=0 // pred_check_branch
    %4240 = sbr.rel (0) target = $region57
  $region56: #{resblock_forward.1} parent=0 // pred_region
    _
  $region57: #{resblock_forward.1} parent=0 // pred_fallthru
    _
  // Predicated region
  $region58: #{resblock_forward.1} parent=0 // pred_check
    _
  $region59: #{resblock_forward.1} parent=0 // pred_check_branch
    %4242 = sbr.rel (0) target = $region61
  $region60: #{resblock_forward.1} parent=0 // pred_region
    _
  $region61: #{resblock_forward.1} parent=0 // pred_fallthru
    _

</llo_original>
